<compile_context>
chip_gen: v7x
topology: tpu7x:2x2x1
jax: 0.10.0
libtpu: 0.0.40
codegen_flags: <defaults>
</compile_context>

<pallas_src>
import functools
import math

import jax
import jax.numpy as jnp
from jax.experimental import pallas as pl
from jax.experimental.pallas import tpu as pltpu


# ---------------------------------------------------------------------------
# Tiling / VMEM helpers
# ---------------------------------------------------------------------------

LANE = 128

# Conservative scoped-VMEM limit that is safe on v7x (64 MiB physical per core) as well as
# v5e/v6e (128 MiB).  On 128 MiB parts this can be raised (~80-96 MiB) for very large images.
_VMEM_LIMIT_BYTES = 40 * 1024 * 1024
_TILE_BUDGET_BYTES = 18 * 1024 * 1024   # per-call working-set budget (inputs/outputs + weights)


def _round_up(x, m):
    return (x + m - 1) // m * m


def _tiles(M, bytes_per_row, resident_bytes):
    """Pick tm (multiple of 16) and padded M.

    * budget counts the VMEM-resident weight/bias blocks (double-buffered by Pallas),
    * tm is a multiple of 16 (bf16 sublane packing),
    * >= 2 grid steps whenever possible so ("parallel",) can use both TensorCores on v7x.
    """
    budget = max(_TILE_BUDGET_BYTES - resident_bytes, 1 << 20)
    tm = 1024
    while tm > 16 and tm * bytes_per_row > budget:
        tm //= 2
    tm = max(tm, 16)
    m16 = _round_up(max(M, 1), 16)
    if tm >= m16:
        tm = m16
    if m16 >= 32 and tm > (m16 + 1) // 2:
        tm = _round_up(m16 // 2, 16)          # guarantee >= 2 grid steps (megacore on v7x)
    m_pad = _round_up(M, tm)
    return tm, m_pad


def _compiler_params():
    return pltpu.CompilerParams(
        dimension_semantics=("parallel",),
        vmem_limit_bytes=_VMEM_LIMIT_BYTES,
    )


def _extract_patches(x, kh, kw, stride, pad):
    """x: (B,H,W,C) -> (B,Ho,Wo,kh*kw*C) with patch-channel order (kh, kw, C)."""
    B, H, W, C = x.shape
    xp = jnp.pad(x, ((0, 0), (pad, pad), (pad, pad), (0, 0)))
    Ho = (H + 2 * pad - kh) // stride + 1
    Wo = (W + 2 * pad - kw) // stride + 1
    pieces = []
    for i in range(kh):
        for j in range(kw):
            pieces.append(xp[:, i:i + stride * Ho:stride, j:j + stride * Wo:stride, :])
    return jnp.concatenate(pieces, axis=-1), Ho, Wo


# ---------------------------------------------------------------------------
# Pallas kernels
# ---------------------------------------------------------------------------

def _conv_kernel(p_ref, w_ref, b_ref, o_ref, *, apply_relu):
    # p: (tm, K) bf16, w: (K, Npad) bf16, b: (1, Npad) f32 -> o: (tm, Npad) out_dtype
    out = jnp.dot(p_ref[...], w_ref[...], preferred_element_type=jnp.float32)
    out = out + b_ref[...]
    if apply_relu:
        out = jnp.maximum(out, 0.0)
    o_ref[...] = out.astype(o_ref.dtype)


def _resblock_kernel(p_ref, w1_ref, b1_ref, w2_ref, b2_ref, r_ref, o_ref, *, final_relu):
    # Fused: 3x3 conv (on ReLU'd patches) -> bias -> ReLU -> 1x1 conv -> bias -> +residual.
    h = jnp.dot(p_ref[...], w1_ref[...], preferred_element_type=jnp.float32)
    h = jnp.maximum(h + b1_ref[...], 0.0).astype(jnp.bfloat16)   # intermediate never leaves VMEM
    out = jnp.dot(h, w2_ref[...], preferred_element_type=jnp.float32)
    out = out + b2_ref[...] + r_ref[...]
    if final_relu:
        out = jnp.maximum(out, 0.0)
    o_ref[...] = out


# ---------------------------------------------------------------------------
# Conv / ResBlock wrappers (im2col glue + tiled pallas_call)
# ---------------------------------------------------------------------------

def conv2d_pallas(x, prep, *, stride, pad, apply_out_relu, out_dtype):
    """x: NHWC, channels already padded to prep's cin_pad (ReLU already applied upstream)."""
    wm, bm, (cout, kh, kw, cin_pad, cout_pad) = prep
    B, H, W, C = x.shape
    assert C == cin_pad, (C, cin_pad)

    a = x.astype(jnp.bfloat16)
    patches, Ho, Wo = _extract_patches(a, kh, kw, stride, pad)
    M = B * Ho * Wo
    K = kh * kw * cin_pad
    pm = patches.reshape(M, K)

    out_itemsize = jnp.dtype(out_dtype).itemsize
    bytes_per_row = K * 2 * 2 + cout_pad * out_itemsize * 2            # double-buffered streams
    resident = (K * cout_pad * 2 + cout_pad * 4) * 2                   # weights + bias (x2 bufs)
    tm, m_pad = _tiles(M, bytes_per_row, resident)
    if m_pad != M:
        pm = jnp.pad(pm, ((0, m_pad - M), (0, 0)))

    out = pl.pallas_call(
        functools.partial(_conv_kernel, apply_relu=apply_out_relu),
        out_shape=jax.ShapeDtypeStruct((m_pad, cout_pad), out_dtype),
        grid=(m_pad // tm,),
        in_specs=[
            pl.BlockSpec((tm, K), lambda m: (m, 0)),        # activation stream
            pl.BlockSpec((K, cout_pad), lambda m: (0, 0)),  # weight: VMEM-resident
            pl.BlockSpec((1, cout_pad), lambda m: (0, 0)),  # bias:   VMEM-resident
        ],
        out_specs=pl.BlockSpec((tm, cout_pad), lambda m: (m, 0)),
        compiler_params=_compiler_params(),
    )(pm, wm, bm)

    if m_pad != M:
        out = out[:M]
    # NOTE: output stays lane-padded to cout_pad; sliced once at the end of encoder_forward.
    return out.reshape(B, Ho, Wo, cout_pad)


def resblock_pallas(x, prep1, prep2, *, final_relu):
    """Fused ResBlock.  x: NHWC f32, channels already lane-padded to cpad (pre-ReLU)."""
    w1m, b1m, (_, kh, kw, cin_pad, n1pad) = prep1          # 3x3 conv -> n_res_channel (padded)
    w2m, b2m, (_, _, _, _, cpad) = prep2                   # 1x1 conv -> hid_channel (padded)
    B, H, W, C = x.shape
    assert C == cin_pad == cpad, (C, cin_pad, cpad)

    a = jnp.maximum(x, 0.0).astype(jnp.bfloat16)           # ReLU + bf16 once, pre-im2col
    patches, Ho, Wo = _extract_patches(a, kh, kw, 1, (kh - 1) // 2)
    M = B * H * W
    K1 = kh * kw * cin_pad
    pm = patches.reshape(M, K1)
    rm = x.reshape(M, cpad)                                 # residual stays lane-padded f32

    bytes_per_row = K1 * 2 * 2 + cpad * 4 * 2 + cpad * 4 * 2 + n1pad * 4
    resident = (K1 * n1pad * 2 + n1pad * 4 + n1pad * cpad * 2 + cpad * 4) * 2
    tm, m_pad = _tiles(M, bytes_per_row, resident)
    if m_pad != M:
        pm = jnp.pad(pm, ((0, m_pad - M), (0, 0)))
        rm = jnp.pad(rm, ((0, m_pad - M), (0, 0)))

    out = pl.pallas_call(
        functools.partial(_resblock_kernel, final_relu=final_relu),
        out_shape=jax.ShapeDtypeStruct((m_pad, cpad), jnp.float32),
        grid=(m_pad // tm,),
        in_specs=[
            pl.BlockSpec((tm, K1), lambda m: (m, 0)),        # patches of ReLU(x)
            pl.BlockSpec((K1, n1pad), lambda m: (0, 0)),     # w1 (resident)
            pl.BlockSpec((1, n1pad), lambda m: (0, 0)),      # b1 (resident)
            pl.BlockSpec((n1pad, cpad), lambda m: (0, 0)),   # w2 (resident)
            pl.BlockSpec((1, cpad), lambda m: (0, 0)),       # b2 (resident)
            pl.BlockSpec((tm, cpad), lambda m: (m, 0)),      # residual (pre-ReLU x, padded)
        ],
        out_specs=pl.BlockSpec((tm, cpad), lambda m: (m, 0)),
        input_output_aliases={5: 0},                         # residual buffer reused as output
        compiler_params=_compiler_params(),
    )(pm, w1m, b1m, w2m, b2m, rm)

    if m_pad != M:
        out = out[:M]
    return out.reshape(B, H, W, cpad)


# ---------------------------------------------------------------------------
# Parameters: PyTorch-default init (OIHW) + one-time kernel-layout preparation
# ---------------------------------------------------------------------------

def _init_conv(key, cout, cin, kh, kw):
    kw_key, kb_key = jax.random.split(key)
    fan_in = cin * kh * kw
    bound = 1.0 / math.sqrt(fan_in)
    w = jax.random.uniform(kw_key, (cout, cin, kh, kw), jnp.float32, -bound, bound)
    b = jax.random.uniform(kb_key, (cout,), jnp.float32, -bound, bound)
    return w, b


def _prep_conv(w, b, *, cin_pad, cout_pad):
    """OIHW f32 -> (kh*kw*cin_pad, cout_pad) bf16 weight + (1, cout_pad) f32 bias."""
    cout, cin, kh, kw = w.shape
    wm = jnp.transpose(w, (2, 3, 1, 0))                                  # (kh, kw, cin, cout)
    wm = jnp.pad(wm, ((0, 0), (0, 0), (0, cin_pad - cin), (0, cout_pad - cout)))
    wm = wm.reshape(kh * kw * cin_pad, cout_pad).astype(jnp.bfloat16)
    bm = jnp.pad(b, (0, cout_pad - cout)).reshape(1, cout_pad).astype(jnp.float32)
    return wm, bm, (cout, kh, kw, cin_pad, cout_pad)


def build_encoder_params(key, in_channel, hid_channel, n_res_block, n_res_channel,
                         scale_factor):
    raw = {"sub": [], "res": []}
    hid = hid_channel // (2 ** scale_factor)
    key, k = jax.random.split(key)
    raw["sub"].append(_init_conv(k, hid, in_channel, 4, 4))          # Conv k4 s2 p1
    ch = hid
    for _ in range(scale_factor):
        key, k = jax.random.split(key)
        raw["sub"].append(_init_conv(k, ch * 2, ch, 4, 4))           # ReLU + Conv k4 s2 p1
        ch *= 2
    key, k = jax.random.split(key)
    raw["sub"].append(_init_conv(k, hid_channel, ch, 3, 3))          # ReLU + Conv k3 s1 p1
    for _ in range(n_res_block):
        key, k1 = jax.random.split(key)
        key, k2 = jax.random.split(key)
        raw["res"].append((_init_conv(k1, n_res_channel, hid_channel, 3, 3),
                           _init_conv(k2, hid_channel, n_res_channel, 1, 1)))
    return raw


def prepare_encoder_params(raw, in_channel, hid_channel, n_res_channel):
    prepared = {"sub": [], "res": []}
    in_pad = _round_up(in_channel, 8)        # first layer: sublane-pad the raw image channels
    prev_pad = in_pad
    for (w, b) in raw["sub"]:
        cout = w.shape[0]
        cout_pad = _round_up(cout, LANE)
        prepared["sub"].append(_prep_conv(w, b, cin_pad=prev_pad, cout_pad=cout_pad))
        prev_pad = cout_pad
    cpad = prev_pad                           # == round_up(hid_channel, 128)
    n1pad = _round_up(n_res_channel, LANE)
    for (w1, b1), (w2, b2) in raw["res"]:
        p1 = _prep_conv(w1, b1, cin_pad=cpad, cout_pad=n1pad)
        p2 = _prep_conv(w2, b2, cin_pad=n1pad, cout_pad=cpad)
        prepared["res"].append((p1, p2))
    prepared["meta"] = {"in_pad": in_pad, "cout": hid_channel}
    return prepared


# ---------------------------------------------------------------------------
# Encoder forward (matches nn.Sequential ordering exactly)
# ---------------------------------------------------------------------------

def encoder_forward(x_nchw, prepared, scale_factor):
    del scale_factor  # layer count is carried by `prepared`
    x = jnp.transpose(x_nchw, (0, 2, 3, 1)).astype(jnp.float32)   # NCHW -> NHWC
    in_pad = prepared["meta"]["in_pad"]
    if in_pad != x.shape[-1]:
        x = jnp.pad(x, ((0, 0), (0, 0), (0, 0), (0, in_pad - x.shape[-1])))

    sub = prepared["sub"]
    res = prepared["res"]

    # SubSampleBlock: Conv(k4,s2,p1), scale_factor x [ReLU, Conv(k4,s2,p1)], [ReLU, Conv(k3,s1,p1)]
    # The ReLU that precedes the NEXT conv is fused into each k4 conv's epilogue (bf16 output).
    for i in range(len(sub) - 1):
        x = conv2d_pallas(x, sub[i], stride=2, pad=1,
                          apply_out_relu=True, out_dtype=jnp.bfloat16)
    # Last subsample conv: pre-ReLU f32 output is the residual source for the first ResBlock
    # (fold the encoder's final ReLU here only if there are no ResBlocks).
    x = conv2d_pallas(x, sub[-1], stride=1, pad=1,
                      apply_out_relu=(len(res) == 0), out_dtype=jnp.float32)

    # ResBlocks (fused); the last one also applies the encoder's trailing ReLU.
    for idx, (p1, p2) in enumerate(res):
        x = resblock_pallas(x, p1, p2, final_relu=(idx == len(res) - 1))

    # Single lane-slice back to the true channel count, once, at the very end.
    x = x[..., :prepared["meta"]["cout"]]
    return jnp.transpose(x, (0, 3, 1, 2))                          # NHWC -> NCHW


# ---------------------------------------------------------------------------

if __name__ == "__main__":
    in_channel, hid_channel, n_res_block, n_res_channel, scale_factor = 3, 32, 2, 16, 1
    B, H, W = 2, 16, 16   # H, W divisible by 2^(scale_factor+1) = 4

    key = jax.random.PRNGKey(0)
    key, xk, pk = jax.random.split(key, 3)
    x = jax.random.normal(xk, (B, in_channel, H, W), jnp.float32)

    raw = build_encoder_params(pk, in_channel, hid_channel, n_res_block,
                               n_res_channel, scale_factor)
    prepared = prepare_encoder_params(raw, in_channel, hid_channel, n_res_channel)

    fwd = jax.jit(lambda inp: encoder_forward(inp, prepared, scale_factor))
    out = jax.block_until_ready(fwd(x))

    expected = (B, hid_channel, H // (2 ** (scale_factor + 1)), W // (2 ** (scale_factor + 1)))
    assert out.shape == expected, (out.shape, expected)
    assert out.dtype == jnp.float32
    assert bool(jnp.all(out >= 0.0))   # final ReLU
    print("KERNEL_OK")
</pallas_src>

<mosaic_0001>
module attributes {stable_mosaic.version = 11 : i64} {
  func.func @_conv_kernel(%arg0: i32, %arg1: memref<64x128xbf16, #tpu.memory_space<vmem>>, %arg2: memref<128x128xbf16, #tpu.memory_space<vmem>>, %arg3: memref<1x128xf32, #tpu.memory_space<vmem>>, %arg4: memref<64x128xbf16, #tpu.memory_space<vmem>>) attributes {dimension_semantics = [#tpu.dimension_semantics<parallel>], iteration_bounds = array<i64: 2>, scalar_prefetch = 0 : i64, scratch_operands = 0 : i64, tpu.core_type = #tpu.core_type<tc>, window_params = [{transform_indices = @transform_0, window_bounds = array<i64: 64, 128>}, {pipeline_mode = #tpu.pipeline_mode<synchronous>, transform_indices = @transform_1, window_bounds = array<i64: 128, 128>}, {pipeline_mode = #tpu.pipeline_mode<synchronous>, transform_indices = @transform_2, window_bounds = array<i64: 1, 128>}, {transform_indices = @transform_3, window_bounds = array<i64: 64, 128>}]} {
    %c0 = arith.constant 0 : index
    %c0_0 = arith.constant 0 : index
    %0 = vector.load %arg1[%c0, %c0_0] : memref<64x128xbf16, #tpu.memory_space<vmem>>, vector<64x128xbf16>
    %c0_1 = arith.constant 0 : index
    %c0_2 = arith.constant 0 : index
    %1 = vector.load %arg2[%c0_1, %c0_2] : memref<128x128xbf16, #tpu.memory_space<vmem>>, vector<128x128xbf16>
    %cst = arith.constant dense<0.000000e+00> : vector<64x128xf32>
    %2 = tpu.matmul %0, %1, %cst {dimension_numbers = #tpu.dot_dimension_numbers<[1], [0], [0], [1], [0, 0, 1, 1], [], []>} : vector<64x128xbf16>, vector<128x128xbf16>, vector<64x128xf32> -> vector<64x128xf32>
    %c0_3 = arith.constant 0 : index
    %c0_4 = arith.constant 0 : index
    %3 = vector.load %arg3[%c0_3, %c0_4] : memref<1x128xf32, #tpu.memory_space<vmem>>, vector<1x128xf32>
    %4 = vector.broadcast %3 : vector<1x128xf32> to vector<64x128xf32>
    %5 = arith.addf %2, %4 : vector<64x128xf32>
    %cst_5 = arith.constant 0.000000e+00 : f32
    %6 = vector.broadcast %cst_5 : f32 to vector<64x128xf32>
    %7 = arith.maximumf %5, %6 : vector<64x128xf32>
    %8 = arith.truncf %7 : vector<64x128xf32> to vector<64x128xbf16>
    %c0_6 = arith.constant 0 : index
    %c0_7 = arith.constant 0 : index
    %9 = vector.load %arg4[%c0_6, %c0_7] : memref<64x128xbf16, #tpu.memory_space<vmem>>, vector<64x128xbf16>
    tpu.vector_store %arg4[%c0_6, %c0_7], %8 {strides = array<i32>} : memref<64x128xbf16, #tpu.memory_space<vmem>>, vector<64x128xbf16>,
    return
  }
  func.func @transform_0(%arg0: i32) -> (i32, i32) {
    %c0_i32 = arith.constant 0 : i32
    %c0_i32_0 = arith.constant 0 : i32
    return %arg0, %c0_i32 : i32, i32
  }
  func.func @transform_1(%arg0: i32) -> (i32, i32) {
    %c0_i32 = arith.constant 0 : i32
    %c0_i32_0 = arith.constant 0 : i32
    %c0_i32_1 = arith.constant 0 : i32
    return %c0_i32, %c0_i32_0 : i32, i32
  }
  func.func @transform_2(%arg0: i32) -> (i32, i32) {
    %c0_i32 = arith.constant 0 : i32
    %c0_i32_0 = arith.constant 0 : i32
    %c0_i32_1 = arith.constant 0 : i32
    return %c0_i32, %c0_i32_0 : i32, i32
  }
  func.func @transform_3(%arg0: i32) -> (i32, i32) {
    %c0_i32 = arith.constant 0 : i32
    %c0_i32_0 = arith.constant 0 : i32
    return %arg0, %c0_i32 : i32, i32
  }
}

module attributes {stable_mosaic.version = 11 : i64} {
  func.func @_conv_kernel(%arg0: i32, %arg1: memref<16x2048xbf16, #tpu.memory_space<vmem>>, %arg2: memref<2048x128xbf16, #tpu.memory_space<vmem>>, %arg3: memref<1x128xf32, #tpu.memory_space<vmem>>, %arg4: memref<16x128xbf16, #tpu.memory_space<vmem>>) attributes {dimension_semantics = [#tpu.dimension_semantics<parallel>], iteration_bounds = array<i64: 2>, scalar_prefetch = 0 : i64, scratch_operands = 0 : i64, tpu.core_type = #tpu.core_type<tc>, window_params = [{transform_indices = @transform_0, window_bounds = array<i64: 16, 2048>}, {pipeline_mode = #tpu.pipeline_mode<synchronous>, transform_indices = @transform_1, window_bounds = array<i64: 2048, 128>}, {pipeline_mode = #tpu.pipeline_mode<synchronous>, transform_indices = @transform_2, window_bounds = array<i64: 1, 128>}, {transform_indices = @transform_3, window_bounds = array<i64: 16, 128>}]} {
    %c0 = arith.constant 0 : index
    %c0_0 = arith.constant 0 : index
    %0 = vector.load %arg1[%c0, %c0_0] : memref<16x2048xbf16, #tpu.memory_space<vmem>>, vector<16x2048xbf16>
    %c0_1 = arith.constant 0 : index
    %c0_2 = arith.constant 0 : index
    %1 = vector.load %arg2[%c0_1, %c0_2] : memref<2048x128xbf16, #tpu.memory_space<vmem>>, vector<2048x128xbf16>
    %cst = arith.constant dense<0.000000e+00> : vector<16x128xf32>
    %2 = tpu.matmul %0, %1, %cst {dimension_numbers = #tpu.dot_dimension_numbers<[1], [0], [0], [1], [0, 0, 1, 1], [], []>} : vector<16x2048xbf16>, vector<2048x128xbf16>, vector<16x128xf32> -> vector<16x128xf32>
    %c0_3 = arith.constant 0 : index
    %c0_4 = arith.constant 0 : index
    %3 = vector.load %arg3[%c0_3, %c0_4] : memref<1x128xf32, #tpu.memory_space<vmem>>, vector<1x128xf32>
    %4 = vector.broadcast %3 : vector<1x128xf32> to vector<16x128xf32>
    %5 = arith.addf %2, %4 : vector<16x128xf32>
    %cst_5 = arith.constant 0.000000e+00 : f32
    %6 = vector.broadcast %cst_5 : f32 to vector<16x128xf32>
    %7 = arith.maximumf %5, %6 : vector<16x128xf32>
    %8 = arith.truncf %7 : vector<16x128xf32> to vector<16x128xbf16>
    %c0_6 = arith.constant 0 : index
    %c0_7 = arith.constant 0 : index
    %9 = vector.load %arg4[%c0_6, %c0_7] : memref<16x128xbf16, #tpu.memory_space<vmem>>, vector<16x128xbf16>
    tpu.vector_store %arg4[%c0_6, %c0_7], %8 {strides = array<i32>} : memref<16x128xbf16, #tpu.memory_space<vmem>>, vector<16x128xbf16>,
    return
  }
  func.func @transform_0(%arg0: i32) -> (i32, i32) {
    %c0_i32 = arith.constant 0 : i32
    %c0_i32_0 = arith.constant 0 : i32
    return %arg0, %c0_i32 : i32, i32
  }
  func.func @transform_1(%arg0: i32) -> (i32, i32) {
    %c0_i32 = arith.constant 0 : i32
    %c0_i32_0 = arith.constant 0 : i32
    %c0_i32_1 = arith.constant 0 : i32
    return %c0_i32, %c0_i32_0 : i32, i32
  }
  func.func @transform_2(%arg0: i32) -> (i32, i32) {
    %c0_i32 = arith.constant 0 : i32
    %c0_i32_0 = arith.constant 0 : i32
    %c0_i32_1 = arith.constant 0 : i32
    return %c0_i32, %c0_i32_0 : i32, i32
  }
  func.func @transform_3(%arg0: i32) -> (i32, i32) {
    %c0_i32 = arith.constant 0 : i32
    %c0_i32_0 = arith.constant 0 : i32
    return %arg0, %c0_i32 : i32, i32
  }
}

module attributes {stable_mosaic.version = 11 : i64} {
  func.func @_conv_kernel(%arg0: i32, %arg1: memref<16x1152xbf16, #tpu.memory_space<vmem>>, %arg2: memref<1152x128xbf16, #tpu.memory_space<vmem>>, %arg3: memref<1x128xf32, #tpu.memory_space<vmem>>, %arg4: memref<16x128xf32, #tpu.memory_space<vmem>>) attributes {dimension_semantics = [#tpu.dimension_semantics<parallel>], iteration_bounds = array<i64: 2>, scalar_prefetch = 0 : i64, scratch_operands = 0 : i64, tpu.core_type = #tpu.core_type<tc>, window_params = [{transform_indices = @transform_0, window_bounds = array<i64: 16, 1152>}, {pipeline_mode = #tpu.pipeline_mode<synchronous>, transform_indices = @transform_1, window_bounds = array<i64: 1152, 128>}, {pipeline_mode = #tpu.pipeline_mode<synchronous>, transform_indices = @transform_2, window_bounds = array<i64: 1, 128>}, {transform_indices = @transform_3, window_bounds = array<i64: 16, 128>}]} {
    %c0 = arith.constant 0 : index
    %c0_0 = arith.constant 0 : index
    %0 = vector.load %arg1[%c0, %c0_0] : memref<16x1152xbf16, #tpu.memory_space<vmem>>, vector<16x1152xbf16>
    %c0_1 = arith.constant 0 : index
    %c0_2 = arith.constant 0 : index
    %1 = vector.load %arg2[%c0_1, %c0_2] : memref<1152x128xbf16, #tpu.memory_space<vmem>>, vector<1152x128xbf16>
    %cst = arith.constant dense<0.000000e+00> : vector<16x128xf32>
    %2 = tpu.matmul %0, %1, %cst {dimension_numbers = #tpu.dot_dimension_numbers<[1], [0], [0], [1], [0, 0, 1, 1], [], []>} : vector<16x1152xbf16>, vector<1152x128xbf16>, vector<16x128xf32> -> vector<16x128xf32>
    %c0_3 = arith.constant 0 : index
    %c0_4 = arith.constant 0 : index
    %3 = vector.load %arg3[%c0_3, %c0_4] : memref<1x128xf32, #tpu.memory_space<vmem>>, vector<1x128xf32>
    %4 = vector.broadcast %3 : vector<1x128xf32> to vector<16x128xf32>
    %5 = arith.addf %2, %4 : vector<16x128xf32>
    %c0_5 = arith.constant 0 : index
    %c0_6 = arith.constant 0 : index
    %6 = vector.load %arg4[%c0_5, %c0_6] : memref<16x128xf32, #tpu.memory_space<vmem>>, vector<16x128xf32>
    tpu.vector_store %arg4[%c0_5, %c0_6], %5 {strides = array<i32>} : memref<16x128xf32, #tpu.memory_space<vmem>>, vector<16x128xf32>,
    return
  }
  func.func @transform_0(%arg0: i32) -> (i32, i32) {
    %c0_i32 = arith.constant 0 : i32
    %c0_i32_0 = arith.constant 0 : i32
    return %arg0, %c0_i32 : i32, i32
  }
  func.func @transform_1(%arg0: i32) -> (i32, i32) {
    %c0_i32 = arith.constant 0 : i32
    %c0_i32_0 = arith.constant 0 : i32
    %c0_i32_1 = arith.constant 0 : i32
    return %c0_i32, %c0_i32_0 : i32, i32
  }
  func.func @transform_2(%arg0: i32) -> (i32, i32) {
    %c0_i32 = arith.constant 0 : i32
    %c0_i32_0 = arith.constant 0 : i32
    %c0_i32_1 = arith.constant 0 : i32
    return %c0_i32, %c0_i32_0 : i32, i32
  }
  func.func @transform_3(%arg0: i32) -> (i32, i32) {
    %c0_i32 = arith.constant 0 : i32
    %c0_i32_0 = arith.constant 0 : i32
    return %arg0, %c0_i32 : i32, i32
  }
}

module attributes {stable_mosaic.version = 11 : i64} {
  func.func @_resblock_kernel(%arg0: i32, %arg1: memref<16x1152xbf16, #tpu.memory_space<vmem>>, %arg2: memref<1152x128xbf16, #tpu.memory_space<vmem>>, %arg3: memref<1x128xf32, #tpu.memory_space<vmem>>, %arg4: memref<128x128xbf16, #tpu.memory_space<vmem>>, %arg5: memref<1x128xf32, #tpu.memory_space<vmem>>, %arg6: memref<16x128xf32, #tpu.memory_space<vmem>>, %arg7: memref<16x128xf32, #tpu.memory_space<vmem>>) attributes {dimension_semantics = [#tpu.dimension_semantics<parallel>], iteration_bounds = array<i64: 2>, scalar_prefetch = 0 : i64, scratch_operands = 0 : i64, tpu.core_type = #tpu.core_type<tc>, window_params = [{transform_indices = @transform_0, window_bounds = array<i64: 16, 1152>}, {pipeline_mode = #tpu.pipeline_mode<synchronous>, transform_indices = @transform_1, window_bounds = array<i64: 1152, 128>}, {pipeline_mode = #tpu.pipeline_mode<synchronous>, transform_indices = @transform_2, window_bounds = array<i64: 1, 128>}, {pipeline_mode = #tpu.pipeline_mode<synchronous>, transform_indices = @transform_3, window_bounds = array<i64: 128, 128>}, {pipeline_mode = #tpu.pipeline_mode<synchronous>, transform_indices = @transform_4, window_bounds = array<i64: 1, 128>}, {transform_indices = @transform_5, window_bounds = array<i64: 16, 128>}, {transform_indices = @transform_6, window_bounds = array<i64: 16, 128>}]} {
    %c0 = arith.constant 0 : index
    %c0_0 = arith.constant 0 : index
    %0 = vector.load %arg1[%c0, %c0_0] : memref<16x1152xbf16, #tpu.memory_space<vmem>>, vector<16x1152xbf16>
    %c0_1 = arith.constant 0 : index
    %c0_2 = arith.constant 0 : index
    %1 = vector.load %arg2[%c0_1, %c0_2] : memref<1152x128xbf16, #tpu.memory_space<vmem>>, vector<1152x128xbf16>
    %cst = arith.constant dense<0.000000e+00> : vector<16x128xf32>
    %2 = tpu.matmul %0, %1, %cst {dimension_numbers = #tpu.dot_dimension_numbers<[1], [0], [0], [1], [0, 0, 1, 1], [], []>} : vector<16x1152xbf16>, vector<1152x128xbf16>, vector<16x128xf32> -> vector<16x128xf32>
    %c0_3 = arith.constant 0 : index
    %c0_4 = arith.constant 0 : index
    %3 = vector.load %arg3[%c0_3, %c0_4] : memref<1x128xf32, #tpu.memory_space<vmem>>, vector<1x128xf32>
    %4 = vector.broadcast %3 : vector<1x128xf32> to vector<16x128xf32>
    %5 = arith.addf %2, %4 : vector<16x128xf32>
    %cst_5 = arith.constant 0.000000e+00 : f32
    %6 = vector.broadcast %cst_5 : f32 to vector<16x128xf32>
    %7 = arith.maximumf %5, %6 : vector<16x128xf32>
    %8 = arith.truncf %7 : vector<16x128xf32> to vector<16x128xbf16>
    %c0_6 = arith.constant 0 : index
    %c0_7 = arith.constant 0 : index
    %9 = vector.load %arg4[%c0_6, %c0_7] : memref<128x128xbf16, #tpu.memory_space<vmem>>, vector<128x128xbf16>
    %cst_8 = arith.constant dense<0.000000e+00> : vector<16x128xf32>
    %10 = tpu.matmul %8, %9, %cst_8 {dimension_numbers = #tpu.dot_dimension_numbers<[1], [0], [0], [1], [0, 0, 1, 1], [], []>} : vector<16x128xbf16>, vector<128x128xbf16>, vector<16x128xf32> -> vector<16x128xf32>
    %c0_9 = arith.constant 0 : index
    %c0_10 = arith.constant 0 : index
    %11 = vector.load %arg5[%c0_9, %c0_10] : memref<1x128xf32, #tpu.memory_space<vmem>>, vector<1x128xf32>
    %12 = vector.broadcast %11 : vector<1x128xf32> to vector<16x128xf32>
    %13 = arith.addf %10, %12 : vector<16x128xf32>
    %c0_11 = arith.constant 0 : index
    %c0_12 = arith.constant 0 : index
    %14 = vector.load %arg6[%c0_11, %c0_12] : memref<16x128xf32, #tpu.memory_space<vmem>>, vector<16x128xf32>
    %15 = arith.addf %13, %14 : vector<16x128xf32>
    %c0_13 = arith.constant 0 : index
    %c0_14 = arith.constant 0 : index
    %16 = vector.load %arg7[%c0_13, %c0_14] : memref<16x128xf32, #tpu.memory_space<vmem>>, vector<16x128xf32>
    tpu.vector_store %arg7[%c0_13, %c0_14], %15 {strides = array<i32>} : memref<16x128xf32, #tpu.memory_space<vmem>>, vector<16x128xf32>,
    return
  }
  func.func @transform_0(%arg0: i32) -> (i32, i32) {
    %c0_i32 = arith.constant 0 : i32
    %c0_i32_0 = arith.constant 0 : i32
    return %arg0, %c0_i32 : i32, i32
  }
  func.func @transform_1(%arg0: i32) -> (i32, i32) {
    %c0_i32 = arith.constant 0 : i32
    %c0_i32_0 = arith.constant 0 : i32
    %c0_i32_1 = arith.constant 0 : i32
    return %c0_i32, %c0_i32_0 : i32, i32
  }
  func.func @transform_2(%arg0: i32) -> (i32, i32) {
    %c0_i32 = arith.constant 0 : i32
    %c0_i32_0 = arith.constant 0 : i32
    %c0_i32_1 = arith.constant 0 : i32
    return %c0_i32, %c0_i32_0 : i32, i32
  }
  func.func @transform_3(%arg0: i32) -> (i32, i32) {
    %c0_i32 = arith.constant 0 : i32
    %c0_i32_0 = arith.constant 0 : i32
    %c0_i32_1 = arith.constant 0 : i32
    return %c0_i32, %c0_i32_0 : i32, i32
  }
  func.func @transform_4(%arg0: i32) -> (i32, i32) {
    %c0_i32 = arith.constant 0 : i32
    %c0_i32_0 = arith.constant 0 : i32
    %c0_i32_1 = arith.constant 0 : i32
    return %c0_i32, %c0_i32_0 : i32, i32
  }
  func.func @transform_5(%arg0: i32) -> (i32, i32) {
    %c0_i32 = arith.constant 0 : i32
    %c0_i32_0 = arith.constant 0 : i32
    return %arg0, %c0_i32 : i32, i32
  }
  func.func @transform_6(%arg0: i32) -> (i32, i32) {
    %c0_i32 = arith.constant 0 : i32
    %c0_i32_0 = arith.constant 0 : i32
    return %arg0, %c0_i32 : i32, i32
  }
}

module attributes {stable_mosaic.version = 11 : i64} {
  func.func @_resblock_kernel(%arg0: i32, %arg1: memref<16x1152xbf16, #tpu.memory_space<vmem>>, %arg2: memref<1152x128xbf16, #tpu.memory_space<vmem>>, %arg3: memref<1x128xf32, #tpu.memory_space<vmem>>, %arg4: memref<128x128xbf16, #tpu.memory_space<vmem>>, %arg5: memref<1x128xf32, #tpu.memory_space<vmem>>, %arg6: memref<16x128xf32, #tpu.memory_space<vmem>>, %arg7: memref<16x128xf32, #tpu.memory_space<vmem>>) attributes {dimension_semantics = [#tpu.dimension_semantics<parallel>], iteration_bounds = array<i64: 2>, scalar_prefetch = 0 : i64, scratch_operands = 0 : i64, tpu.core_type = #tpu.core_type<tc>, window_params = [{transform_indices = @transform_0, window_bounds = array<i64: 16, 1152>}, {pipeline_mode = #tpu.pipeline_mode<synchronous>, transform_indices = @transform_1, window_bounds = array<i64: 1152, 128>}, {pipeline_mode = #tpu.pipeline_mode<synchronous>, transform_indices = @transform_2, window_bounds = array<i64: 1, 128>}, {pipeline_mode = #tpu.pipeline_mode<synchronous>, transform_indices = @transform_3, window_bounds = array<i64: 128, 128>}, {pipeline_mode = #tpu.pipeline_mode<synchronous>, transform_indices = @transform_4, window_bounds = array<i64: 1, 128>}, {transform_indices = @transform_5, window_bounds = array<i64: 16, 128>}, {transform_indices = @transform_6, window_bounds = array<i64: 16, 128>}]} {
    %c0 = arith.constant 0 : index
    %c0_0 = arith.constant 0 : index
    %0 = vector.load %arg1[%c0, %c0_0] : memref<16x1152xbf16, #tpu.memory_space<vmem>>, vector<16x1152xbf16>
    %c0_1 = arith.constant 0 : index
    %c0_2 = arith.constant 0 : index
    %1 = vector.load %arg2[%c0_1, %c0_2] : memref<1152x128xbf16, #tpu.memory_space<vmem>>, vector<1152x128xbf16>
    %cst = arith.constant dense<0.000000e+00> : vector<16x128xf32>
    %2 = tpu.matmul %0, %1, %cst {dimension_numbers = #tpu.dot_dimension_numbers<[1], [0], [0], [1], [0, 0, 1, 1], [], []>} : vector<16x1152xbf16>, vector<1152x128xbf16>, vector<16x128xf32> -> vector<16x128xf32>
    %c0_3 = arith.constant 0 : index
    %c0_4 = arith.constant 0 : index
    %3 = vector.load %arg3[%c0_3, %c0_4] : memref<1x128xf32, #tpu.memory_space<vmem>>, vector<1x128xf32>
    %4 = vector.broadcast %3 : vector<1x128xf32> to vector<16x128xf32>
    %5 = arith.addf %2, %4 : vector<16x128xf32>
    %cst_5 = arith.constant 0.000000e+00 : f32
    %6 = vector.broadcast %cst_5 : f32 to vector<16x128xf32>
    %7 = arith.maximumf %5, %6 : vector<16x128xf32>
    %8 = arith.truncf %7 : vector<16x128xf32> to vector<16x128xbf16>
    %c0_6 = arith.constant 0 : index
    %c0_7 = arith.constant 0 : index
    %9 = vector.load %arg4[%c0_6, %c0_7] : memref<128x128xbf16, #tpu.memory_space<vmem>>, vector<128x128xbf16>
    %cst_8 = arith.constant dense<0.000000e+00> : vector<16x128xf32>
    %10 = tpu.matmul %8, %9, %cst_8 {dimension_numbers = #tpu.dot_dimension_numbers<[1], [0], [0], [1], [0, 0, 1, 1], [], []>} : vector<16x128xbf16>, vector<128x128xbf16>, vector<16x128xf32> -> vector<16x128xf32>
    %c0_9 = arith.constant 0 : index
    %c0_10 = arith.constant 0 : index
    %11 = vector.load %arg5[%c0_9, %c0_10] : memref<1x128xf32, #tpu.memory_space<vmem>>, vector<1x128xf32>
    %12 = vector.broadcast %11 : vector<1x128xf32> to vector<16x128xf32>
    %13 = arith.addf %10, %12 : vector<16x128xf32>
    %c0_11 = arith.constant 0 : index
    %c0_12 = arith.constant 0 : index
    %14 = vector.load %arg6[%c0_11, %c0_12] : memref<16x128xf32, #tpu.memory_space<vmem>>, vector<16x128xf32>
    %15 = arith.addf %13, %14 : vector<16x128xf32>
    %cst_13 = arith.constant 0.000000e+00 : f32
    %16 = vector.broadcast %cst_13 : f32 to vector<16x128xf32>
    %17 = arith.maximumf %15, %16 : vector<16x128xf32>
    %c0_14 = arith.constant 0 : index
    %c0_15 = arith.constant 0 : index
    %18 = vector.load %arg7[%c0_14, %c0_15] : memref<16x128xf32, #tpu.memory_space<vmem>>, vector<16x128xf32>
    tpu.vector_store %arg7[%c0_14, %c0_15], %17 {strides = array<i32>} : memref<16x128xf32, #tpu.memory_space<vmem>>, vector<16x128xf32>,
    return
  }
  func.func @transform_0(%arg0: i32) -> (i32, i32) {
    %c0_i32 = arith.constant 0 : i32
    %c0_i32_0 = arith.constant 0 : i32
    return %arg0, %c0_i32 : i32, i32
  }
  func.func @transform_1(%arg0: i32) -> (i32, i32) {
    %c0_i32 = arith.constant 0 : i32
    %c0_i32_0 = arith.constant 0 : i32
    %c0_i32_1 = arith.constant 0 : i32
    return %c0_i32, %c0_i32_0 : i32, i32
  }
  func.func @transform_2(%arg0: i32) -> (i32, i32) {
    %c0_i32 = arith.constant 0 : i32
    %c0_i32_0 = arith.constant 0 : i32
    %c0_i32_1 = arith.constant 0 : i32
    return %c0_i32, %c0_i32_0 : i32, i32
  }
  func.func @transform_3(%arg0: i32) -> (i32, i32) {
    %c0_i32 = arith.constant 0 : i32
    %c0_i32_0 = arith.constant 0 : i32
    %c0_i32_1 = arith.constant 0 : i32
    return %c0_i32, %c0_i32_0 : i32, i32
  }
  func.func @transform_4(%arg0: i32) -> (i32, i32) {
    %c0_i32 = arith.constant 0 : i32
    %c0_i32_0 = arith.constant 0 : i32
    %c0_i32_1 = arith.constant 0 : i32
    return %c0_i32, %c0_i32_0 : i32, i32
  }
  func.func @transform_5(%arg0: i32) -> (i32, i32) {
    %c0_i32 = arith.constant 0 : i32
    %c0_i32_0 = arith.constant 0 : i32
    return %arg0, %c0_i32 : i32, i32
  }
  func.func @transform_6(%arg0: i32) -> (i32, i32) {
    %c0_i32 = arith.constant 0 : i32
    %c0_i32_0 = arith.constant 0 : i32
    return %arg0, %c0_i32 : i32, i32
  }
}

</mosaic_0001>

<llo_original>
// kernel: _lambda_.5
$region0: #{_lambda_.5}
  #allocation0 [shape = 'u32[]', space=smem, size = 0x4, offset = 0x4, fixed_abs, tag = 'smem constant byte address 0x4 - core index']
  #allocation1 [shape = 'u32[144,128]{1,0:T(1,128)}', space=vmem, size = 0x12000, scoped, tag = 'internal scratch']
  %s0 = inlined_call_operand.vmem [shape: bf16[128,128], index: 0, kind: input, shape index: {}]
  %s1 = inlined_call_operand.vmem [shape: bf16[128,128], index: 1, kind: input, shape index: {}]
  %s2 = inlined_call_operand.vmem [shape: f32[1,128], index: 2, kind: input, shape index: {}]
  %s3 = inlined_call_operand.vmem [shape: bf16[128,128], index: 3, kind: output, shape index: {}]
  %s4 = sld [smem:[#allocation0]]
  $region45: #{_lambda_.5} parent=0
    _
  %s6 = ssub.s32 1, %s4
  %s7 = scalar_select 0, %s6, %s4
  loop: start=0, step=1, limit=4
  $region2: #{_lambda_.5} parent=0 // loop_pre_header
    _
  $region3: #{_lambda_.5} parent=0 // loop_header
    %s9 = sphi 0, %s13
    %p10 = scmp.ge.s32.totalorder %s9, 4
    %s19 = sphi 0, %s21
    %s22 = sphi 0, %s19
    %s23 = sphi 0, %s22
    %s39 = sphi 0, %s23
    %s43 = sphi 0, %s43
    %s45 = sphi 0, %s43
    %s46 = sphi 0, %s45
    %s60 = sphi 0, %s46
    %s64 = sphi 0, %s64
    %s66 = sphi 0, %s64
    %s67 = sphi 0, %s66
    %s81 = sphi 0, %s67
    %s87 = sphi 0, %s89
    %s90 = sphi 0, %s87
    %s91 = sphi 0, %s90
    %s107 = sphi 0, %s91
  $region4: #{_lambda_.5} parent=0 // loop_header_branch
    %12 = sbr.rel (%p10) target = $region8
  $region5: #{_lambda_.5} parent=0 // loop_body
    %s14 = ssub.s32 %s9, 1
    %s15 = ssub.s32 %s9, 2
    %s16 = sadd.s32 %s9, 1
    %s17 = ssub.s32 %s9, %s16
    %p18 = scmp.eq.s32.totalorder %s17, 0
    %s20 = sadd.s32 %s19, 1
    %s21 = scalar_select %p18, %s19, %s20
    %p24 = pneg %p18
    %p25 = scmp.eq.s32.totalorder %s9, 1
    %p26 = por %p24, %p25
    %p27 = scmp.ne.s32.totalorder %s19, %s22
    %p28 = scmp.eq.s32.totalorder %s9, 0
    %p29 = por %p27, %p28
    %p30 = scmp.ne.s32.totalorder %s19, %s22
    %p31 = scmp.eq.s32.totalorder %s14, 1
    %p32 = por %p30, %p31
    %p33 = scmp.ne.s32.totalorder %s22, %s23
    %p34 = scmp.eq.s32.totalorder %s14, 0
    %p35 = por %p33, %p34
    %p36 = scmp.ne.s32.totalorder %s22, %s23
    %p37 = scmp.eq.s32.totalorder %s15, 1
    %p38 = por %p36, %p37
    %p40 = scmp.ne.s32.totalorder %s23, %s39
    %p41 = scmp.eq.s32.totalorder %s15, 0
    %p42 = por %p40, %p41
    %s44 = sadd.s32 %s43, 1
    %p47 = scmp.eq.s32.totalorder %s9, 1
    %p48 = scmp.ne.s32.totalorder %s43, %s45
    %p49 = scmp.eq.s32.totalorder %s9, 0
    %p50 = por %p48, %p49
    %p51 = scmp.ne.s32.totalorder %s43, %s45
    %p52 = scmp.eq.s32.totalorder %s14, 1
    %p53 = por %p51, %p52
    %p54 = scmp.ne.s32.totalorder %s45, %s46
    %p55 = scmp.eq.s32.totalorder %s14, 0
    %p56 = por %p54, %p55
    %p57 = scmp.ne.s32.totalorder %s45, %s46
    %p58 = scmp.eq.s32.totalorder %s15, 1
    %p59 = por %p57, %p58
    %p61 = scmp.ne.s32.totalorder %s46, %s60
    %p62 = scmp.eq.s32.totalorder %s15, 0
    %p63 = por %p61, %p62
    %s65 = sadd.s32 %s64, 1
    %p68 = scmp.eq.s32.totalorder %s9, 1
    %p69 = scmp.ne.s32.totalorder %s64, %s66
    %p70 = scmp.eq.s32.totalorder %s9, 0
    %p71 = por %p69, %p70
    %p72 = scmp.ne.s32.totalorder %s64, %s66
    %p73 = scmp.eq.s32.totalorder %s14, 1
    %p74 = por %p72, %p73
    %p75 = scmp.ne.s32.totalorder %s66, %s67
    %p76 = scmp.eq.s32.totalorder %s14, 0
    %p77 = por %p75, %p76
    %p78 = scmp.ne.s32.totalorder %s66, %s67
    %p79 = scmp.eq.s32.totalorder %s15, 1
    %p80 = por %p78, %p79
    %p82 = scmp.ne.s32.totalorder %s67, %s81
    %p83 = scmp.eq.s32.totalorder %s15, 0
    %p84 = por %p82, %p83
    %s85 = ssub.s32 %s9, %s16
    %p86 = scmp.eq.s32.totalorder %s85, 0
    %s88 = sadd.s32 %s87, 1
    %s89 = scalar_select %p86, %s87, %s88
    %p92 = pneg %p86
    %p93 = scmp.eq.s32.totalorder %s9, 1
    %p94 = por %p92, %p93
    %p95 = scmp.ne.s32.totalorder %s87, %s90
    %p96 = scmp.eq.s32.totalorder %s9, 0
    %p97 = por %p95, %p96
    %p98 = scmp.ne.s32.totalorder %s87, %s90
    %p99 = scmp.eq.s32.totalorder %s14, 1
    %p100 = por %p98, %p99
    %p101 = scmp.ne.s32.totalorder %s90, %s91
    %p102 = scmp.eq.s32.totalorder %s14, 0
    %p103 = por %p101, %p102
    %p104 = scmp.ne.s32.totalorder %s90, %s91
    %p105 = scmp.eq.s32.totalorder %s15, 1
    %p106 = por %p104, %p105
    %p108 = scmp.ne.s32.totalorder %s91, %s107
    %p109 = scmp.eq.s32.totalorder %s15, 0
    %p110 = por %p108, %p109
    %p111 = scmp.le.s32.totalorder 1, %s9
    %p112 = scmp.lt.s32.totalorder %s9, 3
    %p113 = pnand %p111, %p112
    %p114 = pneg %p113
    // Predicated region
    $region9: #{_lambda_.5} parent=5 // pred_check
      _
    $region10: #{_lambda_.5} parent=5 // pred_check_branch
      %116 = sbr.rel (%p113) target = $region12
    $region11: #{_lambda_.5} parent=5 // pred_region
      %s117 = ssub.s32 %s9, 1
      // Predicated region
      $region13: #{_lambda_.5} parent=11 // pred_check
        %p118 = pneg %p56
      $region14: #{_lambda_.5} parent=11 // pred_check_branch
        %120 = sbr.rel (%p118) target = $region16
      $region15: #{_lambda_.5} parent=11 // pred_region
        _
      $region16: #{_lambda_.5} parent=11 // pred_fallthru
        _
      // Predicated region
      $region17: #{_lambda_.5} parent=11 // pred_check
        %p121 = pneg %p77
      $region18: #{_lambda_.5} parent=11 // pred_check_branch
        %123 = sbr.rel (%p121) target = $region20
      $region19: #{_lambda_.5} parent=11 // pred_region
        _
      $region20: #{_lambda_.5} parent=11 // pred_fallthru
        _
    $region12: #{_lambda_.5} parent=5 // pred_fallthru
      _
    %p124 = scmp.lt.s32.totalorder %s9, 2
    // Predicated region
    $region21: #{_lambda_.5} parent=5 // pred_check
      %p125 = pneg %p124
    $region22: #{_lambda_.5} parent=5 // pred_check_branch
      %127 = sbr.rel (%p125) target = $region24
    $region23: #{_lambda_.5} parent=5 // pred_region
      // Predicated region
      $region25: #{_lambda_.5} parent=23 // pred_check
        %p128 = pneg %p29
      $region26: #{_lambda_.5} parent=23 // pred_check_branch
        %130 = sbr.rel (%p128) target = $region28
      $region27: #{_lambda_.5} parent=23 // pred_region
        %s131 = smul.u32 8, %s9
        %p132 = scmp.lt.s32.totalorder %s131, 15
        %s133 = scalar_select %p132, %s131, 15
        %s134 = smul.addr %s133, 4
        %s135 = scalar_lea.vmem %s0, %s134
        %s136 = smul.u32 8, %s9
      $region28: #{_lambda_.5} parent=23 // pred_fallthru
        _
    $region24: #{_lambda_.5} parent=5 // pred_fallthru
      _
    %p137 = scmp.le.s32.totalorder 1, %s9
    %p138 = scmp.lt.s32.totalorder %s9, 3
    %p139 = pnand %p137, %p138
    %p140 = pneg %p139
    // Predicated region
    $region29: #{_lambda_.5} parent=5 // pred_check
      _
    $region30: #{_lambda_.5} parent=5 // pred_check_branch
      %142 = sbr.rel (%p139) target = $region32
    $region31: #{_lambda_.5} parent=5 // pred_region
      %s143 = ssub.s32 %s9, 1
      %s144 = smul.u32 8, %s14
      %p145 = scmp.lt.s32.totalorder %s144, 15
      %s146 = scalar_select %p145, %s144, 15
      %s147 = smul.addr %s146, 4
      %s148 = scalar_lea.vmem %s0, %s147
      %p149 = pneg %p35
      %p150 = pneg %p32
      %p151 = pneg %p56
      %p152 = pneg %p53
      %p153 = pneg %p77
      %p154 = pneg %p74
      %p155 = pneg %p103
      %p156 = pneg %p100
      %s157 = smul.u32 8, %s14
      %p158 = scmp.lt.s32.totalorder %s157, 15
      %s159 = scalar_select %p158, %s157, 15
      %s160 = smul.addr %s159, 4
      %s161 = scalar_lea.vmem %s3, %s160
      %s162 = smul.u32 8, %s14
      %p163 = scmp.lt.s32.totalorder %s162, 15
      %s164 = scalar_select %p163, %s162, 15
      %s165 = smul.addr %s164, 4
      %s166 = scalar_lea.vmem %s0, %s165
      %s167 = smul.u32 8, %s14
      %s168 = smul.u32 8, %s14
      %p169 = scmp.lt.s32.totalorder %s168, 15
      %s170 = scalar_select %p169, %s168, 15
      %s171 = smul.addr %s170, 4
      %s172 = scalar_lea.vmem %s3, %s171
      %s173 = smul.u32 8, %s14
      %v175 = vld [vmem:[%s166] sm:$0xf]
      %v176 = vld [vmem:[%s166 + $0x4] sm:$0xf]
      %v177 = vld [vmem:[%s166 + $0x8] sm:$0xf]
      %v178 = vld [vmem:[%s166 + $0xc] sm:$0xf]
      %v179 = vld [vmem:[%s166 + $0x10] sm:$0xf]
      %v180 = vld [vmem:[%s166 + $0x14] sm:$0xf]
      %v181 = vld [vmem:[%s166 + $0x18] sm:$0xf]
      %v182 = vld [vmem:[%s166 + $0x1c] sm:$0xf]
      %v183 = vld [vmem:[%s1] sm:$0xf]
      %v184 = vld [vmem:[%s1 + $0x4] sm:$0xf]
      %v185 = vld [vmem:[%s1 + $0x8] sm:$0xf]
      %v186 = vld [vmem:[%s1 + $0xc] sm:$0xf]
      %v187 = vld [vmem:[%s1 + $0x10] sm:$0xf]
      %v188 = vld [vmem:[%s1 + $0x14] sm:$0xf]
      %v189 = vld [vmem:[%s1 + $0x18] sm:$0xf]
      %v190 = vld [vmem:[%s1 + $0x1c] sm:$0xf]
      %v191 = vld [vmem:[%s1 + $0x20] sm:$0xf]
      %v192 = vld [vmem:[%s1 + $0x24] sm:$0xf]
      %v193 = vld [vmem:[%s1 + $0x28] sm:$0xf]
      %v194 = vld [vmem:[%s1 + $0x2c] sm:$0xf]
      %v195 = vld [vmem:[%s1 + $0x30] sm:$0xf]
      %v196 = vld [vmem:[%s1 + $0x34] sm:$0xf]
      %v197 = vld [vmem:[%s1 + $0x38] sm:$0xf]
      %v198 = vld [vmem:[%s1 + $0x3c] sm:$0xf]
      %v199 = vld [vmem:[%s2] sm:$0x1]
      %v201 = vlaneseq
      %v202 = vshrl.u32 %v201, 7
      %v203 = vsub.s32 0, %v202
      %v204 = vrot.slane %v199, %v203
      %v214 = vunpack.c.l.b16 %v175
      %v215 = vunpack.c.l.b16 %v176
      %v216 = vunpack.c.l.b16 %v177
      %v217 = vunpack.c.l.b16 %v178
      %v218 = vunpack.c.l.b16 %v179
      %v219 = vunpack.c.l.b16 %v180
      %v220 = vunpack.c.l.b16 %v181
      %v221 = vunpack.c.l.b16 %v182
      %v222 = vpack.c.b16 %v215, %v214
      %v223 = vpack.c.b16 %v217, %v216
      %v224 = vpack.c.b16 %v219, %v218
      %v225 = vpack.c.b16 %v221, %v220
      %v246 = vunpack.c.l.b16 %v183
      %v247 = vunpack.c.l.b16 %v184
      %v248 = vunpack.c.l.b16 %v185
      %v249 = vunpack.c.l.b16 %v186
      %v250 = vunpack.c.l.b16 %v187
      %v251 = vunpack.c.l.b16 %v188
      %v252 = vunpack.c.l.b16 %v189
      %v253 = vunpack.c.l.b16 %v190
      %v254 = vunpack.c.l.b16 %v191
      %v255 = vunpack.c.l.b16 %v192
      %v256 = vunpack.c.l.b16 %v193
      %v257 = vunpack.c.l.b16 %v194
      %v258 = vunpack.c.l.b16 %v195
      %v259 = vunpack.c.l.b16 %v196
      %v260 = vunpack.c.l.b16 %v197
      %v261 = vunpack.c.l.b16 %v198
      %v262 = vpack.c.b16 %v247, %v246
      %v263 = vpack.c.b16 %v249, %v248
      %v264 = vpack.c.b16 %v251, %v250
      %v265 = vpack.c.b16 %v253, %v252
      %v266 = vpack.c.b16 %v255, %v254
      %v267 = vpack.c.b16 %v257, %v256
      %v268 = vpack.c.b16 %v259, %v258
      %v269 = vpack.c.b16 %v261, %v260
      %278 = vmatprep.subr.bf16.mxu0 0
      %279 = vmatpush1.bf16.msra.mxu0 %v262
      %280 = vmatprep.subr.bf16.mxu0 0
      %281 = vmatpush1.bf16.msra.mxu0 %v263
      %282 = vmatprep.subr.bf16.mxu0 0
      %283 = vmatpush1.bf16.msra.mxu0 %v264
      %284 = vmatprep.subr.bf16.mxu0 0
      %285 = vmatpush1.bf16.msra.mxu0 %v265
      %286 = vmatprep.subr.bf16.mxu0 0
      %287 = vmatpush1.bf16.msra.mxu0 %v266
      %288 = vmatprep.subr.bf16.mxu0 0
      %289 = vmatpush1.bf16.msra.mxu0 %v267
      %290 = vmatprep.subr.bf16.mxu0 0
      %291 = vmatpush1.bf16.msra.mxu0 %v268
      %292 = vmatprep.subr.bf16.mxu0 0
      %293 = vmatpush1.bf16.msra.mxu0 %v269
      %294 = vmatprep.subr.bf16.mxu0 0
      %295 = vmatpush1.bf16.msra.mxu0 0
      %296 = vmatprep.subr.bf16.mxu0 0
      %297 = vmatpush1.bf16.msra.mxu0 0
      %298 = vmatprep.subr.bf16.mxu0 0
      %299 = vmatpush1.bf16.msra.mxu0 0
      %300 = vmatprep.subr.bf16.mxu0 0
      %301 = vmatpush1.bf16.msra.mxu0 0
      %302 = vmatprep.subr.bf16.mxu0 0
      %303 = vmatpush1.bf16.msra.mxu0 0
      %304 = vmatprep.subr.bf16.mxu0 0
      %305 = vmatpush1.bf16.msra.mxu0 0
      %306 = vmatprep.subr.bf16.mxu0 0
      %307 = vmatpush1.bf16.msra.mxu0 0
      %308 = vmatprep.subr.bf16.mxu0 0
      %309 = vmatpush1.bf16.msra.mxu0 0
      %310 = vmatprep.mubr.bf16.mxu0 0
      %311 = vmatmul.mubr.bf16.gmra.mrb[0].mxu0 %v222
      %v312 = vpop.f32.mrb[0].mxu0
      %v313 = vadd.f32 %v204, %v312
      %v314 = vpop.f32.mrb[0].mxu0
      %v315 = vpop.f32.mrb[0].mxu0
      %v316 = vadd.f32 %v204, %v315
      %v317 = vpop.f32.mrb[0].mxu0
      %318 = vmatprep.mubr.bf16.mxu0 0
      %319 = vmatmul.mubr.bf16.gmra.mrb[0].mxu0 %v223
      %v320 = vpop.f32.mrb[0].mxu0
      %v321 = vadd.f32 %v204, %v320
      %v322 = vpop.f32.mrb[0].mxu0
      %v323 = vpop.f32.mrb[0].mxu0
      %v324 = vadd.f32 %v204, %v323
      %v325 = vpop.f32.mrb[0].mxu0
      %326 = vmatprep.mubr.bf16.mxu0 0
      %327 = vmatmul.mubr.bf16.gmra.mrb[0].mxu0 %v224
      %v328 = vpop.f32.mrb[0].mxu0
      %v329 = vadd.f32 %v204, %v328
      %v330 = vpop.f32.mrb[0].mxu0
      %v331 = vpop.f32.mrb[0].mxu0
      %v332 = vadd.f32 %v204, %v331
      %v333 = vpop.f32.mrb[0].mxu0
      %334 = vmatprep.mubr.bf16.mxu0 0
      %335 = vmatmul.mubr.bf16.gmra.mrb[0].mxu0 %v225
      %v336 = vpop.f32.mrb[0].mxu0
      %v337 = vadd.f32 %v204, %v336
      %v338 = vpop.f32.mrb[0].mxu0
      %v339 = vpop.f32.mrb[0].mxu0
      %v340 = vadd.f32 %v204, %v339
      %v341 = vpop.f32.mrb[0].mxu0
      %342 = vdwg.mxu0
      %v343 = vmax.f32 %v313, 0.0
      %v344 = vmax.f32 %v316, 0.0
      %v345 = vmax.f32 %v321, 0.0
      %v346 = vmax.f32 %v324, 0.0
      %v347 = vmax.f32 %v329, 0.0
      %v348 = vmax.f32 %v332, 0.0
      %v349 = vmax.f32 %v337, 0.0
      %v350 = vmax.f32 %v340, 0.0
      %v351 = vpack.c.bf16 %v344, %v343
      %v352 = vpack.c.bf16 %v346, %v345
      %v353 = vpack.c.bf16 %v348, %v347
      %v354 = vpack.c.bf16 %v350, %v349
      %v359 = vunpack.c.l.b16 %v351
      %v360 = vunpack.c.h.b16 %v351
      %v361 = vunpack.c.l.b16 %v352
      %v362 = vunpack.c.h.b16 %v352
      %v363 = vunpack.c.l.b16 %v353
      %v364 = vunpack.c.h.b16 %v353
      %v365 = vunpack.c.l.b16 %v354
      %v366 = vunpack.c.h.b16 %v354
      %v367 = vpack.c.b16 %v359, %v359
      %v368 = vpack.c.b16 %v360, %v360
      %v369 = vpack.c.b16 %v361, %v361
      %v370 = vpack.c.b16 %v362, %v362
      %v371 = vpack.c.b16 %v363, %v363
      %v372 = vpack.c.b16 %v364, %v364
      %v373 = vpack.c.b16 %v365, %v365
      %v374 = vpack.c.b16 %v366, %v366
      %383 = vst [vmem:[%s172] sm:$0xf] %v367
      %384 = vst [vmem:[%s172 + $0x4] sm:$0xf] %v368
      %385 = vst [vmem:[%s172 + $0x8] sm:$0xf] %v369
      %386 = vst [vmem:[%s172 + $0xc] sm:$0xf] %v370
      %387 = vst [vmem:[%s172 + $0x10] sm:$0xf] %v371
      %388 = vst [vmem:[%s172 + $0x14] sm:$0xf] %v372
      %389 = vst [vmem:[%s172 + $0x18] sm:$0xf] %v373
      %390 = vst [vmem:[%s172 + $0x1c] sm:$0xf] %v374
      %s391 = smul.u32 8, %s14
      %p392 = scmp.lt.s32.totalorder %s391, 15
      %s393 = scalar_select %p392, %s391, 15
      %s394 = smul.addr %s393, 4
      %s395 = scalar_lea.vmem %s3, %s394
      // Predicated region
      $region33: #{_lambda_.5} parent=31 // pred_check
        %p396 = pneg %p100
      $region34: #{_lambda_.5} parent=31 // pred_check_branch
        %398 = sbr.rel (%p396) target = $region36
      $region35: #{_lambda_.5} parent=31 // pred_region
        %s399 = smul.u32 8, %s14
      $region36: #{_lambda_.5} parent=31 // pred_fallthru
        _
    $region32: #{_lambda_.5} parent=5 // pred_fallthru
      _
    %p400 = scmp.le.s32.totalorder 2, %s9
    // Predicated region
    $region37: #{_lambda_.5} parent=5 // pred_check
      %p401 = pneg %p400
    $region38: #{_lambda_.5} parent=5 // pred_check_branch
      %403 = sbr.rel (%p401) target = $region40
    $region39: #{_lambda_.5} parent=5 // pred_region
      %s404 = ssub.s32 %s9, 2
      // Predicated region
      $region41: #{_lambda_.5} parent=39 // pred_check
        %p405 = pneg %p106
      $region42: #{_lambda_.5} parent=39 // pred_check_branch
        %407 = sbr.rel (%p405) target = $region44
      $region43: #{_lambda_.5} parent=39 // pred_region
        %s408 = smul.u32 8, %s15
        %p409 = scmp.lt.s32.totalorder %s408, 15
        %s410 = scalar_select %p409, %s408, 15
        %s411 = smul.addr %s410, 4
        %s412 = scalar_lea.vmem %s3, %s411
      $region44: #{_lambda_.5} parent=39 // pred_fallthru
        _
    $region40: #{_lambda_.5} parent=5 // pred_fallthru
      _
  $region6: #{_lambda_.5} parent=0 // loop_footer
    %s13 = sadd.s32 1, %s9
  $region7: #{_lambda_.5} parent=0 // loop_footer_branch
    %8 = sbr.rel target = $region3
  $region8: #{_lambda_.5} parent=0 // loop_exit
    _

// kernel: _lambda_.7
$region0: #{_lambda_.7}
  #allocation0 [shape = 'u32[]', space=smem, size = 0x4, offset = 0x4, fixed_abs, tag = 'smem constant byte address 0x4 - core index']
  #allocation1 [shape = 'u32[144,128]{1,0:T(1,128)}', space=vmem, size = 0x12000, scoped, tag = 'internal scratch']
  %s0 = inlined_call_operand.vmem [shape: bf16[32,1152], index: 0, kind: input, shape index: {}]
  %s1 = inlined_call_operand.vmem [shape: bf16[1152,128], index: 1, kind: input, shape index: {}]
  %s2 = inlined_call_operand.vmem [shape: f32[1,128], index: 2, kind: input, shape index: {}]
  %s3 = inlined_call_operand.vmem [shape: f32[32,128], index: 3, kind: output, shape index: {}]
  %s4 = sld [smem:[#allocation0]]
  $region45: #{_lambda_.7} parent=0
    _
  %s6 = ssub.s32 1, %s4
  %s7 = scalar_select 0, %s6, %s4
  loop: start=0, step=1, limit=4
  $region2: #{_lambda_.7} parent=0 // loop_pre_header
    _
  $region3: #{_lambda_.7} parent=0 // loop_header
    %s9 = sphi 0, %s13
    %p10 = scmp.ge.s32.totalorder %s9, 4
    %s19 = sphi 0, %s21
    %s22 = sphi 0, %s19
    %s23 = sphi 0, %s22
    %s39 = sphi 0, %s23
    %s43 = sphi 0, %s43
    %s45 = sphi 0, %s43
    %s46 = sphi 0, %s45
    %s60 = sphi 0, %s46
    %s64 = sphi 0, %s64
    %s66 = sphi 0, %s64
    %s67 = sphi 0, %s66
    %s81 = sphi 0, %s67
    %s87 = sphi 0, %s89
    %s90 = sphi 0, %s87
    %s91 = sphi 0, %s90
    %s107 = sphi 0, %s91
  $region4: #{_lambda_.7} parent=0 // loop_header_branch
    %12 = sbr.rel (%p10) target = $region8
  $region5: #{_lambda_.7} parent=0 // loop_body
    %s14 = ssub.s32 %s9, 1
    %s15 = ssub.s32 %s9, 2
    %s16 = sadd.s32 %s9, 1
    %s17 = ssub.s32 %s9, %s16
    %p18 = scmp.eq.s32.totalorder %s17, 0
    %s20 = sadd.s32 %s19, 1
    %s21 = scalar_select %p18, %s19, %s20
    %p24 = pneg %p18
    %p25 = scmp.eq.s32.totalorder %s9, 1
    %p26 = por %p24, %p25
    %p27 = scmp.ne.s32.totalorder %s19, %s22
    %p28 = scmp.eq.s32.totalorder %s9, 0
    %p29 = por %p27, %p28
    %p30 = scmp.ne.s32.totalorder %s19, %s22
    %p31 = scmp.eq.s32.totalorder %s14, 1
    %p32 = por %p30, %p31
    %p33 = scmp.ne.s32.totalorder %s22, %s23
    %p34 = scmp.eq.s32.totalorder %s14, 0
    %p35 = por %p33, %p34
    %p36 = scmp.ne.s32.totalorder %s22, %s23
    %p37 = scmp.eq.s32.totalorder %s15, 1
    %p38 = por %p36, %p37
    %p40 = scmp.ne.s32.totalorder %s23, %s39
    %p41 = scmp.eq.s32.totalorder %s15, 0
    %p42 = por %p40, %p41
    %s44 = sadd.s32 %s43, 1
    %p47 = scmp.eq.s32.totalorder %s9, 1
    %p48 = scmp.ne.s32.totalorder %s43, %s45
    %p49 = scmp.eq.s32.totalorder %s9, 0
    %p50 = por %p48, %p49
    %p51 = scmp.ne.s32.totalorder %s43, %s45
    %p52 = scmp.eq.s32.totalorder %s14, 1
    %p53 = por %p51, %p52
    %p54 = scmp.ne.s32.totalorder %s45, %s46
    %p55 = scmp.eq.s32.totalorder %s14, 0
    %p56 = por %p54, %p55
    %p57 = scmp.ne.s32.totalorder %s45, %s46
    %p58 = scmp.eq.s32.totalorder %s15, 1
    %p59 = por %p57, %p58
    %p61 = scmp.ne.s32.totalorder %s46, %s60
    %p62 = scmp.eq.s32.totalorder %s15, 0
    %p63 = por %p61, %p62
    %s65 = sadd.s32 %s64, 1
    %p68 = scmp.eq.s32.totalorder %s9, 1
    %p69 = scmp.ne.s32.totalorder %s64, %s66
    %p70 = scmp.eq.s32.totalorder %s9, 0
    %p71 = por %p69, %p70
    %p72 = scmp.ne.s32.totalorder %s64, %s66
    %p73 = scmp.eq.s32.totalorder %s14, 1
    %p74 = por %p72, %p73
    %p75 = scmp.ne.s32.totalorder %s66, %s67
    %p76 = scmp.eq.s32.totalorder %s14, 0
    %p77 = por %p75, %p76
    %p78 = scmp.ne.s32.totalorder %s66, %s67
    %p79 = scmp.eq.s32.totalorder %s15, 1
    %p80 = por %p78, %p79
    %p82 = scmp.ne.s32.totalorder %s67, %s81
    %p83 = scmp.eq.s32.totalorder %s15, 0
    %p84 = por %p82, %p83
    %s85 = ssub.s32 %s9, %s16
    %p86 = scmp.eq.s32.totalorder %s85, 0
    %s88 = sadd.s32 %s87, 1
    %s89 = scalar_select %p86, %s87, %s88
    %p92 = pneg %p86
    %p93 = scmp.eq.s32.totalorder %s9, 1
    %p94 = por %p92, %p93
    %p95 = scmp.ne.s32.totalorder %s87, %s90
    %p96 = scmp.eq.s32.totalorder %s9, 0
    %p97 = por %p95, %p96
    %p98 = scmp.ne.s32.totalorder %s87, %s90
    %p99 = scmp.eq.s32.totalorder %s14, 1
    %p100 = por %p98, %p99
    %p101 = scmp.ne.s32.totalorder %s90, %s91
    %p102 = scmp.eq.s32.totalorder %s14, 0
    %p103 = por %p101, %p102
    %p104 = scmp.ne.s32.totalorder %s90, %s91
    %p105 = scmp.eq.s32.totalorder %s15, 1
    %p106 = por %p104, %p105
    %p108 = scmp.ne.s32.totalorder %s91, %s107
    %p109 = scmp.eq.s32.totalorder %s15, 0
    %p110 = por %p108, %p109
    %p111 = scmp.le.s32.totalorder 1, %s9
    %p112 = scmp.lt.s32.totalorder %s9, 3
    %p113 = pnand %p111, %p112
    %p114 = pneg %p113
    // Predicated region
    $region9: #{_lambda_.7} parent=5 // pred_check
      _
    $region10: #{_lambda_.7} parent=5 // pred_check_branch
      %116 = sbr.rel (%p113) target = $region12
    $region11: #{_lambda_.7} parent=5 // pred_region
      %s117 = ssub.s32 %s9, 1
      // Predicated region
      $region13: #{_lambda_.7} parent=11 // pred_check
        %p118 = pneg %p56
      $region14: #{_lambda_.7} parent=11 // pred_check_branch
        %120 = sbr.rel (%p118) target = $region16
      $region15: #{_lambda_.7} parent=11 // pred_region
        _
      $region16: #{_lambda_.7} parent=11 // pred_fallthru
        _
      // Predicated region
      $region17: #{_lambda_.7} parent=11 // pred_check
        %p121 = pneg %p77
      $region18: #{_lambda_.7} parent=11 // pred_check_branch
        %123 = sbr.rel (%p121) target = $region20
      $region19: #{_lambda_.7} parent=11 // pred_region
        _
      $region20: #{_lambda_.7} parent=11 // pred_fallthru
        _
    $region12: #{_lambda_.7} parent=5 // pred_fallthru
      _
    %p124 = scmp.lt.s32.totalorder %s9, 2
    // Predicated region
    $region21: #{_lambda_.7} parent=5 // pred_check
      %p125 = pneg %p124
    $region22: #{_lambda_.7} parent=5 // pred_check_branch
      %127 = sbr.rel (%p125) target = $region24
    $region23: #{_lambda_.7} parent=5 // pred_region
      // Predicated region
      $region25: #{_lambda_.7} parent=23 // pred_check
        %p128 = pneg %p29
      $region26: #{_lambda_.7} parent=23 // pred_check_branch
        %130 = sbr.rel (%p128) target = $region28
      $region27: #{_lambda_.7} parent=23 // pred_region
        %s131 = smul.u32 2, %s9
        %p132 = scmp.lt.s32.totalorder %s131, 3
        %s133 = scalar_select %p132, %s131, 3
        %s134 = smul.addr %s133, 9
        %s135 = smul.addr %s134, 4
        %s136 = scalar_lea.vmem %s0, %s135
        %s137 = smul.u32 2, %s9
      $region28: #{_lambda_.7} parent=23 // pred_fallthru
        _
    $region24: #{_lambda_.7} parent=5 // pred_fallthru
      _
    %p138 = scmp.le.s32.totalorder 1, %s9
    %p139 = scmp.lt.s32.totalorder %s9, 3
    %p140 = pnand %p138, %p139
    %p141 = pneg %p140
    // Predicated region
    $region29: #{_lambda_.7} parent=5 // pred_check
      _
    $region30: #{_lambda_.7} parent=5 // pred_check_branch
      %143 = sbr.rel (%p140) target = $region32
    $region31: #{_lambda_.7} parent=5 // pred_region
      %s144 = ssub.s32 %s9, 1
      %s145 = smul.u32 2, %s14
      %p146 = scmp.lt.s32.totalorder %s145, 3
      %s147 = scalar_select %p146, %s145, 3
      %s148 = smul.addr %s147, 9
      %s149 = smul.addr %s148, 4
      %s150 = scalar_lea.vmem %s0, %s149
      %p151 = pneg %p35
      %p152 = pneg %p32
      %p153 = pneg %p56
      %p154 = pneg %p53
      %p155 = pneg %p77
      %p156 = pneg %p74
      %p157 = pneg %p103
      %p158 = pneg %p100
      %s159 = smul.u32 2, %s14
      %p160 = scmp.lt.s32.totalorder %s159, 3
      %s161 = scalar_select %p160, %s159, 3
      %s162 = smul.addr %s161, 8
      %s163 = scalar_lea.vmem %s3, %s162
      %s164 = smul.u32 2, %s14
      %p165 = scmp.lt.s32.totalorder %s164, 3
      %s166 = scalar_select %p165, %s164, 3
      %s167 = smul.addr %s166, 9
      %s168 = smul.addr %s167, 4
      %s169 = scalar_lea.vmem %s0, %s168
      %s170 = smul.u32 2, %s14
      %s171 = smul.u32 2, %s14
      %p172 = scmp.lt.s32.totalorder %s171, 3
      %s173 = scalar_select %p172, %s171, 3
      %s174 = smul.addr %s173, 8
      %s175 = scalar_lea.vmem %s3, %s174
      %s176 = smul.u32 2, %s14
      %v178 = vld [vmem:[%s169] sm:$0xff]
      %v179 = vld [vmem:[%s169 + $0x8] sm:$0xff]
      %v180 = vld [vmem:[%s169 + $0x10] sm:$0xff]
      %v181 = vld [vmem:[%s169 + $0x18] sm:$0xff]
      %v182 = vld [vmem:[%s169 + $0x20] sm:$0xf]
      %v183 = vld [vmem:[%s169 + $0x24] sm:$0xff]
      %v184 = vld [vmem:[%s169 + $0x2c] sm:$0xff]
      %v185 = vld [vmem:[%s169 + $0x34] sm:$0xff]
      %v186 = vld [vmem:[%s169 + $0x3c] sm:$0xff]
      %v187 = vld [vmem:[%s169 + $0x44] sm:$0xf]
      %v188 = vld [vmem:[%s1] sm:$0xf]
      %v189 = vld [vmem:[%s1 + $0x4] sm:$0xf]
      %v190 = vld [vmem:[%s1 + $0x8] sm:$0xf]
      %v191 = vld [vmem:[%s1 + $0xc] sm:$0xf]
      %v192 = vld [vmem:[%s1 + $0x10] sm:$0xf]
      %v193 = vld [vmem:[%s1 + $0x14] sm:$0xf]
      %v194 = vld [vmem:[%s1 + $0x18] sm:$0xf]
      %v195 = vld [vmem:[%s1 + $0x1c] sm:$0xf]
      %v196 = vld [vmem:[%s1 + $0x20] sm:$0xf]
      %v197 = vld [vmem:[%s1 + $0x24] sm:$0xf]
      %v198 = vld [vmem:[%s1 + $0x28] sm:$0xf]
      %v199 = vld [vmem:[%s1 + $0x2c] sm:$0xf]
      %v200 = vld [vmem:[%s1 + $0x30] sm:$0xf]
      %v201 = vld [vmem:[%s1 + $0x34] sm:$0xf]
      %v202 = vld [vmem:[%s1 + $0x38] sm:$0xf]
      %v203 = vld [vmem:[%s1 + $0x3c] sm:$0xf]
      %v204 = vld [vmem:[%s1 + $0x40] sm:$0xf]
      %v205 = vld [vmem:[%s1 + $0x44] sm:$0xf]
      %v206 = vld [vmem:[%s1 + $0x48] sm:$0xf]
      %v207 = vld [vmem:[%s1 + $0x4c] sm:$0xf]
      %v208 = vld [vmem:[%s1 + $0x50] sm:$0xf]
      %v209 = vld [vmem:[%s1 + $0x54] sm:$0xf]
      %v210 = vld [vmem:[%s1 + $0x58] sm:$0xf]
      %v211 = vld [vmem:[%s1 + $0x5c] sm:$0xf]
      %v212 = vld [vmem:[%s1 + $0x60] sm:$0xf]
      %v213 = vld [vmem:[%s1 + $0x64] sm:$0xf]
      %v214 = vld [vmem:[%s1 + $0x68] sm:$0xf]
      %v215 = vld [vmem:[%s1 + $0x6c] sm:$0xf]
      %v216 = vld [vmem:[%s1 + $0x70] sm:$0xf]
      %v217 = vld [vmem:[%s1 + $0x74] sm:$0xf]
      %v218 = vld [vmem:[%s1 + $0x78] sm:$0xf]
      %v219 = vld [vmem:[%s1 + $0x7c] sm:$0xf]
      %v220 = vld [vmem:[%s1 + $0x80] sm:$0xf]
      %v221 = vld [vmem:[%s1 + $0x84] sm:$0xf]
      %v222 = vld [vmem:[%s1 + $0x88] sm:$0xf]
      %v223 = vld [vmem:[%s1 + $0x8c] sm:$0xf]
      %v224 = vld [vmem:[%s1 + $0x90] sm:$0xf]
      %v225 = vld [vmem:[%s1 + $0x94] sm:$0xf]
      %v226 = vld [vmem:[%s1 + $0x98] sm:$0xf]
      %v227 = vld [vmem:[%s1 + $0x9c] sm:$0xf]
      %v228 = vld [vmem:[%s1 + $0xa0] sm:$0xf]
      %v229 = vld [vmem:[%s1 + $0xa4] sm:$0xf]
      %v230 = vld [vmem:[%s1 + $0xa8] sm:$0xf]
      %v231 = vld [vmem:[%s1 + $0xac] sm:$0xf]
      %v232 = vld [vmem:[%s1 + $0xb0] sm:$0xf]
      %v233 = vld [vmem:[%s1 + $0xb4] sm:$0xf]
      %v234 = vld [vmem:[%s1 + $0xb8] sm:$0xf]
      %v235 = vld [vmem:[%s1 + $0xbc] sm:$0xf]
      %v236 = vld [vmem:[%s1 + $0xc0] sm:$0xf]
      %v237 = vld [vmem:[%s1 + $0xc4] sm:$0xf]
      %v238 = vld [vmem:[%s1 + $0xc8] sm:$0xf]
      %v239 = vld [vmem:[%s1 + $0xcc] sm:$0xf]
      %v240 = vld [vmem:[%s1 + $0xd0] sm:$0xf]
      %v241 = vld [vmem:[%s1 + $0xd4] sm:$0xf]
      %v242 = vld [vmem:[%s1 + $0xd8] sm:$0xf]
      %v243 = vld [vmem:[%s1 + $0xdc] sm:$0xf]
      %v244 = vld [vmem:[%s1 + $0xe0] sm:$0xf]
      %v245 = vld [vmem:[%s1 + $0xe4] sm:$0xf]
      %v246 = vld [vmem:[%s1 + $0xe8] sm:$0xf]
      %v247 = vld [vmem:[%s1 + $0xec] sm:$0xf]
      %v248 = vld [vmem:[%s1 + $0xf0] sm:$0xf]
      %v249 = vld [vmem:[%s1 + $0xf4] sm:$0xf]
      %v250 = vld [vmem:[%s1 + $0xf8] sm:$0xf]
      %v251 = vld [vmem:[%s1 + $0xfc] sm:$0xf]
      %v252 = vld [vmem:[%s1 + $0x100] sm:$0xf]
      %v253 = vld [vmem:[%s1 + $0x104] sm:$0xf]
      %v254 = vld [vmem:[%s1 + $0x108] sm:$0xf]
      %v255 = vld [vmem:[%s1 + $0x10c] sm:$0xf]
      %v256 = vld [vmem:[%s1 + $0x110] sm:$0xf]
      %v257 = vld [vmem:[%s1 + $0x114] sm:$0xf]
      %v258 = vld [vmem:[%s1 + $0x118] sm:$0xf]
      %v259 = vld [vmem:[%s1 + $0x11c] sm:$0xf]
      %v260 = vld [vmem:[%s1 + $0x120] sm:$0xf]
      %v261 = vld [vmem:[%s1 + $0x124] sm:$0xf]
      %v262 = vld [vmem:[%s1 + $0x128] sm:$0xf]
      %v263 = vld [vmem:[%s1 + $0x12c] sm:$0xf]
      %v264 = vld [vmem:[%s1 + $0x130] sm:$0xf]
      %v265 = vld [vmem:[%s1 + $0x134] sm:$0xf]
      %v266 = vld [vmem:[%s1 + $0x138] sm:$0xf]
      %v267 = vld [vmem:[%s1 + $0x13c] sm:$0xf]
      %v268 = vld [vmem:[%s1 + $0x140] sm:$0xf]
      %v269 = vld [vmem:[%s1 + $0x144] sm:$0xf]
      %v270 = vld [vmem:[%s1 + $0x148] sm:$0xf]
      %v271 = vld [vmem:[%s1 + $0x14c] sm:$0xf]
      %v272 = vld [vmem:[%s1 + $0x150] sm:$0xf]
      %v273 = vld [vmem:[%s1 + $0x154] sm:$0xf]
      %v274 = vld [vmem:[%s1 + $0x158] sm:$0xf]
      %v275 = vld [vmem:[%s1 + $0x15c] sm:$0xf]
      %v276 = vld [vmem:[%s1 + $0x160] sm:$0xf]
      %v277 = vld [vmem:[%s1 + $0x164] sm:$0xf]
      %v278 = vld [vmem:[%s1 + $0x168] sm:$0xf]
      %v279 = vld [vmem:[%s1 + $0x16c] sm:$0xf]
      %v280 = vld [vmem:[%s1 + $0x170] sm:$0xf]
      %v281 = vld [vmem:[%s1 + $0x174] sm:$0xf]
      %v282 = vld [vmem:[%s1 + $0x178] sm:$0xf]
      %v283 = vld [vmem:[%s1 + $0x17c] sm:$0xf]
      %v284 = vld [vmem:[%s1 + $0x180] sm:$0xf]
      %v285 = vld [vmem:[%s1 + $0x184] sm:$0xf]
      %v286 = vld [vmem:[%s1 + $0x188] sm:$0xf]
      %v287 = vld [vmem:[%s1 + $0x18c] sm:$0xf]
      %v288 = vld [vmem:[%s1 + $0x190] sm:$0xf]
      %v289 = vld [vmem:[%s1 + $0x194] sm:$0xf]
      %v290 = vld [vmem:[%s1 + $0x198] sm:$0xf]
      %v291 = vld [vmem:[%s1 + $0x19c] sm:$0xf]
      %v292 = vld [vmem:[%s1 + $0x1a0] sm:$0xf]
      %v293 = vld [vmem:[%s1 + $0x1a4] sm:$0xf]
      %v294 = vld [vmem:[%s1 + $0x1a8] sm:$0xf]
      %v295 = vld [vmem:[%s1 + $0x1ac] sm:$0xf]
      %v296 = vld [vmem:[%s1 + $0x1b0] sm:$0xf]
      %v297 = vld [vmem:[%s1 + $0x1b4] sm:$0xf]
      %v298 = vld [vmem:[%s1 + $0x1b8] sm:$0xf]
      %v299 = vld [vmem:[%s1 + $0x1bc] sm:$0xf]
      %v300 = vld [vmem:[%s1 + $0x1c0] sm:$0xf]
      %v301 = vld [vmem:[%s1 + $0x1c4] sm:$0xf]
      %v302 = vld [vmem:[%s1 + $0x1c8] sm:$0xf]
      %v303 = vld [vmem:[%s1 + $0x1cc] sm:$0xf]
      %v304 = vld [vmem:[%s1 + $0x1d0] sm:$0xf]
      %v305 = vld [vmem:[%s1 + $0x1d4] sm:$0xf]
      %v306 = vld [vmem:[%s1 + $0x1d8] sm:$0xf]
      %v307 = vld [vmem:[%s1 + $0x1dc] sm:$0xf]
      %v308 = vld [vmem:[%s1 + $0x1e0] sm:$0xf]
      %v309 = vld [vmem:[%s1 + $0x1e4] sm:$0xf]
      %v310 = vld [vmem:[%s1 + $0x1e8] sm:$0xf]
      %v311 = vld [vmem:[%s1 + $0x1ec] sm:$0xf]
      %v312 = vld [vmem:[%s1 + $0x1f0] sm:$0xf]
      %v313 = vld [vmem:[%s1 + $0x1f4] sm:$0xf]
      %v314 = vld [vmem:[%s1 + $0x1f8] sm:$0xf]
      %v315 = vld [vmem:[%s1 + $0x1fc] sm:$0xf]
      %v316 = vld [vmem:[%s1 + $0x200] sm:$0xf]
      %v317 = vld [vmem:[%s1 + $0x204] sm:$0xf]
      %v318 = vld [vmem:[%s1 + $0x208] sm:$0xf]
      %v319 = vld [vmem:[%s1 + $0x20c] sm:$0xf]
      %v320 = vld [vmem:[%s1 + $0x210] sm:$0xf]
      %v321 = vld [vmem:[%s1 + $0x214] sm:$0xf]
      %v322 = vld [vmem:[%s1 + $0x218] sm:$0xf]
      %v323 = vld [vmem:[%s1 + $0x21c] sm:$0xf]
      %v324 = vld [vmem:[%s1 + $0x220] sm:$0xf]
      %v325 = vld [vmem:[%s1 + $0x224] sm:$0xf]
      %v326 = vld [vmem:[%s1 + $0x228] sm:$0xf]
      %v327 = vld [vmem:[%s1 + $0x22c] sm:$0xf]
      %v328 = vld [vmem:[%s1 + $0x230] sm:$0xf]
      %v329 = vld [vmem:[%s1 + $0x234] sm:$0xf]
      %v330 = vld [vmem:[%s1 + $0x238] sm:$0xf]
      %v331 = vld [vmem:[%s1 + $0x23c] sm:$0xf]
      %v332 = vld [vmem:[%s2] sm:$0x1]
      %v334 = vlaneseq
      %v335 = vshrl.u32 %v334, 7
      %v336 = vsub.s32 0, %v335
      %v337 = vrot.slane %v332, %v336
      %v349 = vunpack.c.l.b16 %v178
      %v350 = vunpack.c.h.b16 %v178
      %v351 = vunpack.c.l.b16 %v179
      %v352 = vunpack.c.h.b16 %v179
      %v353 = vunpack.c.l.b16 %v180
      %v354 = vunpack.c.h.b16 %v180
      %v355 = vunpack.c.l.b16 %v181
      %v356 = vunpack.c.h.b16 %v181
      %v357 = vunpack.c.l.b16 %v182
      %v358 = vunpack.c.l.b16 %v183
      %v359 = vunpack.c.h.b16 %v183
      %v360 = vunpack.c.l.b16 %v184
      %v361 = vunpack.c.h.b16 %v184
      %v362 = vunpack.c.l.b16 %v185
      %v363 = vunpack.c.h.b16 %v185
      %v364 = vunpack.c.l.b16 %v186
      %v365 = vunpack.c.h.b16 %v186
      %v366 = vunpack.c.l.b16 %v187
      %v367 = vpack.c.b16 %v358, %v349
      %v368 = vpack.c.b16 %v359, %v350
      %v369 = vpack.c.b16 %v360, %v351
      %v370 = vpack.c.b16 %v361, %v352
      %v371 = vpack.c.b16 %v362, %v353
      %v372 = vpack.c.b16 %v363, %v354
      %v373 = vpack.c.b16 %v364, %v355
      %v374 = vpack.c.b16 %v365, %v356
      %v375 = vpack.c.b16 %v366, %v357
      %v529 = vunpack.c.l.b16 %v188
      %v530 = vunpack.c.l.b16 %v189
      %v531 = vunpack.c.l.b16 %v190
      %v532 = vunpack.c.l.b16 %v191
      %v533 = vunpack.c.l.b16 %v192
      %v534 = vunpack.c.l.b16 %v193
      %v535 = vunpack.c.l.b16 %v194
      %v536 = vunpack.c.l.b16 %v195
      %v537 = vunpack.c.l.b16 %v196
      %v538 = vunpack.c.l.b16 %v197
      %v539 = vunpack.c.l.b16 %v198
      %v540 = vunpack.c.l.b16 %v199
      %v541 = vunpack.c.l.b16 %v200
      %v542 = vunpack.c.l.b16 %v201
      %v543 = vunpack.c.l.b16 %v202
      %v544 = vunpack.c.l.b16 %v203
      %v545 = vunpack.c.l.b16 %v204
      %v546 = vunpack.c.l.b16 %v205
      %v547 = vunpack.c.l.b16 %v206
      %v548 = vunpack.c.l.b16 %v207
      %v549 = vunpack.c.l.b16 %v208
      %v550 = vunpack.c.l.b16 %v209
      %v551 = vunpack.c.l.b16 %v210
      %v552 = vunpack.c.l.b16 %v211
      %v553 = vunpack.c.l.b16 %v212
      %v554 = vunpack.c.l.b16 %v213
      %v555 = vunpack.c.l.b16 %v214
      %v556 = vunpack.c.l.b16 %v215
      %v557 = vunpack.c.l.b16 %v216
      %v558 = vunpack.c.l.b16 %v217
      %v559 = vunpack.c.l.b16 %v218
      %v560 = vunpack.c.l.b16 %v219
      %v561 = vunpack.c.l.b16 %v220
      %v562 = vunpack.c.l.b16 %v221
      %v563 = vunpack.c.l.b16 %v222
      %v564 = vunpack.c.l.b16 %v223
      %v565 = vunpack.c.l.b16 %v224
      %v566 = vunpack.c.l.b16 %v225
      %v567 = vunpack.c.l.b16 %v226
      %v568 = vunpack.c.l.b16 %v227
      %v569 = vunpack.c.l.b16 %v228
      %v570 = vunpack.c.l.b16 %v229
      %v571 = vunpack.c.l.b16 %v230
      %v572 = vunpack.c.l.b16 %v231
      %v573 = vunpack.c.l.b16 %v232
      %v574 = vunpack.c.l.b16 %v233
      %v575 = vunpack.c.l.b16 %v234
      %v576 = vunpack.c.l.b16 %v235
      %v577 = vunpack.c.l.b16 %v236
      %v578 = vunpack.c.l.b16 %v237
      %v579 = vunpack.c.l.b16 %v238
      %v580 = vunpack.c.l.b16 %v239
      %v581 = vunpack.c.l.b16 %v240
      %v582 = vunpack.c.l.b16 %v241
      %v583 = vunpack.c.l.b16 %v242
      %v584 = vunpack.c.l.b16 %v243
      %v585 = vunpack.c.l.b16 %v244
      %v586 = vunpack.c.l.b16 %v245
      %v587 = vunpack.c.l.b16 %v246
      %v588 = vunpack.c.l.b16 %v247
      %v589 = vunpack.c.l.b16 %v248
      %v590 = vunpack.c.l.b16 %v249
      %v591 = vunpack.c.l.b16 %v250
      %v592 = vunpack.c.l.b16 %v251
      %v593 = vunpack.c.l.b16 %v252
      %v594 = vunpack.c.l.b16 %v253
      %v595 = vunpack.c.l.b16 %v254
      %v596 = vunpack.c.l.b16 %v255
      %v597 = vunpack.c.l.b16 %v256
      %v598 = vunpack.c.l.b16 %v257
      %v599 = vunpack.c.l.b16 %v258
      %v600 = vunpack.c.l.b16 %v259
      %v601 = vunpack.c.l.b16 %v260
      %v602 = vunpack.c.l.b16 %v261
      %v603 = vunpack.c.l.b16 %v262
      %v604 = vunpack.c.l.b16 %v263
      %v605 = vunpack.c.l.b16 %v264
      %v606 = vunpack.c.l.b16 %v265
      %v607 = vunpack.c.l.b16 %v266
      %v608 = vunpack.c.l.b16 %v267
      %v609 = vunpack.c.l.b16 %v268
      %v610 = vunpack.c.l.b16 %v269
      %v611 = vunpack.c.l.b16 %v270
      %v612 = vunpack.c.l.b16 %v271
      %v613 = vunpack.c.l.b16 %v272
      %v614 = vunpack.c.l.b16 %v273
      %v615 = vunpack.c.l.b16 %v274
      %v616 = vunpack.c.l.b16 %v275
      %v617 = vunpack.c.l.b16 %v276
      %v618 = vunpack.c.l.b16 %v277
      %v619 = vunpack.c.l.b16 %v278
      %v620 = vunpack.c.l.b16 %v279
      %v621 = vunpack.c.l.b16 %v280
      %v622 = vunpack.c.l.b16 %v281
      %v623 = vunpack.c.l.b16 %v282
      %v624 = vunpack.c.l.b16 %v283
      %v625 = vunpack.c.l.b16 %v284
      %v626 = vunpack.c.l.b16 %v285
      %v627 = vunpack.c.l.b16 %v286
      %v628 = vunpack.c.l.b16 %v287
      %v629 = vunpack.c.l.b16 %v288
      %v630 = vunpack.c.l.b16 %v289
      %v631 = vunpack.c.l.b16 %v290
      %v632 = vunpack.c.l.b16 %v291
      %v633 = vunpack.c.l.b16 %v292
      %v634 = vunpack.c.l.b16 %v293
      %v635 = vunpack.c.l.b16 %v294
      %v636 = vunpack.c.l.b16 %v295
      %v637 = vunpack.c.l.b16 %v296
      %v638 = vunpack.c.l.b16 %v297
      %v639 = vunpack.c.l.b16 %v298
      %v640 = vunpack.c.l.b16 %v299
      %v641 = vunpack.c.l.b16 %v300
      %v642 = vunpack.c.l.b16 %v301
      %v643 = vunpack.c.l.b16 %v302
      %v644 = vunpack.c.l.b16 %v303
      %v645 = vunpack.c.l.b16 %v304
      %v646 = vunpack.c.l.b16 %v305
      %v647 = vunpack.c.l.b16 %v306
      %v648 = vunpack.c.l.b16 %v307
      %v649 = vunpack.c.l.b16 %v308
      %v650 = vunpack.c.l.b16 %v309
      %v651 = vunpack.c.l.b16 %v310
      %v652 = vunpack.c.l.b16 %v311
      %v653 = vunpack.c.l.b16 %v312
      %v654 = vunpack.c.l.b16 %v313
      %v655 = vunpack.c.l.b16 %v314
      %v656 = vunpack.c.l.b16 %v315
      %v657 = vunpack.c.l.b16 %v316
      %v658 = vunpack.c.l.b16 %v317
      %v659 = vunpack.c.l.b16 %v318
      %v660 = vunpack.c.l.b16 %v319
      %v661 = vunpack.c.l.b16 %v320
      %v662 = vunpack.c.l.b16 %v321
      %v663 = vunpack.c.l.b16 %v322
      %v664 = vunpack.c.l.b16 %v323
      %v665 = vunpack.c.l.b16 %v324
      %v666 = vunpack.c.l.b16 %v325
      %v667 = vunpack.c.l.b16 %v326
      %v668 = vunpack.c.l.b16 %v327
      %v669 = vunpack.c.l.b16 %v328
      %v670 = vunpack.c.l.b16 %v329
      %v671 = vunpack.c.l.b16 %v330
      %v672 = vunpack.c.l.b16 %v331
      %v673 = vpack.c.b16 %v530, %v529
      %v674 = vpack.c.b16 %v532, %v531
      %v675 = vpack.c.b16 %v534, %v533
      %v676 = vpack.c.b16 %v536, %v535
      %v677 = vpack.c.b16 %v538, %v537
      %v678 = vpack.c.b16 %v540, %v539
      %v679 = vpack.c.b16 %v542, %v541
      %v680 = vpack.c.b16 %v544, %v543
      %v681 = vpack.c.b16 %v546, %v545
      %v682 = vpack.c.b16 %v548, %v547
      %v683 = vpack.c.b16 %v550, %v549
      %v684 = vpack.c.b16 %v552, %v551
      %v685 = vpack.c.b16 %v554, %v553
      %v686 = vpack.c.b16 %v556, %v555
      %v687 = vpack.c.b16 %v558, %v557
      %v688 = vpack.c.b16 %v560, %v559
      %v689 = vpack.c.b16 %v562, %v561
      %v690 = vpack.c.b16 %v564, %v563
      %v691 = vpack.c.b16 %v566, %v565
      %v692 = vpack.c.b16 %v568, %v567
      %v693 = vpack.c.b16 %v570, %v569
      %v694 = vpack.c.b16 %v572, %v571
      %v695 = vpack.c.b16 %v574, %v573
      %v696 = vpack.c.b16 %v576, %v575
      %v697 = vpack.c.b16 %v578, %v577
      %v698 = vpack.c.b16 %v580, %v579
      %v699 = vpack.c.b16 %v582, %v581
      %v700 = vpack.c.b16 %v584, %v583
      %v701 = vpack.c.b16 %v586, %v585
      %v702 = vpack.c.b16 %v588, %v587
      %v703 = vpack.c.b16 %v590, %v589
      %v704 = vpack.c.b16 %v592, %v591
      %v705 = vpack.c.b16 %v594, %v593
      %v706 = vpack.c.b16 %v596, %v595
      %v707 = vpack.c.b16 %v598, %v597
      %v708 = vpack.c.b16 %v600, %v599
      %v709 = vpack.c.b16 %v602, %v601
      %v710 = vpack.c.b16 %v604, %v603
      %v711 = vpack.c.b16 %v606, %v605
      %v712 = vpack.c.b16 %v608, %v607
      %v713 = vpack.c.b16 %v610, %v609
      %v714 = vpack.c.b16 %v612, %v611
      %v715 = vpack.c.b16 %v614, %v613
      %v716 = vpack.c.b16 %v616, %v615
      %v717 = vpack.c.b16 %v618, %v617
      %v718 = vpack.c.b16 %v620, %v619
      %v719 = vpack.c.b16 %v622, %v621
      %v720 = vpack.c.b16 %v624, %v623
      %v721 = vpack.c.b16 %v626, %v625
      %v722 = vpack.c.b16 %v628, %v627
      %v723 = vpack.c.b16 %v630, %v629
      %v724 = vpack.c.b16 %v632, %v631
      %v725 = vpack.c.b16 %v634, %v633
      %v726 = vpack.c.b16 %v636, %v635
      %v727 = vpack.c.b16 %v638, %v637
      %v728 = vpack.c.b16 %v640, %v639
      %v729 = vpack.c.b16 %v642, %v641
      %v730 = vpack.c.b16 %v644, %v643
      %v731 = vpack.c.b16 %v646, %v645
      %v732 = vpack.c.b16 %v648, %v647
      %v733 = vpack.c.b16 %v650, %v649
      %v734 = vpack.c.b16 %v652, %v651
      %v735 = vpack.c.b16 %v654, %v653
      %v736 = vpack.c.b16 %v656, %v655
      %v737 = vpack.c.b16 %v658, %v657
      %v738 = vpack.c.b16 %v660, %v659
      %v739 = vpack.c.b16 %v662, %v661
      %v740 = vpack.c.b16 %v664, %v663
      %v741 = vpack.c.b16 %v666, %v665
      %v742 = vpack.c.b16 %v668, %v667
      %v743 = vpack.c.b16 %v670, %v669
      %v744 = vpack.c.b16 %v672, %v671
      %817 = vmatprep.subr.bf16.mxu0 0
      %818 = vmatpush1.bf16.msra.mxu0 %v673
      %819 = vmatprep.subr.bf16.mxu0 0
      %820 = vmatpush1.bf16.msra.mxu0 %v674
      %821 = vmatprep.subr.bf16.mxu0 0
      %822 = vmatpush1.bf16.msra.mxu0 %v675
      %823 = vmatprep.subr.bf16.mxu0 0
      %824 = vmatpush1.bf16.msra.mxu0 %v676
      %825 = vmatprep.subr.bf16.mxu0 0
      %826 = vmatpush1.bf16.msra.mxu0 %v677
      %827 = vmatprep.subr.bf16.mxu0 0
      %828 = vmatpush1.bf16.msra.mxu0 %v678
      %829 = vmatprep.subr.bf16.mxu0 0
      %830 = vmatpush1.bf16.msra.mxu0 %v679
      %831 = vmatprep.subr.bf16.mxu0 0
      %832 = vmatpush1.bf16.msra.mxu0 %v680
      %833 = vmatprep.subr.bf16.mxu0 0
      %834 = vmatpush1.bf16.msra.mxu0 %v681
      %835 = vmatprep.subr.bf16.mxu0 0
      %836 = vmatpush1.bf16.msra.mxu0 %v682
      %837 = vmatprep.subr.bf16.mxu0 0
      %838 = vmatpush1.bf16.msra.mxu0 %v683
      %839 = vmatprep.subr.bf16.mxu0 0
      %840 = vmatpush1.bf16.msra.mxu0 %v684
      %841 = vmatprep.subr.bf16.mxu0 0
      %842 = vmatpush1.bf16.msra.mxu0 %v685
      %843 = vmatprep.subr.bf16.mxu0 0
      %844 = vmatpush1.bf16.msra.mxu0 %v686
      %845 = vmatprep.subr.bf16.mxu0 0
      %846 = vmatpush1.bf16.msra.mxu0 %v687
      %847 = vmatprep.subr.bf16.mxu0 0
      %848 = vmatpush1.bf16.msra.mxu0 %v688
      %849 = vmatprep.mubr.bf16.mxu0 %v368
      %850 = vmatmul.mubr.bf16.gmra.mrb[0].mxu0 %v367
      %v851 = vpop.f32.mrb[0].mxu0
      %v852 = vadd.f32 %v337, %v851
      %v853 = vpop.f32.mrb[0].mxu0
      %v854 = vpop.f32.mrb[0].mxu0
      %v855 = vadd.f32 %v337, %v854
      %v856 = vpop.f32.mrb[0].mxu0
      %857 = vdwg.mxu0
      %858 = vmatprep.subr.bf16.mxu0 0
      %859 = vmatpush1.bf16.msra.mxu0 %v689
      %860 = vmatprep.subr.bf16.mxu0 0
      %861 = vmatpush1.bf16.msra.mxu0 %v690
      %862 = vmatprep.subr.bf16.mxu0 0
      %863 = vmatpush1.bf16.msra.mxu0 %v691
      %864 = vmatprep.subr.bf16.mxu0 0
      %865 = vmatpush1.bf16.msra.mxu0 %v692
      %866 = vmatprep.subr.bf16.mxu0 0
      %867 = vmatpush1.bf16.msra.mxu0 %v693
      %868 = vmatprep.subr.bf16.mxu0 0
      %869 = vmatpush1.bf16.msra.mxu0 %v694
      %870 = vmatprep.subr.bf16.mxu0 0
      %871 = vmatpush1.bf16.msra.mxu0 %v695
      %872 = vmatprep.subr.bf16.mxu0 0
      %873 = vmatpush1.bf16.msra.mxu0 %v696
      %874 = vmatprep.subr.bf16.mxu0 0
      %875 = vmatpush1.bf16.msra.mxu0 %v697
      %876 = vmatprep.subr.bf16.mxu0 0
      %877 = vmatpush1.bf16.msra.mxu0 %v698
      %878 = vmatprep.subr.bf16.mxu0 0
      %879 = vmatpush1.bf16.msra.mxu0 %v699
      %880 = vmatprep.subr.bf16.mxu0 0
      %881 = vmatpush1.bf16.msra.mxu0 %v700
      %882 = vmatprep.subr.bf16.mxu0 0
      %883 = vmatpush1.bf16.msra.mxu0 %v701
      %884 = vmatprep.subr.bf16.mxu0 0
      %885 = vmatpush1.bf16.msra.mxu0 %v702
      %886 = vmatprep.subr.bf16.mxu0 0
      %887 = vmatpush1.bf16.msra.mxu0 %v703
      %888 = vmatprep.subr.bf16.mxu0 0
      %889 = vmatpush1.bf16.msra.mxu0 %v704
      %890 = vmatprep.mubr.bf16.mxu0 %v370
      %891 = vmatmul.mubr.bf16.gmra.mrb[0].mxu0 %v369
      %v892 = vpop.f32.mrb[0].mxu0
      %v893 = vadd.f32 %v852, %v892
      %v894 = vpop.f32.mrb[0].mxu0
      %v895 = vpop.f32.mrb[0].mxu0
      %v896 = vadd.f32 %v855, %v895
      %v897 = vpop.f32.mrb[0].mxu0
      %898 = vdwg.mxu0
      %899 = vmatprep.subr.bf16.mxu0 0
      %900 = vmatpush1.bf16.msra.mxu0 %v705
      %901 = vmatprep.subr.bf16.mxu0 0
      %902 = vmatpush1.bf16.msra.mxu0 %v706
      %903 = vmatprep.subr.bf16.mxu0 0
      %904 = vmatpush1.bf16.msra.mxu0 %v707
      %905 = vmatprep.subr.bf16.mxu0 0
      %906 = vmatpush1.bf16.msra.mxu0 %v708
      %907 = vmatprep.subr.bf16.mxu0 0
      %908 = vmatpush1.bf16.msra.mxu0 %v709
      %909 = vmatprep.subr.bf16.mxu0 0
      %910 = vmatpush1.bf16.msra.mxu0 %v710
      %911 = vmatprep.subr.bf16.mxu0 0
      %912 = vmatpush1.bf16.msra.mxu0 %v711
      %913 = vmatprep.subr.bf16.mxu0 0
      %914 = vmatpush1.bf16.msra.mxu0 %v712
      %915 = vmatprep.subr.bf16.mxu0 0
      %916 = vmatpush1.bf16.msra.mxu0 %v713
      %917 = vmatprep.subr.bf16.mxu0 0
      %918 = vmatpush1.bf16.msra.mxu0 %v714
      %919 = vmatprep.subr.bf16.mxu0 0
      %920 = vmatpush1.bf16.msra.mxu0 %v715
      %921 = vmatprep.subr.bf16.mxu0 0
      %922 = vmatpush1.bf16.msra.mxu0 %v716
      %923 = vmatprep.subr.bf16.mxu0 0
      %924 = vmatpush1.bf16.msra.mxu0 %v717
      %925 = vmatprep.subr.bf16.mxu0 0
      %926 = vmatpush1.bf16.msra.mxu0 %v718
      %927 = vmatprep.subr.bf16.mxu0 0
      %928 = vmatpush1.bf16.msra.mxu0 %v719
      %929 = vmatprep.subr.bf16.mxu0 0
      %930 = vmatpush1.bf16.msra.mxu0 %v720
      %931 = vmatprep.mubr.bf16.mxu0 %v372
      %932 = vmatmul.mubr.bf16.gmra.mrb[0].mxu0 %v371
      %v933 = vpop.f32.mrb[0].mxu0
      %v934 = vadd.f32 %v893, %v933
      %v935 = vpop.f32.mrb[0].mxu0
      %v936 = vpop.f32.mrb[0].mxu0
      %v937 = vadd.f32 %v896, %v936
      %v938 = vpop.f32.mrb[0].mxu0
      %939 = vdwg.mxu0
      %940 = vmatprep.subr.bf16.mxu0 0
      %941 = vmatpush1.bf16.msra.mxu0 %v721
      %942 = vmatprep.subr.bf16.mxu0 0
      %943 = vmatpush1.bf16.msra.mxu0 %v722
      %944 = vmatprep.subr.bf16.mxu0 0
      %945 = vmatpush1.bf16.msra.mxu0 %v723
      %946 = vmatprep.subr.bf16.mxu0 0
      %947 = vmatpush1.bf16.msra.mxu0 %v724
      %948 = vmatprep.subr.bf16.mxu0 0
      %949 = vmatpush1.bf16.msra.mxu0 %v725
      %950 = vmatprep.subr.bf16.mxu0 0
      %951 = vmatpush1.bf16.msra.mxu0 %v726
      %952 = vmatprep.subr.bf16.mxu0 0
      %953 = vmatpush1.bf16.msra.mxu0 %v727
      %954 = vmatprep.subr.bf16.mxu0 0
      %955 = vmatpush1.bf16.msra.mxu0 %v728
      %956 = vmatprep.subr.bf16.mxu0 0
      %957 = vmatpush1.bf16.msra.mxu0 %v729
      %958 = vmatprep.subr.bf16.mxu0 0
      %959 = vmatpush1.bf16.msra.mxu0 %v730
      %960 = vmatprep.subr.bf16.mxu0 0
      %961 = vmatpush1.bf16.msra.mxu0 %v731
      %962 = vmatprep.subr.bf16.mxu0 0
      %963 = vmatpush1.bf16.msra.mxu0 %v732
      %964 = vmatprep.subr.bf16.mxu0 0
      %965 = vmatpush1.bf16.msra.mxu0 %v733
      %966 = vmatprep.subr.bf16.mxu0 0
      %967 = vmatpush1.bf16.msra.mxu0 %v734
      %968 = vmatprep.subr.bf16.mxu0 0
      %969 = vmatpush1.bf16.msra.mxu0 %v735
      %970 = vmatprep.subr.bf16.mxu0 0
      %971 = vmatpush1.bf16.msra.mxu0 %v736
      %972 = vmatprep.mubr.bf16.mxu0 %v374
      %973 = vmatmul.mubr.bf16.gmra.mrb[0].mxu0 %v373
      %v974 = vpop.f32.mrb[0].mxu0
      %v975 = vadd.f32 %v934, %v974
      %v976 = vpop.f32.mrb[0].mxu0
      %v977 = vpop.f32.mrb[0].mxu0
      %v978 = vadd.f32 %v937, %v977
      %v979 = vpop.f32.mrb[0].mxu0
      %980 = vdwg.mxu0
      %981 = vmatprep.subr.bf16.mxu0 0
      %982 = vmatpush1.bf16.msra.mxu0 %v737
      %983 = vmatprep.subr.bf16.mxu0 0
      %984 = vmatpush1.bf16.msra.mxu0 %v738
      %985 = vmatprep.subr.bf16.mxu0 0
      %986 = vmatpush1.bf16.msra.mxu0 %v739
      %987 = vmatprep.subr.bf16.mxu0 0
      %988 = vmatpush1.bf16.msra.mxu0 %v740
      %989 = vmatprep.subr.bf16.mxu0 0
      %990 = vmatpush1.bf16.msra.mxu0 %v741
      %991 = vmatprep.subr.bf16.mxu0 0
      %992 = vmatpush1.bf16.msra.mxu0 %v742
      %993 = vmatprep.subr.bf16.mxu0 0
      %994 = vmatpush1.bf16.msra.mxu0 %v743
      %995 = vmatprep.subr.bf16.mxu0 0
      %996 = vmatpush1.bf16.msra.mxu0 %v744
      %997 = vmatprep.subr.bf16.mxu0 0
      %998 = vmatpush1.bf16.msra.mxu0 0
      %999 = vmatprep.subr.bf16.mxu0 0
      %1000 = vmatpush1.bf16.msra.mxu0 0
      %1001 = vmatprep.subr.bf16.mxu0 0
      %1002 = vmatpush1.bf16.msra.mxu0 0
      %1003 = vmatprep.subr.bf16.mxu0 0
      %1004 = vmatpush1.bf16.msra.mxu0 0
      %1005 = vmatprep.subr.bf16.mxu0 0
      %1006 = vmatpush1.bf16.msra.mxu0 0
      %1007 = vmatprep.subr.bf16.mxu0 0
      %1008 = vmatpush1.bf16.msra.mxu0 0
      %1009 = vmatprep.subr.bf16.mxu0 0
      %1010 = vmatpush1.bf16.msra.mxu0 0
      %1011 = vmatprep.subr.bf16.mxu0 0
      %1012 = vmatpush1.bf16.msra.mxu0 0
      %1013 = vmatprep.mubr.bf16.mxu0 0
      %1014 = vmatmul.mubr.bf16.gmra.mrb[0].mxu0 %v375
      %v1015 = vpop.f32.mrb[0].mxu0
      %v1016 = vadd.f32 %v975, %v1015
      %v1017 = vpop.f32.mrb[0].mxu0
      %v1018 = vpop.f32.mrb[0].mxu0
      %v1019 = vadd.f32 %v978, %v1018
      %v1020 = vpop.f32.mrb[0].mxu0
      %1021 = vdwg.mxu0
      %1022 = vst [vmem:[%s175] sm:$0xff] %v1016
      %1023 = vst [vmem:[%s175 + $0x8] sm:$0xff] %v1019
      %s1024 = smul.u32 2, %s14
      %p1025 = scmp.lt.s32.totalorder %s1024, 3
      %s1026 = scalar_select %p1025, %s1024, 3
      %s1027 = smul.addr %s1026, 8
      %s1028 = scalar_lea.vmem %s3, %s1027
      // Predicated region
      $region33: #{_lambda_.7} parent=31 // pred_check
        %p1029 = pneg %p100
      $region34: #{_lambda_.7} parent=31 // pred_check_branch
        %1031 = sbr.rel (%p1029) target = $region36
      $region35: #{_lambda_.7} parent=31 // pred_region
        %s1032 = smul.u32 2, %s14
      $region36: #{_lambda_.7} parent=31 // pred_fallthru
        _
    $region32: #{_lambda_.7} parent=5 // pred_fallthru
      _
    %p1033 = scmp.le.s32.totalorder 2, %s9
    // Predicated region
    $region37: #{_lambda_.7} parent=5 // pred_check
      %p1034 = pneg %p1033
    $region38: #{_lambda_.7} parent=5 // pred_check_branch
      %1036 = sbr.rel (%p1034) target = $region40
    $region39: #{_lambda_.7} parent=5 // pred_region
      %s1037 = ssub.s32 %s9, 2
      // Predicated region
      $region41: #{_lambda_.7} parent=39 // pred_check
        %p1038 = pneg %p106
      $region42: #{_lambda_.7} parent=39 // pred_check_branch
        %1040 = sbr.rel (%p1038) target = $region44
      $region43: #{_lambda_.7} parent=39 // pred_region
        %s1041 = smul.u32 2, %s15
        %p1042 = scmp.lt.s32.totalorder %s1041, 3
        %s1043 = scalar_select %p1042, %s1041, 3
        %s1044 = smul.addr %s1043, 8
        %s1045 = scalar_lea.vmem %s3, %s1044
      $region44: #{_lambda_.7} parent=39 // pred_fallthru
        _
    $region40: #{_lambda_.7} parent=5 // pred_fallthru
      _
  $region6: #{_lambda_.7} parent=0 // loop_footer
    %s13 = sadd.s32 1, %s9
  $region7: #{_lambda_.7} parent=0 // loop_footer_branch
    %8 = sbr.rel target = $region3
  $region8: #{_lambda_.7} parent=0 // loop_exit
    _

// kernel: _lambda_.6
$region0: #{_lambda_.6}
  #allocation0 [shape = 'u32[]', space=smem, size = 0x4, offset = 0x4, fixed_abs, tag = 'smem constant byte address 0x4 - core index']
  #allocation1 [shape = 'u32[144,128]{1,0:T(1,128)}', space=vmem, size = 0x12000, scoped, tag = 'internal scratch']
  %s0 = inlined_call_operand.vmem [shape: bf16[32,2048], index: 0, kind: input, shape index: {}]
  %s1 = inlined_call_operand.vmem [shape: bf16[2048,128], index: 1, kind: input, shape index: {}]
  %s2 = inlined_call_operand.vmem [shape: f32[1,128], index: 2, kind: input, shape index: {}]
  %s3 = inlined_call_operand.vmem [shape: bf16[32,128], index: 3, kind: output, shape index: {}]
  %s4 = sld [smem:[#allocation0]]
  $region45: #{_lambda_.6} parent=0
    _
  %s6 = ssub.s32 1, %s4
  %s7 = scalar_select 0, %s6, %s4
  loop: start=0, step=1, limit=4
  $region2: #{_lambda_.6} parent=0 // loop_pre_header
    _
  $region3: #{_lambda_.6} parent=0 // loop_header
    %s9 = sphi 0, %s13
    %p10 = scmp.ge.s32.totalorder %s9, 4
    %s19 = sphi 0, %s21
    %s22 = sphi 0, %s19
    %s23 = sphi 0, %s22
    %s39 = sphi 0, %s23
    %s43 = sphi 0, %s43
    %s45 = sphi 0, %s43
    %s46 = sphi 0, %s45
    %s60 = sphi 0, %s46
    %s64 = sphi 0, %s64
    %s66 = sphi 0, %s64
    %s67 = sphi 0, %s66
    %s81 = sphi 0, %s67
    %s87 = sphi 0, %s89
    %s90 = sphi 0, %s87
    %s91 = sphi 0, %s90
    %s107 = sphi 0, %s91
  $region4: #{_lambda_.6} parent=0 // loop_header_branch
    %12 = sbr.rel (%p10) target = $region8
  $region5: #{_lambda_.6} parent=0 // loop_body
    %s14 = ssub.s32 %s9, 1
    %s15 = ssub.s32 %s9, 2
    %s16 = sadd.s32 %s9, 1
    %s17 = ssub.s32 %s9, %s16
    %p18 = scmp.eq.s32.totalorder %s17, 0
    %s20 = sadd.s32 %s19, 1
    %s21 = scalar_select %p18, %s19, %s20
    %p24 = pneg %p18
    %p25 = scmp.eq.s32.totalorder %s9, 1
    %p26 = por %p24, %p25
    %p27 = scmp.ne.s32.totalorder %s19, %s22
    %p28 = scmp.eq.s32.totalorder %s9, 0
    %p29 = por %p27, %p28
    %p30 = scmp.ne.s32.totalorder %s19, %s22
    %p31 = scmp.eq.s32.totalorder %s14, 1
    %p32 = por %p30, %p31
    %p33 = scmp.ne.s32.totalorder %s22, %s23
    %p34 = scmp.eq.s32.totalorder %s14, 0
    %p35 = por %p33, %p34
    %p36 = scmp.ne.s32.totalorder %s22, %s23
    %p37 = scmp.eq.s32.totalorder %s15, 1
    %p38 = por %p36, %p37
    %p40 = scmp.ne.s32.totalorder %s23, %s39
    %p41 = scmp.eq.s32.totalorder %s15, 0
    %p42 = por %p40, %p41
    %s44 = sadd.s32 %s43, 1
    %p47 = scmp.eq.s32.totalorder %s9, 1
    %p48 = scmp.ne.s32.totalorder %s43, %s45
    %p49 = scmp.eq.s32.totalorder %s9, 0
    %p50 = por %p48, %p49
    %p51 = scmp.ne.s32.totalorder %s43, %s45
    %p52 = scmp.eq.s32.totalorder %s14, 1
    %p53 = por %p51, %p52
    %p54 = scmp.ne.s32.totalorder %s45, %s46
    %p55 = scmp.eq.s32.totalorder %s14, 0
    %p56 = por %p54, %p55
    %p57 = scmp.ne.s32.totalorder %s45, %s46
    %p58 = scmp.eq.s32.totalorder %s15, 1
    %p59 = por %p57, %p58
    %p61 = scmp.ne.s32.totalorder %s46, %s60
    %p62 = scmp.eq.s32.totalorder %s15, 0
    %p63 = por %p61, %p62
    %s65 = sadd.s32 %s64, 1
    %p68 = scmp.eq.s32.totalorder %s9, 1
    %p69 = scmp.ne.s32.totalorder %s64, %s66
    %p70 = scmp.eq.s32.totalorder %s9, 0
    %p71 = por %p69, %p70
    %p72 = scmp.ne.s32.totalorder %s64, %s66
    %p73 = scmp.eq.s32.totalorder %s14, 1
    %p74 = por %p72, %p73
    %p75 = scmp.ne.s32.totalorder %s66, %s67
    %p76 = scmp.eq.s32.totalorder %s14, 0
    %p77 = por %p75, %p76
    %p78 = scmp.ne.s32.totalorder %s66, %s67
    %p79 = scmp.eq.s32.totalorder %s15, 1
    %p80 = por %p78, %p79
    %p82 = scmp.ne.s32.totalorder %s67, %s81
    %p83 = scmp.eq.s32.totalorder %s15, 0
    %p84 = por %p82, %p83
    %s85 = ssub.s32 %s9, %s16
    %p86 = scmp.eq.s32.totalorder %s85, 0
    %s88 = sadd.s32 %s87, 1
    %s89 = scalar_select %p86, %s87, %s88
    %p92 = pneg %p86
    %p93 = scmp.eq.s32.totalorder %s9, 1
    %p94 = por %p92, %p93
    %p95 = scmp.ne.s32.totalorder %s87, %s90
    %p96 = scmp.eq.s32.totalorder %s9, 0
    %p97 = por %p95, %p96
    %p98 = scmp.ne.s32.totalorder %s87, %s90
    %p99 = scmp.eq.s32.totalorder %s14, 1
    %p100 = por %p98, %p99
    %p101 = scmp.ne.s32.totalorder %s90, %s91
    %p102 = scmp.eq.s32.totalorder %s14, 0
    %p103 = por %p101, %p102
    %p104 = scmp.ne.s32.totalorder %s90, %s91
    %p105 = scmp.eq.s32.totalorder %s15, 1
    %p106 = por %p104, %p105
    %p108 = scmp.ne.s32.totalorder %s91, %s107
    %p109 = scmp.eq.s32.totalorder %s15, 0
    %p110 = por %p108, %p109
    %p111 = scmp.le.s32.totalorder 1, %s9
    %p112 = scmp.lt.s32.totalorder %s9, 3
    %p113 = pnand %p111, %p112
    %p114 = pneg %p113
    // Predicated region
    $region9: #{_lambda_.6} parent=5 // pred_check
      _
    $region10: #{_lambda_.6} parent=5 // pred_check_branch
      %116 = sbr.rel (%p113) target = $region12
    $region11: #{_lambda_.6} parent=5 // pred_region
      %s117 = ssub.s32 %s9, 1
      // Predicated region
      $region13: #{_lambda_.6} parent=11 // pred_check
        %p118 = pneg %p56
      $region14: #{_lambda_.6} parent=11 // pred_check_branch
        %120 = sbr.rel (%p118) target = $region16
      $region15: #{_lambda_.6} parent=11 // pred_region
        _
      $region16: #{_lambda_.6} parent=11 // pred_fallthru
        _
      // Predicated region
      $region17: #{_lambda_.6} parent=11 // pred_check
        %p121 = pneg %p77
      $region18: #{_lambda_.6} parent=11 // pred_check_branch
        %123 = sbr.rel (%p121) target = $region20
      $region19: #{_lambda_.6} parent=11 // pred_region
        _
      $region20: #{_lambda_.6} parent=11 // pred_fallthru
        _
    $region12: #{_lambda_.6} parent=5 // pred_fallthru
      _
    %p124 = scmp.lt.s32.totalorder %s9, 2
    // Predicated region
    $region21: #{_lambda_.6} parent=5 // pred_check
      %p125 = pneg %p124
    $region22: #{_lambda_.6} parent=5 // pred_check_branch
      %127 = sbr.rel (%p125) target = $region24
    $region23: #{_lambda_.6} parent=5 // pred_region
      // Predicated region
      $region25: #{_lambda_.6} parent=23 // pred_check
        %p128 = pneg %p29
      $region26: #{_lambda_.6} parent=23 // pred_check_branch
        %130 = sbr.rel (%p128) target = $region28
      $region27: #{_lambda_.6} parent=23 // pred_region
        %s131 = smul.u32 2, %s9
        %p132 = scmp.lt.s32.totalorder %s131, 3
        %s133 = scalar_select %p132, %s131, 3
        %s134 = smul.addr %s133, 16
        %s135 = smul.addr %s134, 4
        %s136 = scalar_lea.vmem %s0, %s135
        %s137 = smul.u32 2, %s9
      $region28: #{_lambda_.6} parent=23 // pred_fallthru
        _
    $region24: #{_lambda_.6} parent=5 // pred_fallthru
      _
    %p138 = scmp.le.s32.totalorder 1, %s9
    %p139 = scmp.lt.s32.totalorder %s9, 3
    %p140 = pnand %p138, %p139
    %p141 = pneg %p140
    // Predicated region
    $region29: #{_lambda_.6} parent=5 // pred_check
      _
    $region30: #{_lambda_.6} parent=5 // pred_check_branch
      %143 = sbr.rel (%p140) target = $region32
    $region31: #{_lambda_.6} parent=5 // pred_region
      %s144 = ssub.s32 %s9, 1
      %s145 = smul.u32 2, %s14
      %p146 = scmp.lt.s32.totalorder %s145, 3
      %s147 = scalar_select %p146, %s145, 3
      %s148 = smul.addr %s147, 16
      %s149 = smul.addr %s148, 4
      %s150 = scalar_lea.vmem %s0, %s149
      %p151 = pneg %p35
      %p152 = pneg %p32
      %p153 = pneg %p56
      %p154 = pneg %p53
      %p155 = pneg %p77
      %p156 = pneg %p74
      %p157 = pneg %p103
      %p158 = pneg %p100
      %s159 = smul.u32 2, %s14
      %p160 = scmp.lt.s32.totalorder %s159, 3
      %s161 = scalar_select %p160, %s159, 3
      %s162 = smul.addr %s161, 4
      %s163 = scalar_lea.vmem %s3, %s162
      %s164 = smul.u32 2, %s14
      %p165 = scmp.lt.s32.totalorder %s164, 3
      %s166 = scalar_select %p165, %s164, 3
      %s167 = smul.addr %s166, 16
      %s168 = smul.addr %s167, 4
      %s169 = scalar_lea.vmem %s0, %s168
      %s170 = smul.u32 2, %s14
      %s171 = smul.u32 2, %s14
      %p172 = scmp.lt.s32.totalorder %s171, 3
      %s173 = scalar_select %p172, %s171, 3
      %s174 = smul.addr %s173, 4
      %s175 = scalar_lea.vmem %s3, %s174
      %s176 = smul.u32 2, %s14
      %v178 = vld [vmem:[%s169] sm:$0xff]
      %v179 = vld [vmem:[%s169 + $0x8] sm:$0xff]
      %v180 = vld [vmem:[%s169 + $0x10] sm:$0xff]
      %v181 = vld [vmem:[%s169 + $0x18] sm:$0xff]
      %v182 = vld [vmem:[%s169 + $0x20] sm:$0xff]
      %v183 = vld [vmem:[%s169 + $0x28] sm:$0xff]
      %v184 = vld [vmem:[%s169 + $0x30] sm:$0xff]
      %v185 = vld [vmem:[%s169 + $0x38] sm:$0xff]
      %v186 = vld [vmem:[%s169 + $0x40] sm:$0xff]
      %v187 = vld [vmem:[%s169 + $0x48] sm:$0xff]
      %v188 = vld [vmem:[%s169 + $0x50] sm:$0xff]
      %v189 = vld [vmem:[%s169 + $0x58] sm:$0xff]
      %v190 = vld [vmem:[%s169 + $0x60] sm:$0xff]
      %v191 = vld [vmem:[%s169 + $0x68] sm:$0xff]
      %v192 = vld [vmem:[%s169 + $0x70] sm:$0xff]
      %v193 = vld [vmem:[%s169 + $0x78] sm:$0xff]
      %v194 = vld [vmem:[%s1] sm:$0xf]
      %v195 = vld [vmem:[%s1 + $0x4] sm:$0xf]
      %v196 = vld [vmem:[%s1 + $0x8] sm:$0xf]
      %v197 = vld [vmem:[%s1 + $0xc] sm:$0xf]
      %v198 = vld [vmem:[%s1 + $0x10] sm:$0xf]
      %v199 = vld [vmem:[%s1 + $0x14] sm:$0xf]
      %v200 = vld [vmem:[%s1 + $0x18] sm:$0xf]
      %v201 = vld [vmem:[%s1 + $0x1c] sm:$0xf]
      %v202 = vld [vmem:[%s1 + $0x20] sm:$0xf]
      %v203 = vld [vmem:[%s1 + $0x24] sm:$0xf]
      %v204 = vld [vmem:[%s1 + $0x28] sm:$0xf]
      %v205 = vld [vmem:[%s1 + $0x2c] sm:$0xf]
      %v206 = vld [vmem:[%s1 + $0x30] sm:$0xf]
      %v207 = vld [vmem:[%s1 + $0x34] sm:$0xf]
      %v208 = vld [vmem:[%s1 + $0x38] sm:$0xf]
      %v209 = vld [vmem:[%s1 + $0x3c] sm:$0xf]
      %v210 = vld [vmem:[%s1 + $0x40] sm:$0xf]
      %v211 = vld [vmem:[%s1 + $0x44] sm:$0xf]
      %v212 = vld [vmem:[%s1 + $0x48] sm:$0xf]
      %v213 = vld [vmem:[%s1 + $0x4c] sm:$0xf]
      %v214 = vld [vmem:[%s1 + $0x50] sm:$0xf]
      %v215 = vld [vmem:[%s1 + $0x54] sm:$0xf]
      %v216 = vld [vmem:[%s1 + $0x58] sm:$0xf]
      %v217 = vld [vmem:[%s1 + $0x5c] sm:$0xf]
      %v218 = vld [vmem:[%s1 + $0x60] sm:$0xf]
      %v219 = vld [vmem:[%s1 + $0x64] sm:$0xf]
      %v220 = vld [vmem:[%s1 + $0x68] sm:$0xf]
      %v221 = vld [vmem:[%s1 + $0x6c] sm:$0xf]
      %v222 = vld [vmem:[%s1 + $0x70] sm:$0xf]
      %v223 = vld [vmem:[%s1 + $0x74] sm:$0xf]
      %v224 = vld [vmem:[%s1 + $0x78] sm:$0xf]
      %v225 = vld [vmem:[%s1 + $0x7c] sm:$0xf]
      %v226 = vld [vmem:[%s1 + $0x80] sm:$0xf]
      %v227 = vld [vmem:[%s1 + $0x84] sm:$0xf]
      %v228 = vld [vmem:[%s1 + $0x88] sm:$0xf]
      %v229 = vld [vmem:[%s1 + $0x8c] sm:$0xf]
      %v230 = vld [vmem:[%s1 + $0x90] sm:$0xf]
      %v231 = vld [vmem:[%s1 + $0x94] sm:$0xf]
      %v232 = vld [vmem:[%s1 + $0x98] sm:$0xf]
      %v233 = vld [vmem:[%s1 + $0x9c] sm:$0xf]
      %v234 = vld [vmem:[%s1 + $0xa0] sm:$0xf]
      %v235 = vld [vmem:[%s1 + $0xa4] sm:$0xf]
      %v236 = vld [vmem:[%s1 + $0xa8] sm:$0xf]
      %v237 = vld [vmem:[%s1 + $0xac] sm:$0xf]
      %v238 = vld [vmem:[%s1 + $0xb0] sm:$0xf]
      %v239 = vld [vmem:[%s1 + $0xb4] sm:$0xf]
      %v240 = vld [vmem:[%s1 + $0xb8] sm:$0xf]
      %v241 = vld [vmem:[%s1 + $0xbc] sm:$0xf]
      %v242 = vld [vmem:[%s1 + $0xc0] sm:$0xf]
      %v243 = vld [vmem:[%s1 + $0xc4] sm:$0xf]
      %v244 = vld [vmem:[%s1 + $0xc8] sm:$0xf]
      %v245 = vld [vmem:[%s1 + $0xcc] sm:$0xf]
      %v246 = vld [vmem:[%s1 + $0xd0] sm:$0xf]
      %v247 = vld [vmem:[%s1 + $0xd4] sm:$0xf]
      %v248 = vld [vmem:[%s1 + $0xd8] sm:$0xf]
      %v249 = vld [vmem:[%s1 + $0xdc] sm:$0xf]
      %v250 = vld [vmem:[%s1 + $0xe0] sm:$0xf]
      %v251 = vld [vmem:[%s1 + $0xe4] sm:$0xf]
      %v252 = vld [vmem:[%s1 + $0xe8] sm:$0xf]
      %v253 = vld [vmem:[%s1 + $0xec] sm:$0xf]
      %v254 = vld [vmem:[%s1 + $0xf0] sm:$0xf]
      %v255 = vld [vmem:[%s1 + $0xf4] sm:$0xf]
      %v256 = vld [vmem:[%s1 + $0xf8] sm:$0xf]
      %v257 = vld [vmem:[%s1 + $0xfc] sm:$0xf]
      %v258 = vld [vmem:[%s1 + $0x100] sm:$0xf]
      %v259 = vld [vmem:[%s1 + $0x104] sm:$0xf]
      %v260 = vld [vmem:[%s1 + $0x108] sm:$0xf]
      %v261 = vld [vmem:[%s1 + $0x10c] sm:$0xf]
      %v262 = vld [vmem:[%s1 + $0x110] sm:$0xf]
      %v263 = vld [vmem:[%s1 + $0x114] sm:$0xf]
      %v264 = vld [vmem:[%s1 + $0x118] sm:$0xf]
      %v265 = vld [vmem:[%s1 + $0x11c] sm:$0xf]
      %v266 = vld [vmem:[%s1 + $0x120] sm:$0xf]
      %v267 = vld [vmem:[%s1 + $0x124] sm:$0xf]
      %v268 = vld [vmem:[%s1 + $0x128] sm:$0xf]
      %v269 = vld [vmem:[%s1 + $0x12c] sm:$0xf]
      %v270 = vld [vmem:[%s1 + $0x130] sm:$0xf]
      %v271 = vld [vmem:[%s1 + $0x134] sm:$0xf]
      %v272 = vld [vmem:[%s1 + $0x138] sm:$0xf]
      %v273 = vld [vmem:[%s1 + $0x13c] sm:$0xf]
      %v274 = vld [vmem:[%s1 + $0x140] sm:$0xf]
      %v275 = vld [vmem:[%s1 + $0x144] sm:$0xf]
      %v276 = vld [vmem:[%s1 + $0x148] sm:$0xf]
      %v277 = vld [vmem:[%s1 + $0x14c] sm:$0xf]
      %v278 = vld [vmem:[%s1 + $0x150] sm:$0xf]
      %v279 = vld [vmem:[%s1 + $0x154] sm:$0xf]
      %v280 = vld [vmem:[%s1 + $0x158] sm:$0xf]
      %v281 = vld [vmem:[%s1 + $0x15c] sm:$0xf]
      %v282 = vld [vmem:[%s1 + $0x160] sm:$0xf]
      %v283 = vld [vmem:[%s1 + $0x164] sm:$0xf]
      %v284 = vld [vmem:[%s1 + $0x168] sm:$0xf]
      %v285 = vld [vmem:[%s1 + $0x16c] sm:$0xf]
      %v286 = vld [vmem:[%s1 + $0x170] sm:$0xf]
      %v287 = vld [vmem:[%s1 + $0x174] sm:$0xf]
      %v288 = vld [vmem:[%s1 + $0x178] sm:$0xf]
      %v289 = vld [vmem:[%s1 + $0x17c] sm:$0xf]
      %v290 = vld [vmem:[%s1 + $0x180] sm:$0xf]
      %v291 = vld [vmem:[%s1 + $0x184] sm:$0xf]
      %v292 = vld [vmem:[%s1 + $0x188] sm:$0xf]
      %v293 = vld [vmem:[%s1 + $0x18c] sm:$0xf]
      %v294 = vld [vmem:[%s1 + $0x190] sm:$0xf]
      %v295 = vld [vmem:[%s1 + $0x194] sm:$0xf]
      %v296 = vld [vmem:[%s1 + $0x198] sm:$0xf]
      %v297 = vld [vmem:[%s1 + $0x19c] sm:$0xf]
      %v298 = vld [vmem:[%s1 + $0x1a0] sm:$0xf]
      %v299 = vld [vmem:[%s1 + $0x1a4] sm:$0xf]
      %v300 = vld [vmem:[%s1 + $0x1a8] sm:$0xf]
      %v301 = vld [vmem:[%s1 + $0x1ac] sm:$0xf]
      %v302 = vld [vmem:[%s1 + $0x1b0] sm:$0xf]
      %v303 = vld [vmem:[%s1 + $0x1b4] sm:$0xf]
      %v304 = vld [vmem:[%s1 + $0x1b8] sm:$0xf]
      %v305 = vld [vmem:[%s1 + $0x1bc] sm:$0xf]
      %v306 = vld [vmem:[%s1 + $0x1c0] sm:$0xf]
      %v307 = vld [vmem:[%s1 + $0x1c4] sm:$0xf]
      %v308 = vld [vmem:[%s1 + $0x1c8] sm:$0xf]
      %v309 = vld [vmem:[%s1 + $0x1cc] sm:$0xf]
      %v310 = vld [vmem:[%s1 + $0x1d0] sm:$0xf]
      %v311 = vld [vmem:[%s1 + $0x1d4] sm:$0xf]
      %v312 = vld [vmem:[%s1 + $0x1d8] sm:$0xf]
      %v313 = vld [vmem:[%s1 + $0x1dc] sm:$0xf]
      %v314 = vld [vmem:[%s1 + $0x1e0] sm:$0xf]
      %v315 = vld [vmem:[%s1 + $0x1e4] sm:$0xf]
      %v316 = vld [vmem:[%s1 + $0x1e8] sm:$0xf]
      %v317 = vld [vmem:[%s1 + $0x1ec] sm:$0xf]
      %v318 = vld [vmem:[%s1 + $0x1f0] sm:$0xf]
      %v319 = vld [vmem:[%s1 + $0x1f4] sm:$0xf]
      %v320 = vld [vmem:[%s1 + $0x1f8] sm:$0xf]
      %v321 = vld [vmem:[%s1 + $0x1fc] sm:$0xf]
      %v322 = vld [vmem:[%s1 + $0x200] sm:$0xf]
      %v323 = vld [vmem:[%s1 + $0x204] sm:$0xf]
      %v324 = vld [vmem:[%s1 + $0x208] sm:$0xf]
      %v325 = vld [vmem:[%s1 + $0x20c] sm:$0xf]
      %v326 = vld [vmem:[%s1 + $0x210] sm:$0xf]
      %v327 = vld [vmem:[%s1 + $0x214] sm:$0xf]
      %v328 = vld [vmem:[%s1 + $0x218] sm:$0xf]
      %v329 = vld [vmem:[%s1 + $0x21c] sm:$0xf]
      %v330 = vld [vmem:[%s1 + $0x220] sm:$0xf]
      %v331 = vld [vmem:[%s1 + $0x224] sm:$0xf]
      %v332 = vld [vmem:[%s1 + $0x228] sm:$0xf]
      %v333 = vld [vmem:[%s1 + $0x22c] sm:$0xf]
      %v334 = vld [vmem:[%s1 + $0x230] sm:$0xf]
      %v335 = vld [vmem:[%s1 + $0x234] sm:$0xf]
      %v336 = vld [vmem:[%s1 + $0x238] sm:$0xf]
      %v337 = vld [vmem:[%s1 + $0x23c] sm:$0xf]
      %v338 = vld [vmem:[%s1 + $0x240] sm:$0xf]
      %v339 = vld [vmem:[%s1 + $0x244] sm:$0xf]
      %v340 = vld [vmem:[%s1 + $0x248] sm:$0xf]
      %v341 = vld [vmem:[%s1 + $0x24c] sm:$0xf]
      %v342 = vld [vmem:[%s1 + $0x250] sm:$0xf]
      %v343 = vld [vmem:[%s1 + $0x254] sm:$0xf]
      %v344 = vld [vmem:[%s1 + $0x258] sm:$0xf]
      %v345 = vld [vmem:[%s1 + $0x25c] sm:$0xf]
      %v346 = vld [vmem:[%s1 + $0x260] sm:$0xf]
      %v347 = vld [vmem:[%s1 + $0x264] sm:$0xf]
      %v348 = vld [vmem:[%s1 + $0x268] sm:$0xf]
      %v349 = vld [vmem:[%s1 + $0x26c] sm:$0xf]
      %v350 = vld [vmem:[%s1 + $0x270] sm:$0xf]
      %v351 = vld [vmem:[%s1 + $0x274] sm:$0xf]
      %v352 = vld [vmem:[%s1 + $0x278] sm:$0xf]
      %v353 = vld [vmem:[%s1 + $0x27c] sm:$0xf]
      %v354 = vld [vmem:[%s1 + $0x280] sm:$0xf]
      %v355 = vld [vmem:[%s1 + $0x284] sm:$0xf]
      %v356 = vld [vmem:[%s1 + $0x288] sm:$0xf]
      %v357 = vld [vmem:[%s1 + $0x28c] sm:$0xf]
      %v358 = vld [vmem:[%s1 + $0x290] sm:$0xf]
      %v359 = vld [vmem:[%s1 + $0x294] sm:$0xf]
      %v360 = vld [vmem:[%s1 + $0x298] sm:$0xf]
      %v361 = vld [vmem:[%s1 + $0x29c] sm:$0xf]
      %v362 = vld [vmem:[%s1 + $0x2a0] sm:$0xf]
      %v363 = vld [vmem:[%s1 + $0x2a4] sm:$0xf]
      %v364 = vld [vmem:[%s1 + $0x2a8] sm:$0xf]
      %v365 = vld [vmem:[%s1 + $0x2ac] sm:$0xf]
      %v366 = vld [vmem:[%s1 + $0x2b0] sm:$0xf]
      %v367 = vld [vmem:[%s1 + $0x2b4] sm:$0xf]
      %v368 = vld [vmem:[%s1 + $0x2b8] sm:$0xf]
      %v369 = vld [vmem:[%s1 + $0x2bc] sm:$0xf]
      %v370 = vld [vmem:[%s1 + $0x2c0] sm:$0xf]
      %v371 = vld [vmem:[%s1 + $0x2c4] sm:$0xf]
      %v372 = vld [vmem:[%s1 + $0x2c8] sm:$0xf]
      %v373 = vld [vmem:[%s1 + $0x2cc] sm:$0xf]
      %v374 = vld [vmem:[%s1 + $0x2d0] sm:$0xf]
      %v375 = vld [vmem:[%s1 + $0x2d4] sm:$0xf]
      %v376 = vld [vmem:[%s1 + $0x2d8] sm:$0xf]
      %v377 = vld [vmem:[%s1 + $0x2dc] sm:$0xf]
      %v378 = vld [vmem:[%s1 + $0x2e0] sm:$0xf]
      %v379 = vld [vmem:[%s1 + $0x2e4] sm:$0xf]
      %v380 = vld [vmem:[%s1 + $0x2e8] sm:$0xf]
      %v381 = vld [vmem:[%s1 + $0x2ec] sm:$0xf]
      %v382 = vld [vmem:[%s1 + $0x2f0] sm:$0xf]
      %v383 = vld [vmem:[%s1 + $0x2f4] sm:$0xf]
      %v384 = vld [vmem:[%s1 + $0x2f8] sm:$0xf]
      %v385 = vld [vmem:[%s1 + $0x2fc] sm:$0xf]
      %v386 = vld [vmem:[%s1 + $0x300] sm:$0xf]
      %v387 = vld [vmem:[%s1 + $0x304] sm:$0xf]
      %v388 = vld [vmem:[%s1 + $0x308] sm:$0xf]
      %v389 = vld [vmem:[%s1 + $0x30c] sm:$0xf]
      %v390 = vld [vmem:[%s1 + $0x310] sm:$0xf]
      %v391 = vld [vmem:[%s1 + $0x314] sm:$0xf]
      %v392 = vld [vmem:[%s1 + $0x318] sm:$0xf]
      %v393 = vld [vmem:[%s1 + $0x31c] sm:$0xf]
      %v394 = vld [vmem:[%s1 + $0x320] sm:$0xf]
      %v395 = vld [vmem:[%s1 + $0x324] sm:$0xf]
      %v396 = vld [vmem:[%s1 + $0x328] sm:$0xf]
      %v397 = vld [vmem:[%s1 + $0x32c] sm:$0xf]
      %v398 = vld [vmem:[%s1 + $0x330] sm:$0xf]
      %v399 = vld [vmem:[%s1 + $0x334] sm:$0xf]
      %v400 = vld [vmem:[%s1 + $0x338] sm:$0xf]
      %v401 = vld [vmem:[%s1 + $0x33c] sm:$0xf]
      %v402 = vld [vmem:[%s1 + $0x340] sm:$0xf]
      %v403 = vld [vmem:[%s1 + $0x344] sm:$0xf]
      %v404 = vld [vmem:[%s1 + $0x348] sm:$0xf]
      %v405 = vld [vmem:[%s1 + $0x34c] sm:$0xf]
      %v406 = vld [vmem:[%s1 + $0x350] sm:$0xf]
      %v407 = vld [vmem:[%s1 + $0x354] sm:$0xf]
      %v408 = vld [vmem:[%s1 + $0x358] sm:$0xf]
      %v409 = vld [vmem:[%s1 + $0x35c] sm:$0xf]
      %v410 = vld [vmem:[%s1 + $0x360] sm:$0xf]
      %v411 = vld [vmem:[%s1 + $0x364] sm:$0xf]
      %v412 = vld [vmem:[%s1 + $0x368] sm:$0xf]
      %v413 = vld [vmem:[%s1 + $0x36c] sm:$0xf]
      %v414 = vld [vmem:[%s1 + $0x370] sm:$0xf]
      %v415 = vld [vmem:[%s1 + $0x374] sm:$0xf]
      %v416 = vld [vmem:[%s1 + $0x378] sm:$0xf]
      %v417 = vld [vmem:[%s1 + $0x37c] sm:$0xf]
      %v418 = vld [vmem:[%s1 + $0x380] sm:$0xf]
      %v419 = vld [vmem:[%s1 + $0x384] sm:$0xf]
      %v420 = vld [vmem:[%s1 + $0x388] sm:$0xf]
      %v421 = vld [vmem:[%s1 + $0x38c] sm:$0xf]
      %v422 = vld [vmem:[%s1 + $0x390] sm:$0xf]
      %v423 = vld [vmem:[%s1 + $0x394] sm:$0xf]
      %v424 = vld [vmem:[%s1 + $0x398] sm:$0xf]
      %v425 = vld [vmem:[%s1 + $0x39c] sm:$0xf]
      %v426 = vld [vmem:[%s1 + $0x3a0] sm:$0xf]
      %v427 = vld [vmem:[%s1 + $0x3a4] sm:$0xf]
      %v428 = vld [vmem:[%s1 + $0x3a8] sm:$0xf]
      %v429 = vld [vmem:[%s1 + $0x3ac] sm:$0xf]
      %v430 = vld [vmem:[%s1 + $0x3b0] sm:$0xf]
      %v431 = vld [vmem:[%s1 + $0x3b4] sm:$0xf]
      %v432 = vld [vmem:[%s1 + $0x3b8] sm:$0xf]
      %v433 = vld [vmem:[%s1 + $0x3bc] sm:$0xf]
      %v434 = vld [vmem:[%s1 + $0x3c0] sm:$0xf]
      %v435 = vld [vmem:[%s1 + $0x3c4] sm:$0xf]
      %v436 = vld [vmem:[%s1 + $0x3c8] sm:$0xf]
      %v437 = vld [vmem:[%s1 + $0x3cc] sm:$0xf]
      %v438 = vld [vmem:[%s1 + $0x3d0] sm:$0xf]
      %v439 = vld [vmem:[%s1 + $0x3d4] sm:$0xf]
      %v440 = vld [vmem:[%s1 + $0x3d8] sm:$0xf]
      %v441 = vld [vmem:[%s1 + $0x3dc] sm:$0xf]
      %v442 = vld [vmem:[%s1 + $0x3e0] sm:$0xf]
      %v443 = vld [vmem:[%s1 + $0x3e4] sm:$0xf]
      %v444 = vld [vmem:[%s1 + $0x3e8] sm:$0xf]
      %v445 = vld [vmem:[%s1 + $0x3ec] sm:$0xf]
      %v446 = vld [vmem:[%s1 + $0x3f0] sm:$0xf]
      %v447 = vld [vmem:[%s1 + $0x3f4] sm:$0xf]
      %v448 = vld [vmem:[%s1 + $0x3f8] sm:$0xf]
      %v449 = vld [vmem:[%s1 + $0x3fc] sm:$0xf]
      %v450 = vld [vmem:[%s2] sm:$0x1]
      %v452 = vlaneseq
      %v453 = vshrl.u32 %v452, 7
      %v454 = vsub.s32 0, %v453
      %v455 = vrot.slane %v450, %v454
      %v473 = vunpack.c.l.b16 %v178
      %v474 = vunpack.c.h.b16 %v178
      %v475 = vunpack.c.l.b16 %v179
      %v476 = vunpack.c.h.b16 %v179
      %v477 = vunpack.c.l.b16 %v180
      %v478 = vunpack.c.h.b16 %v180
      %v479 = vunpack.c.l.b16 %v181
      %v480 = vunpack.c.h.b16 %v181
      %v481 = vunpack.c.l.b16 %v182
      %v482 = vunpack.c.h.b16 %v182
      %v483 = vunpack.c.l.b16 %v183
      %v484 = vunpack.c.h.b16 %v183
      %v485 = vunpack.c.l.b16 %v184
      %v486 = vunpack.c.h.b16 %v184
      %v487 = vunpack.c.l.b16 %v185
      %v488 = vunpack.c.h.b16 %v185
      %v489 = vunpack.c.l.b16 %v186
      %v490 = vunpack.c.h.b16 %v186
      %v491 = vunpack.c.l.b16 %v187
      %v492 = vunpack.c.h.b16 %v187
      %v493 = vunpack.c.l.b16 %v188
      %v494 = vunpack.c.h.b16 %v188
      %v495 = vunpack.c.l.b16 %v189
      %v496 = vunpack.c.h.b16 %v189
      %v497 = vunpack.c.l.b16 %v190
      %v498 = vunpack.c.h.b16 %v190
      %v499 = vunpack.c.l.b16 %v191
      %v500 = vunpack.c.h.b16 %v191
      %v501 = vunpack.c.l.b16 %v192
      %v502 = vunpack.c.h.b16 %v192
      %v503 = vunpack.c.l.b16 %v193
      %v504 = vunpack.c.h.b16 %v193
      %v505 = vpack.c.b16 %v489, %v473
      %v506 = vpack.c.b16 %v490, %v474
      %v507 = vpack.c.b16 %v491, %v475
      %v508 = vpack.c.b16 %v492, %v476
      %v509 = vpack.c.b16 %v493, %v477
      %v510 = vpack.c.b16 %v494, %v478
      %v511 = vpack.c.b16 %v495, %v479
      %v512 = vpack.c.b16 %v496, %v480
      %v513 = vpack.c.b16 %v497, %v481
      %v514 = vpack.c.b16 %v498, %v482
      %v515 = vpack.c.b16 %v499, %v483
      %v516 = vpack.c.b16 %v500, %v484
      %v517 = vpack.c.b16 %v501, %v485
      %v518 = vpack.c.b16 %v502, %v486
      %v519 = vpack.c.b16 %v503, %v487
      %v520 = vpack.c.b16 %v504, %v488
      %v793 = vunpack.c.l.b16 %v194
      %v794 = vunpack.c.l.b16 %v195
      %v795 = vunpack.c.l.b16 %v196
      %v796 = vunpack.c.l.b16 %v197
      %v797 = vunpack.c.l.b16 %v198
      %v798 = vunpack.c.l.b16 %v199
      %v799 = vunpack.c.l.b16 %v200
      %v800 = vunpack.c.l.b16 %v201
      %v801 = vunpack.c.l.b16 %v202
      %v802 = vunpack.c.l.b16 %v203
      %v803 = vunpack.c.l.b16 %v204
      %v804 = vunpack.c.l.b16 %v205
      %v805 = vunpack.c.l.b16 %v206
      %v806 = vunpack.c.l.b16 %v207
      %v807 = vunpack.c.l.b16 %v208
      %v808 = vunpack.c.l.b16 %v209
      %v809 = vunpack.c.l.b16 %v210
      %v810 = vunpack.c.l.b16 %v211
      %v811 = vunpack.c.l.b16 %v212
      %v812 = vunpack.c.l.b16 %v213
      %v813 = vunpack.c.l.b16 %v214
      %v814 = vunpack.c.l.b16 %v215
      %v815 = vunpack.c.l.b16 %v216
      %v816 = vunpack.c.l.b16 %v217
      %v817 = vunpack.c.l.b16 %v218
      %v818 = vunpack.c.l.b16 %v219
      %v819 = vunpack.c.l.b16 %v220
      %v820 = vunpack.c.l.b16 %v221
      %v821 = vunpack.c.l.b16 %v222
      %v822 = vunpack.c.l.b16 %v223
      %v823 = vunpack.c.l.b16 %v224
      %v824 = vunpack.c.l.b16 %v225
      %v825 = vunpack.c.l.b16 %v226
      %v826 = vunpack.c.l.b16 %v227
      %v827 = vunpack.c.l.b16 %v228
      %v828 = vunpack.c.l.b16 %v229
      %v829 = vunpack.c.l.b16 %v230
      %v830 = vunpack.c.l.b16 %v231
      %v831 = vunpack.c.l.b16 %v232
      %v832 = vunpack.c.l.b16 %v233
      %v833 = vunpack.c.l.b16 %v234
      %v834 = vunpack.c.l.b16 %v235
      %v835 = vunpack.c.l.b16 %v236
      %v836 = vunpack.c.l.b16 %v237
      %v837 = vunpack.c.l.b16 %v238
      %v838 = vunpack.c.l.b16 %v239
      %v839 = vunpack.c.l.b16 %v240
      %v840 = vunpack.c.l.b16 %v241
      %v841 = vunpack.c.l.b16 %v242
      %v842 = vunpack.c.l.b16 %v243
      %v843 = vunpack.c.l.b16 %v244
      %v844 = vunpack.c.l.b16 %v245
      %v845 = vunpack.c.l.b16 %v246
      %v846 = vunpack.c.l.b16 %v247
      %v847 = vunpack.c.l.b16 %v248
      %v848 = vunpack.c.l.b16 %v249
      %v849 = vunpack.c.l.b16 %v250
      %v850 = vunpack.c.l.b16 %v251
      %v851 = vunpack.c.l.b16 %v252
      %v852 = vunpack.c.l.b16 %v253
      %v853 = vunpack.c.l.b16 %v254
      %v854 = vunpack.c.l.b16 %v255
      %v855 = vunpack.c.l.b16 %v256
      %v856 = vunpack.c.l.b16 %v257
      %v857 = vunpack.c.l.b16 %v258
      %v858 = vunpack.c.l.b16 %v259
      %v859 = vunpack.c.l.b16 %v260
      %v860 = vunpack.c.l.b16 %v261
      %v861 = vunpack.c.l.b16 %v262
      %v862 = vunpack.c.l.b16 %v263
      %v863 = vunpack.c.l.b16 %v264
      %v864 = vunpack.c.l.b16 %v265
      %v865 = vunpack.c.l.b16 %v266
      %v866 = vunpack.c.l.b16 %v267
      %v867 = vunpack.c.l.b16 %v268
      %v868 = vunpack.c.l.b16 %v269
      %v869 = vunpack.c.l.b16 %v270
      %v870 = vunpack.c.l.b16 %v271
      %v871 = vunpack.c.l.b16 %v272
      %v872 = vunpack.c.l.b16 %v273
      %v873 = vunpack.c.l.b16 %v274
      %v874 = vunpack.c.l.b16 %v275
      %v875 = vunpack.c.l.b16 %v276
      %v876 = vunpack.c.l.b16 %v277
      %v877 = vunpack.c.l.b16 %v278
      %v878 = vunpack.c.l.b16 %v279
      %v879 = vunpack.c.l.b16 %v280
      %v880 = vunpack.c.l.b16 %v281
      %v881 = vunpack.c.l.b16 %v282
      %v882 = vunpack.c.l.b16 %v283
      %v883 = vunpack.c.l.b16 %v284
      %v884 = vunpack.c.l.b16 %v285
      %v885 = vunpack.c.l.b16 %v286
      %v886 = vunpack.c.l.b16 %v287
      %v887 = vunpack.c.l.b16 %v288
      %v888 = vunpack.c.l.b16 %v289
      %v889 = vunpack.c.l.b16 %v290
      %v890 = vunpack.c.l.b16 %v291
      %v891 = vunpack.c.l.b16 %v292
      %v892 = vunpack.c.l.b16 %v293
      %v893 = vunpack.c.l.b16 %v294
      %v894 = vunpack.c.l.b16 %v295
      %v895 = vunpack.c.l.b16 %v296
      %v896 = vunpack.c.l.b16 %v297
      %v897 = vunpack.c.l.b16 %v298
      %v898 = vunpack.c.l.b16 %v299
      %v899 = vunpack.c.l.b16 %v300
      %v900 = vunpack.c.l.b16 %v301
      %v901 = vunpack.c.l.b16 %v302
      %v902 = vunpack.c.l.b16 %v303
      %v903 = vunpack.c.l.b16 %v304
      %v904 = vunpack.c.l.b16 %v305
      %v905 = vunpack.c.l.b16 %v306
      %v906 = vunpack.c.l.b16 %v307
      %v907 = vunpack.c.l.b16 %v308
      %v908 = vunpack.c.l.b16 %v309
      %v909 = vunpack.c.l.b16 %v310
      %v910 = vunpack.c.l.b16 %v311
      %v911 = vunpack.c.l.b16 %v312
      %v912 = vunpack.c.l.b16 %v313
      %v913 = vunpack.c.l.b16 %v314
      %v914 = vunpack.c.l.b16 %v315
      %v915 = vunpack.c.l.b16 %v316
      %v916 = vunpack.c.l.b16 %v317
      %v917 = vunpack.c.l.b16 %v318
      %v918 = vunpack.c.l.b16 %v319
      %v919 = vunpack.c.l.b16 %v320
      %v920 = vunpack.c.l.b16 %v321
      %v921 = vunpack.c.l.b16 %v322
      %v922 = vunpack.c.l.b16 %v323
      %v923 = vunpack.c.l.b16 %v324
      %v924 = vunpack.c.l.b16 %v325
      %v925 = vunpack.c.l.b16 %v326
      %v926 = vunpack.c.l.b16 %v327
      %v927 = vunpack.c.l.b16 %v328
      %v928 = vunpack.c.l.b16 %v329
      %v929 = vunpack.c.l.b16 %v330
      %v930 = vunpack.c.l.b16 %v331
      %v931 = vunpack.c.l.b16 %v332
      %v932 = vunpack.c.l.b16 %v333
      %v933 = vunpack.c.l.b16 %v334
      %v934 = vunpack.c.l.b16 %v335
      %v935 = vunpack.c.l.b16 %v336
      %v936 = vunpack.c.l.b16 %v337
      %v937 = vunpack.c.l.b16 %v338
      %v938 = vunpack.c.l.b16 %v339
      %v939 = vunpack.c.l.b16 %v340
      %v940 = vunpack.c.l.b16 %v341
      %v941 = vunpack.c.l.b16 %v342
      %v942 = vunpack.c.l.b16 %v343
      %v943 = vunpack.c.l.b16 %v344
      %v944 = vunpack.c.l.b16 %v345
      %v945 = vunpack.c.l.b16 %v346
      %v946 = vunpack.c.l.b16 %v347
      %v947 = vunpack.c.l.b16 %v348
      %v948 = vunpack.c.l.b16 %v349
      %v949 = vunpack.c.l.b16 %v350
      %v950 = vunpack.c.l.b16 %v351
      %v951 = vunpack.c.l.b16 %v352
      %v952 = vunpack.c.l.b16 %v353
      %v953 = vunpack.c.l.b16 %v354
      %v954 = vunpack.c.l.b16 %v355
      %v955 = vunpack.c.l.b16 %v356
      %v956 = vunpack.c.l.b16 %v357
      %v957 = vunpack.c.l.b16 %v358
      %v958 = vunpack.c.l.b16 %v359
      %v959 = vunpack.c.l.b16 %v360
      %v960 = vunpack.c.l.b16 %v361
      %v961 = vunpack.c.l.b16 %v362
      %v962 = vunpack.c.l.b16 %v363
      %v963 = vunpack.c.l.b16 %v364
      %v964 = vunpack.c.l.b16 %v365
      %v965 = vunpack.c.l.b16 %v366
      %v966 = vunpack.c.l.b16 %v367
      %v967 = vunpack.c.l.b16 %v368
      %v968 = vunpack.c.l.b16 %v369
      %v969 = vunpack.c.l.b16 %v370
      %v970 = vunpack.c.l.b16 %v371
      %v971 = vunpack.c.l.b16 %v372
      %v972 = vunpack.c.l.b16 %v373
      %v973 = vunpack.c.l.b16 %v374
      %v974 = vunpack.c.l.b16 %v375
      %v975 = vunpack.c.l.b16 %v376
      %v976 = vunpack.c.l.b16 %v377
      %v977 = vunpack.c.l.b16 %v378
      %v978 = vunpack.c.l.b16 %v379
      %v979 = vunpack.c.l.b16 %v380
      %v980 = vunpack.c.l.b16 %v381
      %v981 = vunpack.c.l.b16 %v382
      %v982 = vunpack.c.l.b16 %v383
      %v983 = vunpack.c.l.b16 %v384
      %v984 = vunpack.c.l.b16 %v385
      %v985 = vunpack.c.l.b16 %v386
      %v986 = vunpack.c.l.b16 %v387
      %v987 = vunpack.c.l.b16 %v388
      %v988 = vunpack.c.l.b16 %v389
      %v989 = vunpack.c.l.b16 %v390
      %v990 = vunpack.c.l.b16 %v391
      %v991 = vunpack.c.l.b16 %v392
      %v992 = vunpack.c.l.b16 %v393
      %v993 = vunpack.c.l.b16 %v394
      %v994 = vunpack.c.l.b16 %v395
      %v995 = vunpack.c.l.b16 %v396
      %v996 = vunpack.c.l.b16 %v397
      %v997 = vunpack.c.l.b16 %v398
      %v998 = vunpack.c.l.b16 %v399
      %v999 = vunpack.c.l.b16 %v400
      %v1000 = vunpack.c.l.b16 %v401
      %v1001 = vunpack.c.l.b16 %v402
      %v1002 = vunpack.c.l.b16 %v403
      %v1003 = vunpack.c.l.b16 %v404
      %v1004 = vunpack.c.l.b16 %v405
      %v1005 = vunpack.c.l.b16 %v406
      %v1006 = vunpack.c.l.b16 %v407
      %v1007 = vunpack.c.l.b16 %v408
      %v1008 = vunpack.c.l.b16 %v409
      %v1009 = vunpack.c.l.b16 %v410
      %v1010 = vunpack.c.l.b16 %v411
      %v1011 = vunpack.c.l.b16 %v412
      %v1012 = vunpack.c.l.b16 %v413
      %v1013 = vunpack.c.l.b16 %v414
      %v1014 = vunpack.c.l.b16 %v415
      %v1015 = vunpack.c.l.b16 %v416
      %v1016 = vunpack.c.l.b16 %v417
      %v1017 = vunpack.c.l.b16 %v418
      %v1018 = vunpack.c.l.b16 %v419
      %v1019 = vunpack.c.l.b16 %v420
      %v1020 = vunpack.c.l.b16 %v421
      %v1021 = vunpack.c.l.b16 %v422
      %v1022 = vunpack.c.l.b16 %v423
      %v1023 = vunpack.c.l.b16 %v424
      %v1024 = vunpack.c.l.b16 %v425
      %v1025 = vunpack.c.l.b16 %v426
      %v1026 = vunpack.c.l.b16 %v427
      %v1027 = vunpack.c.l.b16 %v428
      %v1028 = vunpack.c.l.b16 %v429
      %v1029 = vunpack.c.l.b16 %v430
      %v1030 = vunpack.c.l.b16 %v431
      %v1031 = vunpack.c.l.b16 %v432
      %v1032 = vunpack.c.l.b16 %v433
      %v1033 = vunpack.c.l.b16 %v434
      %v1034 = vunpack.c.l.b16 %v435
      %v1035 = vunpack.c.l.b16 %v436
      %v1036 = vunpack.c.l.b16 %v437
      %v1037 = vunpack.c.l.b16 %v438
      %v1038 = vunpack.c.l.b16 %v439
      %v1039 = vunpack.c.l.b16 %v440
      %v1040 = vunpack.c.l.b16 %v441
      %v1041 = vunpack.c.l.b16 %v442
      %v1042 = vunpack.c.l.b16 %v443
      %v1043 = vunpack.c.l.b16 %v444
      %v1044 = vunpack.c.l.b16 %v445
      %v1045 = vunpack.c.l.b16 %v446
      %v1046 = vunpack.c.l.b16 %v447
      %v1047 = vunpack.c.l.b16 %v448
      %v1048 = vunpack.c.l.b16 %v449
      %v1049 = vpack.c.b16 %v794, %v793
      %v1050 = vpack.c.b16 %v796, %v795
      %v1051 = vpack.c.b16 %v798, %v797
      %v1052 = vpack.c.b16 %v800, %v799
      %v1053 = vpack.c.b16 %v802, %v801
      %v1054 = vpack.c.b16 %v804, %v803
      %v1055 = vpack.c.b16 %v806, %v805
      %v1056 = vpack.c.b16 %v808, %v807
      %v1057 = vpack.c.b16 %v810, %v809
      %v1058 = vpack.c.b16 %v812, %v811
      %v1059 = vpack.c.b16 %v814, %v813
      %v1060 = vpack.c.b16 %v816, %v815
      %v1061 = vpack.c.b16 %v818, %v817
      %v1062 = vpack.c.b16 %v820, %v819
      %v1063 = vpack.c.b16 %v822, %v821
      %v1064 = vpack.c.b16 %v824, %v823
      %v1065 = vpack.c.b16 %v826, %v825
      %v1066 = vpack.c.b16 %v828, %v827
      %v1067 = vpack.c.b16 %v830, %v829
      %v1068 = vpack.c.b16 %v832, %v831
      %v1069 = vpack.c.b16 %v834, %v833
      %v1070 = vpack.c.b16 %v836, %v835
      %v1071 = vpack.c.b16 %v838, %v837
      %v1072 = vpack.c.b16 %v840, %v839
      %v1073 = vpack.c.b16 %v842, %v841
      %v1074 = vpack.c.b16 %v844, %v843
      %v1075 = vpack.c.b16 %v846, %v845
      %v1076 = vpack.c.b16 %v848, %v847
      %v1077 = vpack.c.b16 %v850, %v849
      %v1078 = vpack.c.b16 %v852, %v851
      %v1079 = vpack.c.b16 %v854, %v853
      %v1080 = vpack.c.b16 %v856, %v855
      %v1081 = vpack.c.b16 %v858, %v857
      %v1082 = vpack.c.b16 %v860, %v859
      %v1083 = vpack.c.b16 %v862, %v861
      %v1084 = vpack.c.b16 %v864, %v863
      %v1085 = vpack.c.b16 %v866, %v865
      %v1086 = vpack.c.b16 %v868, %v867
      %v1087 = vpack.c.b16 %v870, %v869
      %v1088 = vpack.c.b16 %v872, %v871
      %v1089 = vpack.c.b16 %v874, %v873
      %v1090 = vpack.c.b16 %v876, %v875
      %v1091 = vpack.c.b16 %v878, %v877
      %v1092 = vpack.c.b16 %v880, %v879
      %v1093 = vpack.c.b16 %v882, %v881
      %v1094 = vpack.c.b16 %v884, %v883
      %v1095 = vpack.c.b16 %v886, %v885
      %v1096 = vpack.c.b16 %v888, %v887
      %v1097 = vpack.c.b16 %v890, %v889
      %v1098 = vpack.c.b16 %v892, %v891
      %v1099 = vpack.c.b16 %v894, %v893
      %v1100 = vpack.c.b16 %v896, %v895
      %v1101 = vpack.c.b16 %v898, %v897
      %v1102 = vpack.c.b16 %v900, %v899
      %v1103 = vpack.c.b16 %v902, %v901
      %v1104 = vpack.c.b16 %v904, %v903
      %v1105 = vpack.c.b16 %v906, %v905
      %v1106 = vpack.c.b16 %v908, %v907
      %v1107 = vpack.c.b16 %v910, %v909
      %v1108 = vpack.c.b16 %v912, %v911
      %v1109 = vpack.c.b16 %v914, %v913
      %v1110 = vpack.c.b16 %v916, %v915
      %v1111 = vpack.c.b16 %v918, %v917
      %v1112 = vpack.c.b16 %v920, %v919
      %v1113 = vpack.c.b16 %v922, %v921
      %v1114 = vpack.c.b16 %v924, %v923
      %v1115 = vpack.c.b16 %v926, %v925
      %v1116 = vpack.c.b16 %v928, %v927
      %v1117 = vpack.c.b16 %v930, %v929
      %v1118 = vpack.c.b16 %v932, %v931
      %v1119 = vpack.c.b16 %v934, %v933
      %v1120 = vpack.c.b16 %v936, %v935
      %v1121 = vpack.c.b16 %v938, %v937
      %v1122 = vpack.c.b16 %v940, %v939
      %v1123 = vpack.c.b16 %v942, %v941
      %v1124 = vpack.c.b16 %v944, %v943
      %v1125 = vpack.c.b16 %v946, %v945
      %v1126 = vpack.c.b16 %v948, %v947
      %v1127 = vpack.c.b16 %v950, %v949
      %v1128 = vpack.c.b16 %v952, %v951
      %v1129 = vpack.c.b16 %v954, %v953
      %v1130 = vpack.c.b16 %v956, %v955
      %v1131 = vpack.c.b16 %v958, %v957
      %v1132 = vpack.c.b16 %v960, %v959
      %v1133 = vpack.c.b16 %v962, %v961
      %v1134 = vpack.c.b16 %v964, %v963
      %v1135 = vpack.c.b16 %v966, %v965
      %v1136 = vpack.c.b16 %v968, %v967
      %v1137 = vpack.c.b16 %v970, %v969
      %v1138 = vpack.c.b16 %v972, %v971
      %v1139 = vpack.c.b16 %v974, %v973
      %v1140 = vpack.c.b16 %v976, %v975
      %v1141 = vpack.c.b16 %v978, %v977
      %v1142 = vpack.c.b16 %v980, %v979
      %v1143 = vpack.c.b16 %v982, %v981
      %v1144 = vpack.c.b16 %v984, %v983
      %v1145 = vpack.c.b16 %v986, %v985
      %v1146 = vpack.c.b16 %v988, %v987
      %v1147 = vpack.c.b16 %v990, %v989
      %v1148 = vpack.c.b16 %v992, %v991
      %v1149 = vpack.c.b16 %v994, %v993
      %v1150 = vpack.c.b16 %v996, %v995
      %v1151 = vpack.c.b16 %v998, %v997
      %v1152 = vpack.c.b16 %v1000, %v999
      %v1153 = vpack.c.b16 %v1002, %v1001
      %v1154 = vpack.c.b16 %v1004, %v1003
      %v1155 = vpack.c.b16 %v1006, %v1005
      %v1156 = vpack.c.b16 %v1008, %v1007
      %v1157 = vpack.c.b16 %v1010, %v1009
      %v1158 = vpack.c.b16 %v1012, %v1011
      %v1159 = vpack.c.b16 %v1014, %v1013
      %v1160 = vpack.c.b16 %v1016, %v1015
      %v1161 = vpack.c.b16 %v1018, %v1017
      %v1162 = vpack.c.b16 %v1020, %v1019
      %v1163 = vpack.c.b16 %v1022, %v1021
      %v1164 = vpack.c.b16 %v1024, %v1023
      %v1165 = vpack.c.b16 %v1026, %v1025
      %v1166 = vpack.c.b16 %v1028, %v1027
      %v1167 = vpack.c.b16 %v1030, %v1029
      %v1168 = vpack.c.b16 %v1032, %v1031
      %v1169 = vpack.c.b16 %v1034, %v1033
      %v1170 = vpack.c.b16 %v1036, %v1035
      %v1171 = vpack.c.b16 %v1038, %v1037
      %v1172 = vpack.c.b16 %v1040, %v1039
      %v1173 = vpack.c.b16 %v1042, %v1041
      %v1174 = vpack.c.b16 %v1044, %v1043
      %v1175 = vpack.c.b16 %v1046, %v1045
      %v1176 = vpack.c.b16 %v1048, %v1047
      %1305 = vmatprep.subr.bf16.mxu0 0
      %1306 = vmatpush1.bf16.msra.mxu0 %v1049
      %1307 = vmatprep.subr.bf16.mxu0 0
      %1308 = vmatpush1.bf16.msra.mxu0 %v1050
      %1309 = vmatprep.subr.bf16.mxu0 0
      %1310 = vmatpush1.bf16.msra.mxu0 %v1051
      %1311 = vmatprep.subr.bf16.mxu0 0
      %1312 = vmatpush1.bf16.msra.mxu0 %v1052
      %1313 = vmatprep.subr.bf16.mxu0 0
      %1314 = vmatpush1.bf16.msra.mxu0 %v1053
      %1315 = vmatprep.subr.bf16.mxu0 0
      %1316 = vmatpush1.bf16.msra.mxu0 %v1054
      %1317 = vmatprep.subr.bf16.mxu0 0
      %1318 = vmatpush1.bf16.msra.mxu0 %v1055
      %1319 = vmatprep.subr.bf16.mxu0 0
      %1320 = vmatpush1.bf16.msra.mxu0 %v1056
      %1321 = vmatprep.subr.bf16.mxu0 0
      %1322 = vmatpush1.bf16.msra.mxu0 %v1057
      %1323 = vmatprep.subr.bf16.mxu0 0
      %1324 = vmatpush1.bf16.msra.mxu0 %v1058
      %1325 = vmatprep.subr.bf16.mxu0 0
      %1326 = vmatpush1.bf16.msra.mxu0 %v1059
      %1327 = vmatprep.subr.bf16.mxu0 0
      %1328 = vmatpush1.bf16.msra.mxu0 %v1060
      %1329 = vmatprep.subr.bf16.mxu0 0
      %1330 = vmatpush1.bf16.msra.mxu0 %v1061
      %1331 = vmatprep.subr.bf16.mxu0 0
      %1332 = vmatpush1.bf16.msra.mxu0 %v1062
      %1333 = vmatprep.subr.bf16.mxu0 0
      %1334 = vmatpush1.bf16.msra.mxu0 %v1063
      %1335 = vmatprep.subr.bf16.mxu0 0
      %1336 = vmatpush1.bf16.msra.mxu0 %v1064
      %1337 = vmatprep.mubr.bf16.mxu0 %v506
      %1338 = vmatmul.mubr.bf16.gmra.mrb[0].mxu0 %v505
      %v1339 = vpop.f32.mrb[0].mxu0
      %v1340 = vadd.f32 %v455, %v1339
      %v1341 = vpop.f32.mrb[0].mxu0
      %v1342 = vpop.f32.mrb[0].mxu0
      %v1343 = vadd.f32 %v455, %v1342
      %v1344 = vpop.f32.mrb[0].mxu0
      %1345 = vdwg.mxu0
      %1346 = vmatprep.subr.bf16.mxu0 0
      %1347 = vmatpush1.bf16.msra.mxu0 %v1065
      %1348 = vmatprep.subr.bf16.mxu0 0
      %1349 = vmatpush1.bf16.msra.mxu0 %v1066
      %1350 = vmatprep.subr.bf16.mxu0 0
      %1351 = vmatpush1.bf16.msra.mxu0 %v1067
      %1352 = vmatprep.subr.bf16.mxu0 0
      %1353 = vmatpush1.bf16.msra.mxu0 %v1068
      %1354 = vmatprep.subr.bf16.mxu0 0
      %1355 = vmatpush1.bf16.msra.mxu0 %v1069
      %1356 = vmatprep.subr.bf16.mxu0 0
      %1357 = vmatpush1.bf16.msra.mxu0 %v1070
      %1358 = vmatprep.subr.bf16.mxu0 0
      %1359 = vmatpush1.bf16.msra.mxu0 %v1071
      %1360 = vmatprep.subr.bf16.mxu0 0
      %1361 = vmatpush1.bf16.msra.mxu0 %v1072
      %1362 = vmatprep.subr.bf16.mxu0 0
      %1363 = vmatpush1.bf16.msra.mxu0 %v1073
      %1364 = vmatprep.subr.bf16.mxu0 0
      %1365 = vmatpush1.bf16.msra.mxu0 %v1074
      %1366 = vmatprep.subr.bf16.mxu0 0
      %1367 = vmatpush1.bf16.msra.mxu0 %v1075
      %1368 = vmatprep.subr.bf16.mxu0 0
      %1369 = vmatpush1.bf16.msra.mxu0 %v1076
      %1370 = vmatprep.subr.bf16.mxu0 0
      %1371 = vmatpush1.bf16.msra.mxu0 %v1077
      %1372 = vmatprep.subr.bf16.mxu0 0
      %1373 = vmatpush1.bf16.msra.mxu0 %v1078
      %1374 = vmatprep.subr.bf16.mxu0 0
      %1375 = vmatpush1.bf16.msra.mxu0 %v1079
      %1376 = vmatprep.subr.bf16.mxu0 0
      %1377 = vmatpush1.bf16.msra.mxu0 %v1080
      %1378 = vmatprep.mubr.bf16.mxu0 %v508
      %1379 = vmatmul.mubr.bf16.gmra.mrb[0].mxu0 %v507
      %v1380 = vpop.f32.mrb[0].mxu0
      %v1381 = vadd.f32 %v1340, %v1380
      %v1382 = vpop.f32.mrb[0].mxu0
      %v1383 = vpop.f32.mrb[0].mxu0
      %v1384 = vadd.f32 %v1343, %v1383
      %v1385 = vpop.f32.mrb[0].mxu0
      %1386 = vdwg.mxu0
      %1387 = vmatprep.subr.bf16.mxu0 0
      %1388 = vmatpush1.bf16.msra.mxu0 %v1081
      %1389 = vmatprep.subr.bf16.mxu0 0
      %1390 = vmatpush1.bf16.msra.mxu0 %v1082
      %1391 = vmatprep.subr.bf16.mxu0 0
      %1392 = vmatpush1.bf16.msra.mxu0 %v1083
      %1393 = vmatprep.subr.bf16.mxu0 0
      %1394 = vmatpush1.bf16.msra.mxu0 %v1084
      %1395 = vmatprep.subr.bf16.mxu0 0
      %1396 = vmatpush1.bf16.msra.mxu0 %v1085
      %1397 = vmatprep.subr.bf16.mxu0 0
      %1398 = vmatpush1.bf16.msra.mxu0 %v1086
      %1399 = vmatprep.subr.bf16.mxu0 0
      %1400 = vmatpush1.bf16.msra.mxu0 %v1087
      %1401 = vmatprep.subr.bf16.mxu0 0
      %1402 = vmatpush1.bf16.msra.mxu0 %v1088
      %1403 = vmatprep.subr.bf16.mxu0 0
      %1404 = vmatpush1.bf16.msra.mxu0 %v1089
      %1405 = vmatprep.subr.bf16.mxu0 0
      %1406 = vmatpush1.bf16.msra.mxu0 %v1090
      %1407 = vmatprep.subr.bf16.mxu0 0
      %1408 = vmatpush1.bf16.msra.mxu0 %v1091
      %1409 = vmatprep.subr.bf16.mxu0 0
      %1410 = vmatpush1.bf16.msra.mxu0 %v1092
      %1411 = vmatprep.subr.bf16.mxu0 0
      %1412 = vmatpush1.bf16.msra.mxu0 %v1093
      %1413 = vmatprep.subr.bf16.mxu0 0
      %1414 = vmatpush1.bf16.msra.mxu0 %v1094
      %1415 = vmatprep.subr.bf16.mxu0 0
      %1416 = vmatpush1.bf16.msra.mxu0 %v1095
      %1417 = vmatprep.subr.bf16.mxu0 0
      %1418 = vmatpush1.bf16.msra.mxu0 %v1096
      %1419 = vmatprep.mubr.bf16.mxu0 %v510
      %1420 = vmatmul.mubr.bf16.gmra.mrb[0].mxu0 %v509
      %v1421 = vpop.f32.mrb[0].mxu0
      %v1422 = vadd.f32 %v1381, %v1421
      %v1423 = vpop.f32.mrb[0].mxu0
      %v1424 = vpop.f32.mrb[0].mxu0
      %v1425 = vadd.f32 %v1384, %v1424
      %v1426 = vpop.f32.mrb[0].mxu0
      %1427 = vdwg.mxu0
      %1428 = vmatprep.subr.bf16.mxu0 0
      %1429 = vmatpush1.bf16.msra.mxu0 %v1097
      %1430 = vmatprep.subr.bf16.mxu0 0
      %1431 = vmatpush1.bf16.msra.mxu0 %v1098
      %1432 = vmatprep.subr.bf16.mxu0 0
      %1433 = vmatpush1.bf16.msra.mxu0 %v1099
      %1434 = vmatprep.subr.bf16.mxu0 0
      %1435 = vmatpush1.bf16.msra.mxu0 %v1100
      %1436 = vmatprep.subr.bf16.mxu0 0
      %1437 = vmatpush1.bf16.msra.mxu0 %v1101
      %1438 = vmatprep.subr.bf16.mxu0 0
      %1439 = vmatpush1.bf16.msra.mxu0 %v1102
      %1440 = vmatprep.subr.bf16.mxu0 0
      %1441 = vmatpush1.bf16.msra.mxu0 %v1103
      %1442 = vmatprep.subr.bf16.mxu0 0
      %1443 = vmatpush1.bf16.msra.mxu0 %v1104
      %1444 = vmatprep.subr.bf16.mxu0 0
      %1445 = vmatpush1.bf16.msra.mxu0 %v1105
      %1446 = vmatprep.subr.bf16.mxu0 0
      %1447 = vmatpush1.bf16.msra.mxu0 %v1106
      %1448 = vmatprep.subr.bf16.mxu0 0
      %1449 = vmatpush1.bf16.msra.mxu0 %v1107
      %1450 = vmatprep.subr.bf16.mxu0 0
      %1451 = vmatpush1.bf16.msra.mxu0 %v1108
      %1452 = vmatprep.subr.bf16.mxu0 0
      %1453 = vmatpush1.bf16.msra.mxu0 %v1109
      %1454 = vmatprep.subr.bf16.mxu0 0
      %1455 = vmatpush1.bf16.msra.mxu0 %v1110
      %1456 = vmatprep.subr.bf16.mxu0 0
      %1457 = vmatpush1.bf16.msra.mxu0 %v1111
      %1458 = vmatprep.subr.bf16.mxu0 0
      %1459 = vmatpush1.bf16.msra.mxu0 %v1112
      %1460 = vmatprep.mubr.bf16.mxu0 %v512
      %1461 = vmatmul.mubr.bf16.gmra.mrb[0].mxu0 %v511
      %v1462 = vpop.f32.mrb[0].mxu0
      %v1463 = vadd.f32 %v1422, %v1462
      %v1464 = vpop.f32.mrb[0].mxu0
      %v1465 = vpop.f32.mrb[0].mxu0
      %v1466 = vadd.f32 %v1425, %v1465
      %v1467 = vpop.f32.mrb[0].mxu0
      %1468 = vdwg.mxu0
      %1469 = vmatprep.subr.bf16.mxu0 0
      %1470 = vmatpush1.bf16.msra.mxu0 %v1113
      %1471 = vmatprep.subr.bf16.mxu0 0
      %1472 = vmatpush1.bf16.msra.mxu0 %v1114
      %1473 = vmatprep.subr.bf16.mxu0 0
      %1474 = vmatpush1.bf16.msra.mxu0 %v1115
      %1475 = vmatprep.subr.bf16.mxu0 0
      %1476 = vmatpush1.bf16.msra.mxu0 %v1116
      %1477 = vmatprep.subr.bf16.mxu0 0
      %1478 = vmatpush1.bf16.msra.mxu0 %v1117
      %1479 = vmatprep.subr.bf16.mxu0 0
      %1480 = vmatpush1.bf16.msra.mxu0 %v1118
      %1481 = vmatprep.subr.bf16.mxu0 0
      %1482 = vmatpush1.bf16.msra.mxu0 %v1119
      %1483 = vmatprep.subr.bf16.mxu0 0
      %1484 = vmatpush1.bf16.msra.mxu0 %v1120
      %1485 = vmatprep.subr.bf16.mxu0 0
      %1486 = vmatpush1.bf16.msra.mxu0 %v1121
      %1487 = vmatprep.subr.bf16.mxu0 0
      %1488 = vmatpush1.bf16.msra.mxu0 %v1122
      %1489 = vmatprep.subr.bf16.mxu0 0
      %1490 = vmatpush1.bf16.msra.mxu0 %v1123
      %1491 = vmatprep.subr.bf16.mxu0 0
      %1492 = vmatpush1.bf16.msra.mxu0 %v1124
      %1493 = vmatprep.subr.bf16.mxu0 0
      %1494 = vmatpush1.bf16.msra.mxu0 %v1125
      %1495 = vmatprep.subr.bf16.mxu0 0
      %1496 = vmatpush1.bf16.msra.mxu0 %v1126
      %1497 = vmatprep.subr.bf16.mxu0 0
      %1498 = vmatpush1.bf16.msra.mxu0 %v1127
      %1499 = vmatprep.subr.bf16.mxu0 0
      %1500 = vmatpush1.bf16.msra.mxu0 %v1128
      %1501 = vmatprep.mubr.bf16.mxu0 %v514
      %1502 = vmatmul.mubr.bf16.gmra.mrb[0].mxu0 %v513
      %v1503 = vpop.f32.mrb[0].mxu0
      %v1504 = vadd.f32 %v1463, %v1503
      %v1505 = vpop.f32.mrb[0].mxu0
      %v1506 = vpop.f32.mrb[0].mxu0
      %v1507 = vadd.f32 %v1466, %v1506
      %v1508 = vpop.f32.mrb[0].mxu0
      %1509 = vdwg.mxu0
      %1510 = vmatprep.subr.bf16.mxu0 0
      %1511 = vmatpush1.bf16.msra.mxu0 %v1129
      %1512 = vmatprep.subr.bf16.mxu0 0
      %1513 = vmatpush1.bf16.msra.mxu0 %v1130
      %1514 = vmatprep.subr.bf16.mxu0 0
      %1515 = vmatpush1.bf16.msra.mxu0 %v1131
      %1516 = vmatprep.subr.bf16.mxu0 0
      %1517 = vmatpush1.bf16.msra.mxu0 %v1132
      %1518 = vmatprep.subr.bf16.mxu0 0
      %1519 = vmatpush1.bf16.msra.mxu0 %v1133
      %1520 = vmatprep.subr.bf16.mxu0 0
      %1521 = vmatpush1.bf16.msra.mxu0 %v1134
      %1522 = vmatprep.subr.bf16.mxu0 0
      %1523 = vmatpush1.bf16.msra.mxu0 %v1135
      %1524 = vmatprep.subr.bf16.mxu0 0
      %1525 = vmatpush1.bf16.msra.mxu0 %v1136
      %1526 = vmatprep.subr.bf16.mxu0 0
      %1527 = vmatpush1.bf16.msra.mxu0 %v1137
      %1528 = vmatprep.subr.bf16.mxu0 0
      %1529 = vmatpush1.bf16.msra.mxu0 %v1138
      %1530 = vmatprep.subr.bf16.mxu0 0
      %1531 = vmatpush1.bf16.msra.mxu0 %v1139
      %1532 = vmatprep.subr.bf16.mxu0 0
      %1533 = vmatpush1.bf16.msra.mxu0 %v1140
      %1534 = vmatprep.subr.bf16.mxu0 0
      %1535 = vmatpush1.bf16.msra.mxu0 %v1141
      %1536 = vmatprep.subr.bf16.mxu0 0
      %1537 = vmatpush1.bf16.msra.mxu0 %v1142
      %1538 = vmatprep.subr.bf16.mxu0 0
      %1539 = vmatpush1.bf16.msra.mxu0 %v1143
      %1540 = vmatprep.subr.bf16.mxu0 0
      %1541 = vmatpush1.bf16.msra.mxu0 %v1144
      %1542 = vmatprep.mubr.bf16.mxu0 %v516
      %1543 = vmatmul.mubr.bf16.gmra.mrb[0].mxu0 %v515
      %v1544 = vpop.f32.mrb[0].mxu0
      %v1545 = vadd.f32 %v1504, %v1544
      %v1546 = vpop.f32.mrb[0].mxu0
      %v1547 = vpop.f32.mrb[0].mxu0
      %v1548 = vadd.f32 %v1507, %v1547
      %v1549 = vpop.f32.mrb[0].mxu0
      %1550 = vdwg.mxu0
      %1551 = vmatprep.subr.bf16.mxu0 0
      %1552 = vmatpush1.bf16.msra.mxu0 %v1145
      %1553 = vmatprep.subr.bf16.mxu0 0
      %1554 = vmatpush1.bf16.msra.mxu0 %v1146
      %1555 = vmatprep.subr.bf16.mxu0 0
      %1556 = vmatpush1.bf16.msra.mxu0 %v1147
      %1557 = vmatprep.subr.bf16.mxu0 0
      %1558 = vmatpush1.bf16.msra.mxu0 %v1148
      %1559 = vmatprep.subr.bf16.mxu0 0
      %1560 = vmatpush1.bf16.msra.mxu0 %v1149
      %1561 = vmatprep.subr.bf16.mxu0 0
      %1562 = vmatpush1.bf16.msra.mxu0 %v1150
      %1563 = vmatprep.subr.bf16.mxu0 0
      %1564 = vmatpush1.bf16.msra.mxu0 %v1151
      %1565 = vmatprep.subr.bf16.mxu0 0
      %1566 = vmatpush1.bf16.msra.mxu0 %v1152
      %1567 = vmatprep.subr.bf16.mxu0 0
      %1568 = vmatpush1.bf16.msra.mxu0 %v1153
      %1569 = vmatprep.subr.bf16.mxu0 0
      %1570 = vmatpush1.bf16.msra.mxu0 %v1154
      %1571 = vmatprep.subr.bf16.mxu0 0
      %1572 = vmatpush1.bf16.msra.mxu0 %v1155
      %1573 = vmatprep.subr.bf16.mxu0 0
      %1574 = vmatpush1.bf16.msra.mxu0 %v1156
      %1575 = vmatprep.subr.bf16.mxu0 0
      %1576 = vmatpush1.bf16.msra.mxu0 %v1157
      %1577 = vmatprep.subr.bf16.mxu0 0
      %1578 = vmatpush1.bf16.msra.mxu0 %v1158
      %1579 = vmatprep.subr.bf16.mxu0 0
      %1580 = vmatpush1.bf16.msra.mxu0 %v1159
      %1581 = vmatprep.subr.bf16.mxu0 0
      %1582 = vmatpush1.bf16.msra.mxu0 %v1160
      %1583 = vmatprep.mubr.bf16.mxu0 %v518
      %1584 = vmatmul.mubr.bf16.gmra.mrb[0].mxu0 %v517
      %v1585 = vpop.f32.mrb[0].mxu0
      %v1586 = vadd.f32 %v1545, %v1585
      %v1587 = vpop.f32.mrb[0].mxu0
      %v1588 = vpop.f32.mrb[0].mxu0
      %v1589 = vadd.f32 %v1548, %v1588
      %v1590 = vpop.f32.mrb[0].mxu0
      %1591 = vdwg.mxu0
      %1592 = vmatprep.subr.bf16.mxu0 0
      %1593 = vmatpush1.bf16.msra.mxu0 %v1161
      %1594 = vmatprep.subr.bf16.mxu0 0
      %1595 = vmatpush1.bf16.msra.mxu0 %v1162
      %1596 = vmatprep.subr.bf16.mxu0 0
      %1597 = vmatpush1.bf16.msra.mxu0 %v1163
      %1598 = vmatprep.subr.bf16.mxu0 0
      %1599 = vmatpush1.bf16.msra.mxu0 %v1164
      %1600 = vmatprep.subr.bf16.mxu0 0
      %1601 = vmatpush1.bf16.msra.mxu0 %v1165
      %1602 = vmatprep.subr.bf16.mxu0 0
      %1603 = vmatpush1.bf16.msra.mxu0 %v1166
      %1604 = vmatprep.subr.bf16.mxu0 0
      %1605 = vmatpush1.bf16.msra.mxu0 %v1167
      %1606 = vmatprep.subr.bf16.mxu0 0
      %1607 = vmatpush1.bf16.msra.mxu0 %v1168
      %1608 = vmatprep.subr.bf16.mxu0 0
      %1609 = vmatpush1.bf16.msra.mxu0 %v1169
      %1610 = vmatprep.subr.bf16.mxu0 0
      %1611 = vmatpush1.bf16.msra.mxu0 %v1170
      %1612 = vmatprep.subr.bf16.mxu0 0
      %1613 = vmatpush1.bf16.msra.mxu0 %v1171
      %1614 = vmatprep.subr.bf16.mxu0 0
      %1615 = vmatpush1.bf16.msra.mxu0 %v1172
      %1616 = vmatprep.subr.bf16.mxu0 0
      %1617 = vmatpush1.bf16.msra.mxu0 %v1173
      %1618 = vmatprep.subr.bf16.mxu0 0
      %1619 = vmatpush1.bf16.msra.mxu0 %v1174
      %1620 = vmatprep.subr.bf16.mxu0 0
      %1621 = vmatpush1.bf16.msra.mxu0 %v1175
      %1622 = vmatprep.subr.bf16.mxu0 0
      %1623 = vmatpush1.bf16.msra.mxu0 %v1176
      %1624 = vmatprep.mubr.bf16.mxu0 %v520
      %1625 = vmatmul.mubr.bf16.gmra.mrb[0].mxu0 %v519
      %v1626 = vpop.f32.mrb[0].mxu0
      %v1627 = vadd.f32 %v1586, %v1626
      %v1628 = vpop.f32.mrb[0].mxu0
      %v1629 = vpop.f32.mrb[0].mxu0
      %v1630 = vadd.f32 %v1589, %v1629
      %v1631 = vpop.f32.mrb[0].mxu0
      %1632 = vdwg.mxu0
      %v1633 = vmax.f32 %v1627, 0.0
      %v1634 = vmax.f32 %v1630, 0.0
      %v1635 = vpack.c.bf16 %v1634, %v1633
      %v1637 = vunpack.c.l.b16 %v1635
      %v1638 = vunpack.c.h.b16 %v1635
      %v1639 = vpack.c.b16 %v1637, %v1637
      %v1640 = vpack.c.b16 %v1638, %v1638
      %1643 = vst [vmem:[%s175] sm:$0xf] %v1639
      %1644 = vst [vmem:[%s175 + $0x4] sm:$0xf] %v1640
      %s1645 = smul.u32 2, %s14
      %p1646 = scmp.lt.s32.totalorder %s1645, 3
      %s1647 = scalar_select %p1646, %s1645, 3
      %s1648 = smul.addr %s1647, 4
      %s1649 = scalar_lea.vmem %s3, %s1648
      // Predicated region
      $region33: #{_lambda_.6} parent=31 // pred_check
        %p1650 = pneg %p100
      $region34: #{_lambda_.6} parent=31 // pred_check_branch
        %1652 = sbr.rel (%p1650) target = $region36
      $region35: #{_lambda_.6} parent=31 // pred_region
        %s1653 = smul.u32 2, %s14
      $region36: #{_lambda_.6} parent=31 // pred_fallthru
        _
    $region32: #{_lambda_.6} parent=5 // pred_fallthru
      _
    %p1654 = scmp.le.s32.totalorder 2, %s9
    // Predicated region
    $region37: #{_lambda_.6} parent=5 // pred_check
      %p1655 = pneg %p1654
    $region38: #{_lambda_.6} parent=5 // pred_check_branch
      %1657 = sbr.rel (%p1655) target = $region40
    $region39: #{_lambda_.6} parent=5 // pred_region
      %s1658 = ssub.s32 %s9, 2
      // Predicated region
      $region41: #{_lambda_.6} parent=39 // pred_check
        %p1659 = pneg %p106
      $region42: #{_lambda_.6} parent=39 // pred_check_branch
        %1661 = sbr.rel (%p1659) target = $region44
      $region43: #{_lambda_.6} parent=39 // pred_region
        %s1662 = smul.u32 2, %s15
        %p1663 = scmp.lt.s32.totalorder %s1662, 3
        %s1664 = scalar_select %p1663, %s1662, 3
        %s1665 = smul.addr %s1664, 4
        %s1666 = scalar_lea.vmem %s3, %s1665
      $region44: #{_lambda_.6} parent=39 // pred_fallthru
        _
    $region40: #{_lambda_.6} parent=5 // pred_fallthru
      _
  $region6: #{_lambda_.6} parent=0 // loop_footer
    %s13 = sadd.s32 1, %s9
  $region7: #{_lambda_.6} parent=0 // loop_footer_branch
    %8 = sbr.rel target = $region3
  $region8: #{_lambda_.6} parent=0 // loop_exit
    _

// kernel: _lambda_.8
$region0: #{_lambda_.8}
  #allocation0 [shape = 'u32[]', space=smem, size = 0x4, offset = 0x4, fixed_abs, tag = 'smem constant byte address 0x4 - core index']
  #allocation1 [shape = 'u32[144,128]{1,0:T(1,128)}', space=vmem, size = 0x12000, scoped, tag = 'internal scratch']
  %s0 = inlined_call_operand.vmem [shape: bf16[32,1152], index: 0, kind: input, shape index: {}]
  %s1 = inlined_call_operand.vmem [shape: bf16[1152,128], index: 1, kind: input, shape index: {}]
  %s2 = inlined_call_operand.vmem [shape: f32[1,128], index: 2, kind: input, shape index: {}]
  %s3 = inlined_call_operand.vmem [shape: bf16[128,128], index: 3, kind: input, shape index: {}]
  %s4 = inlined_call_operand.vmem [shape: f32[1,128], index: 4, kind: input, shape index: {}]
  %s5 = inlined_call_operand.vmem [shape: f32[32,128], index: 5, kind: input, shape index: {}, may-alias: {5,6}]
  %s6 = inlined_call_operand.vmem [shape: f32[32,128], index: 6, kind: output, shape index: {}, may-alias: {5,6}]
  %s7 = sld [smem:[#allocation0]]
  $region57: #{_lambda_.8} parent=0
    _
  %s9 = ssub.s32 1, %s7
  %s10 = scalar_select 0, %s9, %s7
  loop: start=0, step=1, limit=4
  $region2: #{_lambda_.8} parent=0 // loop_pre_header
    _
  $region3: #{_lambda_.8} parent=0 // loop_header
    %s12 = sphi 0, %s16
    %p13 = scmp.ge.s32.totalorder %s12, 4
    %s22 = sphi 0, %s24
    %s25 = sphi 0, %s22
    %s26 = sphi 0, %s25
    %s42 = sphi 0, %s26
    %s46 = sphi 0, %s46
    %s48 = sphi 0, %s46
    %s49 = sphi 0, %s48
    %s63 = sphi 0, %s49
    %s67 = sphi 0, %s67
    %s69 = sphi 0, %s67
    %s70 = sphi 0, %s69
    %s84 = sphi 0, %s70
    %s88 = sphi 0, %s88
    %s90 = sphi 0, %s88
    %s91 = sphi 0, %s90
    %s105 = sphi 0, %s91
    %s109 = sphi 0, %s109
    %s111 = sphi 0, %s109
    %s112 = sphi 0, %s111
    %s126 = sphi 0, %s112
    %s132 = sphi 0, %s134
    %s135 = sphi 0, %s132
    %s136 = sphi 0, %s135
    %s152 = sphi 0, %s136
    %s158 = sphi 0, %s160
    %s161 = sphi 0, %s158
    %s162 = sphi 0, %s161
    %s178 = sphi 0, %s162
  $region4: #{_lambda_.8} parent=0 // loop_header_branch
    %15 = sbr.rel (%p13) target = $region8
  $region5: #{_lambda_.8} parent=0 // loop_body
    %s17 = ssub.s32 %s12, 1
    %s18 = ssub.s32 %s12, 2
    %s19 = sadd.s32 %s12, 1
    %s20 = ssub.s32 %s12, %s19
    %p21 = scmp.eq.s32.totalorder %s20, 0
    %s23 = sadd.s32 %s22, 1
    %s24 = scalar_select %p21, %s22, %s23
    %p27 = pneg %p21
    %p28 = scmp.eq.s32.totalorder %s12, 1
    %p29 = por %p27, %p28
    %p30 = scmp.ne.s32.totalorder %s22, %s25
    %p31 = scmp.eq.s32.totalorder %s12, 0
    %p32 = por %p30, %p31
    %p33 = scmp.ne.s32.totalorder %s22, %s25
    %p34 = scmp.eq.s32.totalorder %s17, 1
    %p35 = por %p33, %p34
    %p36 = scmp.ne.s32.totalorder %s25, %s26
    %p37 = scmp.eq.s32.totalorder %s17, 0
    %p38 = por %p36, %p37
    %p39 = scmp.ne.s32.totalorder %s25, %s26
    %p40 = scmp.eq.s32.totalorder %s18, 1
    %p41 = por %p39, %p40
    %p43 = scmp.ne.s32.totalorder %s26, %s42
    %p44 = scmp.eq.s32.totalorder %s18, 0
    %p45 = por %p43, %p44
    %s47 = sadd.s32 %s46, 1
    %p50 = scmp.eq.s32.totalorder %s12, 1
    %p51 = scmp.ne.s32.totalorder %s46, %s48
    %p52 = scmp.eq.s32.totalorder %s12, 0
    %p53 = por %p51, %p52
    %p54 = scmp.ne.s32.totalorder %s46, %s48
    %p55 = scmp.eq.s32.totalorder %s17, 1
    %p56 = por %p54, %p55
    %p57 = scmp.ne.s32.totalorder %s48, %s49
    %p58 = scmp.eq.s32.totalorder %s17, 0
    %p59 = por %p57, %p58
    %p60 = scmp.ne.s32.totalorder %s48, %s49
    %p61 = scmp.eq.s32.totalorder %s18, 1
    %p62 = por %p60, %p61
    %p64 = scmp.ne.s32.totalorder %s49, %s63
    %p65 = scmp.eq.s32.totalorder %s18, 0
    %p66 = por %p64, %p65
    %s68 = sadd.s32 %s67, 1
    %p71 = scmp.eq.s32.totalorder %s12, 1
    %p72 = scmp.ne.s32.totalorder %s67, %s69
    %p73 = scmp.eq.s32.totalorder %s12, 0
    %p74 = por %p72, %p73
    %p75 = scmp.ne.s32.totalorder %s67, %s69
    %p76 = scmp.eq.s32.totalorder %s17, 1
    %p77 = por %p75, %p76
    %p78 = scmp.ne.s32.totalorder %s69, %s70
    %p79 = scmp.eq.s32.totalorder %s17, 0
    %p80 = por %p78, %p79
    %p81 = scmp.ne.s32.totalorder %s69, %s70
    %p82 = scmp.eq.s32.totalorder %s18, 1
    %p83 = por %p81, %p82
    %p85 = scmp.ne.s32.totalorder %s70, %s84
    %p86 = scmp.eq.s32.totalorder %s18, 0
    %p87 = por %p85, %p86
    %s89 = sadd.s32 %s88, 1
    %p92 = scmp.eq.s32.totalorder %s12, 1
    %p93 = scmp.ne.s32.totalorder %s88, %s90
    %p94 = scmp.eq.s32.totalorder %s12, 0
    %p95 = por %p93, %p94
    %p96 = scmp.ne.s32.totalorder %s88, %s90
    %p97 = scmp.eq.s32.totalorder %s17, 1
    %p98 = por %p96, %p97
    %p99 = scmp.ne.s32.totalorder %s90, %s91
    %p100 = scmp.eq.s32.totalorder %s17, 0
    %p101 = por %p99, %p100
    %p102 = scmp.ne.s32.totalorder %s90, %s91
    %p103 = scmp.eq.s32.totalorder %s18, 1
    %p104 = por %p102, %p103
    %p106 = scmp.ne.s32.totalorder %s91, %s105
    %p107 = scmp.eq.s32.totalorder %s18, 0
    %p108 = por %p106, %p107
    %s110 = sadd.s32 %s109, 1
    %p113 = scmp.eq.s32.totalorder %s12, 1
    %p114 = scmp.ne.s32.totalorder %s109, %s111
    %p115 = scmp.eq.s32.totalorder %s12, 0
    %p116 = por %p114, %p115
    %p117 = scmp.ne.s32.totalorder %s109, %s111
    %p118 = scmp.eq.s32.totalorder %s17, 1
    %p119 = por %p117, %p118
    %p120 = scmp.ne.s32.totalorder %s111, %s112
    %p121 = scmp.eq.s32.totalorder %s17, 0
    %p122 = por %p120, %p121
    %p123 = scmp.ne.s32.totalorder %s111, %s112
    %p124 = scmp.eq.s32.totalorder %s18, 1
    %p125 = por %p123, %p124
    %p127 = scmp.ne.s32.totalorder %s112, %s126
    %p128 = scmp.eq.s32.totalorder %s18, 0
    %p129 = por %p127, %p128
    %s130 = ssub.s32 %s12, %s19
    %p131 = scmp.eq.s32.totalorder %s130, 0
    %s133 = sadd.s32 %s132, 1
    %s134 = scalar_select %p131, %s132, %s133
    %p137 = pneg %p131
    %p138 = scmp.eq.s32.totalorder %s12, 1
    %p139 = por %p137, %p138
    %p140 = scmp.ne.s32.totalorder %s132, %s135
    %p141 = scmp.eq.s32.totalorder %s12, 0
    %p142 = por %p140, %p141
    %p143 = scmp.ne.s32.totalorder %s132, %s135
    %p144 = scmp.eq.s32.totalorder %s17, 1
    %p145 = por %p143, %p144
    %p146 = scmp.ne.s32.totalorder %s135, %s136
    %p147 = scmp.eq.s32.totalorder %s17, 0
    %p148 = por %p146, %p147
    %p149 = scmp.ne.s32.totalorder %s135, %s136
    %p150 = scmp.eq.s32.totalorder %s18, 1
    %p151 = por %p149, %p150
    %p153 = scmp.ne.s32.totalorder %s136, %s152
    %p154 = scmp.eq.s32.totalorder %s18, 0
    %p155 = por %p153, %p154
    %s156 = ssub.s32 %s12, %s19
    %p157 = scmp.eq.s32.totalorder %s156, 0
    %s159 = sadd.s32 %s158, 1
    %s160 = scalar_select %p157, %s158, %s159
    %p163 = pneg %p157
    %p164 = scmp.eq.s32.totalorder %s12, 1
    %p165 = por %p163, %p164
    %p166 = scmp.ne.s32.totalorder %s158, %s161
    %p167 = scmp.eq.s32.totalorder %s12, 0
    %p168 = por %p166, %p167
    %p169 = scmp.ne.s32.totalorder %s158, %s161
    %p170 = scmp.eq.s32.totalorder %s17, 1
    %p171 = por %p169, %p170
    %p172 = scmp.ne.s32.totalorder %s161, %s162
    %p173 = scmp.eq.s32.totalorder %s17, 0
    %p174 = por %p172, %p173
    %p175 = scmp.ne.s32.totalorder %s161, %s162
    %p176 = scmp.eq.s32.totalorder %s18, 1
    %p177 = por %p175, %p176
    %p179 = scmp.ne.s32.totalorder %s162, %s178
    %p180 = scmp.eq.s32.totalorder %s18, 0
    %p181 = por %p179, %p180
    %p182 = scmp.le.s32.totalorder 1, %s12
    %p183 = scmp.lt.s32.totalorder %s12, 3
    %p184 = pnand %p182, %p183
    %p185 = pneg %p184
    // Predicated region
    $region9: #{_lambda_.8} parent=5 // pred_check
      _
    $region10: #{_lambda_.8} parent=5 // pred_check_branch
      %187 = sbr.rel (%p184) target = $region12
    $region11: #{_lambda_.8} parent=5 // pred_region
      %s188 = ssub.s32 %s12, 1
      // Predicated region
      $region13: #{_lambda_.8} parent=11 // pred_check
        %p189 = pneg %p59
      $region14: #{_lambda_.8} parent=11 // pred_check_branch
        %191 = sbr.rel (%p189) target = $region16
      $region15: #{_lambda_.8} parent=11 // pred_region
        _
      $region16: #{_lambda_.8} parent=11 // pred_fallthru
        _
      // Predicated region
      $region17: #{_lambda_.8} parent=11 // pred_check
        %p192 = pneg %p80
      $region18: #{_lambda_.8} parent=11 // pred_check_branch
        %194 = sbr.rel (%p192) target = $region20
      $region19: #{_lambda_.8} parent=11 // pred_region
        _
      $region20: #{_lambda_.8} parent=11 // pred_fallthru
        _
      // Predicated region
      $region21: #{_lambda_.8} parent=11 // pred_check
        %p195 = pneg %p101
      $region22: #{_lambda_.8} parent=11 // pred_check_branch
        %197 = sbr.rel (%p195) target = $region24
      $region23: #{_lambda_.8} parent=11 // pred_region
        _
      $region24: #{_lambda_.8} parent=11 // pred_fallthru
        _
      // Predicated region
      $region25: #{_lambda_.8} parent=11 // pred_check
        %p198 = pneg %p122
      $region26: #{_lambda_.8} parent=11 // pred_check_branch
        %200 = sbr.rel (%p198) target = $region28
      $region27: #{_lambda_.8} parent=11 // pred_region
        _
      $region28: #{_lambda_.8} parent=11 // pred_fallthru
        _
    $region12: #{_lambda_.8} parent=5 // pred_fallthru
      _
    %p201 = scmp.lt.s32.totalorder %s12, 2
    // Predicated region
    $region29: #{_lambda_.8} parent=5 // pred_check
      %p202 = pneg %p201
    $region30: #{_lambda_.8} parent=5 // pred_check_branch
      %204 = sbr.rel (%p202) target = $region32
    $region31: #{_lambda_.8} parent=5 // pred_region
      // Predicated region
      $region33: #{_lambda_.8} parent=31 // pred_check
        %p205 = pneg %p32
      $region34: #{_lambda_.8} parent=31 // pred_check_branch
        %207 = sbr.rel (%p205) target = $region36
      $region35: #{_lambda_.8} parent=31 // pred_region
        %s208 = smul.u32 2, %s12
        %p209 = scmp.lt.s32.totalorder %s208, 3
        %s210 = scalar_select %p209, %s208, 3
        %s211 = smul.addr %s210, 9
        %s212 = smul.addr %s211, 4
        %s213 = scalar_lea.vmem %s0, %s212
        %s214 = smul.u32 2, %s12
      $region36: #{_lambda_.8} parent=31 // pred_fallthru
        _
      // Predicated region
      $region37: #{_lambda_.8} parent=31 // pred_check
        %p215 = pneg %p142
      $region38: #{_lambda_.8} parent=31 // pred_check_branch
        %217 = sbr.rel (%p215) target = $region40
      $region39: #{_lambda_.8} parent=31 // pred_region
        %s218 = smul.u32 2, %s12
        %p219 = scmp.lt.s32.totalorder %s218, 3
        %s220 = scalar_select %p219, %s218, 3
        %s221 = smul.addr %s220, 8
        %s222 = scalar_lea.vmem %s5, %s221
        %s223 = smul.u32 2, %s12
      $region40: #{_lambda_.8} parent=31 // pred_fallthru
        _
    $region32: #{_lambda_.8} parent=5 // pred_fallthru
      _
    %p224 = scmp.le.s32.totalorder 1, %s12
    %p225 = scmp.lt.s32.totalorder %s12, 3
    %p226 = pnand %p224, %p225
    %p227 = pneg %p226
    // Predicated region
    $region41: #{_lambda_.8} parent=5 // pred_check
      _
    $region42: #{_lambda_.8} parent=5 // pred_check_branch
      %229 = sbr.rel (%p226) target = $region44
    $region43: #{_lambda_.8} parent=5 // pred_region
      %s230 = ssub.s32 %s12, 1
      %s231 = smul.u32 2, %s17
      %p232 = scmp.lt.s32.totalorder %s231, 3
      %s233 = scalar_select %p232, %s231, 3
      %s234 = smul.addr %s233, 9
      %s235 = smul.addr %s234, 4
      %s236 = scalar_lea.vmem %s0, %s235
      %p237 = pneg %p38
      %p238 = pneg %p35
      %p239 = pneg %p59
      %p240 = pneg %p56
      %p241 = pneg %p80
      %p242 = pneg %p77
      %p243 = pneg %p101
      %p244 = pneg %p98
      %p245 = pneg %p122
      %p246 = pneg %p119
      %s247 = smul.u32 2, %s17
      %p248 = scmp.lt.s32.totalorder %s247, 3
      %s249 = scalar_select %p248, %s247, 3
      %s250 = smul.addr %s249, 8
      %s251 = scalar_lea.vmem %s5, %s250
      %p252 = pneg %p148
      %p253 = pneg %p145
      %p254 = pneg %p174
      %p255 = pneg %p171
      %s256 = smul.u32 2, %s17
      %p257 = scmp.lt.s32.totalorder %s256, 3
      %s258 = scalar_select %p257, %s256, 3
      %s259 = smul.addr %s258, 8
      %s260 = scalar_lea.vmem %s6, %s259
      %s261 = smul.u32 2, %s17
      %p262 = scmp.lt.s32.totalorder %s261, 3
      %s263 = scalar_select %p262, %s261, 3
      %s264 = smul.addr %s263, 9
      %s265 = smul.addr %s264, 4
      %s266 = scalar_lea.vmem %s0, %s265
      %s267 = smul.u32 2, %s17
      %s268 = smul.u32 2, %s17
      %p269 = scmp.lt.s32.totalorder %s268, 3
      %s270 = scalar_select %p269, %s268, 3
      %s271 = smul.addr %s270, 8
      %s272 = scalar_lea.vmem %s5, %s271
      %s273 = smul.u32 2, %s17
      %s274 = smul.u32 2, %s17
      %p275 = scmp.lt.s32.totalorder %s274, 3
      %s276 = scalar_select %p275, %s274, 3
      %s277 = smul.addr %s276, 8
      %s278 = scalar_lea.vmem %s6, %s277
      %s279 = smul.u32 2, %s17
      %v281 = vld [vmem:[%s266] sm:$0xff]
      %v282 = vld [vmem:[%s266 + $0x8] sm:$0xff]
      %v283 = vld [vmem:[%s266 + $0x10] sm:$0xff]
      %v284 = vld [vmem:[%s266 + $0x18] sm:$0xff]
      %v285 = vld [vmem:[%s266 + $0x20] sm:$0xf]
      %v286 = vld [vmem:[%s266 + $0x24] sm:$0xff]
      %v287 = vld [vmem:[%s266 + $0x2c] sm:$0xff]
      %v288 = vld [vmem:[%s266 + $0x34] sm:$0xff]
      %v289 = vld [vmem:[%s266 + $0x3c] sm:$0xff]
      %v290 = vld [vmem:[%s266 + $0x44] sm:$0xf]
      %v291 = vld [vmem:[%s1] sm:$0xf]
      %v292 = vld [vmem:[%s1 + $0x4] sm:$0xf]
      %v293 = vld [vmem:[%s1 + $0x8] sm:$0xf]
      %v294 = vld [vmem:[%s1 + $0xc] sm:$0xf]
      %v295 = vld [vmem:[%s1 + $0x10] sm:$0xf]
      %v296 = vld [vmem:[%s1 + $0x14] sm:$0xf]
      %v297 = vld [vmem:[%s1 + $0x18] sm:$0xf]
      %v298 = vld [vmem:[%s1 + $0x1c] sm:$0xf]
      %v299 = vld [vmem:[%s1 + $0x20] sm:$0xf]
      %v300 = vld [vmem:[%s1 + $0x24] sm:$0xf]
      %v301 = vld [vmem:[%s1 + $0x28] sm:$0xf]
      %v302 = vld [vmem:[%s1 + $0x2c] sm:$0xf]
      %v303 = vld [vmem:[%s1 + $0x30] sm:$0xf]
      %v304 = vld [vmem:[%s1 + $0x34] sm:$0xf]
      %v305 = vld [vmem:[%s1 + $0x38] sm:$0xf]
      %v306 = vld [vmem:[%s1 + $0x3c] sm:$0xf]
      %v307 = vld [vmem:[%s1 + $0x40] sm:$0xf]
      %v308 = vld [vmem:[%s1 + $0x44] sm:$0xf]
      %v309 = vld [vmem:[%s1 + $0x48] sm:$0xf]
      %v310 = vld [vmem:[%s1 + $0x4c] sm:$0xf]
      %v311 = vld [vmem:[%s1 + $0x50] sm:$0xf]
      %v312 = vld [vmem:[%s1 + $0x54] sm:$0xf]
      %v313 = vld [vmem:[%s1 + $0x58] sm:$0xf]
      %v314 = vld [vmem:[%s1 + $0x5c] sm:$0xf]
      %v315 = vld [vmem:[%s1 + $0x60] sm:$0xf]
      %v316 = vld [vmem:[%s1 + $0x64] sm:$0xf]
      %v317 = vld [vmem:[%s1 + $0x68] sm:$0xf]
      %v318 = vld [vmem:[%s1 + $0x6c] sm:$0xf]
      %v319 = vld [vmem:[%s1 + $0x70] sm:$0xf]
      %v320 = vld [vmem:[%s1 + $0x74] sm:$0xf]
      %v321 = vld [vmem:[%s1 + $0x78] sm:$0xf]
      %v322 = vld [vmem:[%s1 + $0x7c] sm:$0xf]
      %v323 = vld [vmem:[%s1 + $0x80] sm:$0xf]
      %v324 = vld [vmem:[%s1 + $0x84] sm:$0xf]
      %v325 = vld [vmem:[%s1 + $0x88] sm:$0xf]
      %v326 = vld [vmem:[%s1 + $0x8c] sm:$0xf]
      %v327 = vld [vmem:[%s1 + $0x90] sm:$0xf]
      %v328 = vld [vmem:[%s1 + $0x94] sm:$0xf]
      %v329 = vld [vmem:[%s1 + $0x98] sm:$0xf]
      %v330 = vld [vmem:[%s1 + $0x9c] sm:$0xf]
      %v331 = vld [vmem:[%s1 + $0xa0] sm:$0xf]
      %v332 = vld [vmem:[%s1 + $0xa4] sm:$0xf]
      %v333 = vld [vmem:[%s1 + $0xa8] sm:$0xf]
      %v334 = vld [vmem:[%s1 + $0xac] sm:$0xf]
      %v335 = vld [vmem:[%s1 + $0xb0] sm:$0xf]
      %v336 = vld [vmem:[%s1 + $0xb4] sm:$0xf]
      %v337 = vld [vmem:[%s1 + $0xb8] sm:$0xf]
      %v338 = vld [vmem:[%s1 + $0xbc] sm:$0xf]
      %v339 = vld [vmem:[%s1 + $0xc0] sm:$0xf]
      %v340 = vld [vmem:[%s1 + $0xc4] sm:$0xf]
      %v341 = vld [vmem:[%s1 + $0xc8] sm:$0xf]
      %v342 = vld [vmem:[%s1 + $0xcc] sm:$0xf]
      %v343 = vld [vmem:[%s1 + $0xd0] sm:$0xf]
      %v344 = vld [vmem:[%s1 + $0xd4] sm:$0xf]
      %v345 = vld [vmem:[%s1 + $0xd8] sm:$0xf]
      %v346 = vld [vmem:[%s1 + $0xdc] sm:$0xf]
      %v347 = vld [vmem:[%s1 + $0xe0] sm:$0xf]
      %v348 = vld [vmem:[%s1 + $0xe4] sm:$0xf]
      %v349 = vld [vmem:[%s1 + $0xe8] sm:$0xf]
      %v350 = vld [vmem:[%s1 + $0xec] sm:$0xf]
      %v351 = vld [vmem:[%s1 + $0xf0] sm:$0xf]
      %v352 = vld [vmem:[%s1 + $0xf4] sm:$0xf]
      %v353 = vld [vmem:[%s1 + $0xf8] sm:$0xf]
      %v354 = vld [vmem:[%s1 + $0xfc] sm:$0xf]
      %v355 = vld [vmem:[%s1 + $0x100] sm:$0xf]
      %v356 = vld [vmem:[%s1 + $0x104] sm:$0xf]
      %v357 = vld [vmem:[%s1 + $0x108] sm:$0xf]
      %v358 = vld [vmem:[%s1 + $0x10c] sm:$0xf]
      %v359 = vld [vmem:[%s1 + $0x110] sm:$0xf]
      %v360 = vld [vmem:[%s1 + $0x114] sm:$0xf]
      %v361 = vld [vmem:[%s1 + $0x118] sm:$0xf]
      %v362 = vld [vmem:[%s1 + $0x11c] sm:$0xf]
      %v363 = vld [vmem:[%s1 + $0x120] sm:$0xf]
      %v364 = vld [vmem:[%s1 + $0x124] sm:$0xf]
      %v365 = vld [vmem:[%s1 + $0x128] sm:$0xf]
      %v366 = vld [vmem:[%s1 + $0x12c] sm:$0xf]
      %v367 = vld [vmem:[%s1 + $0x130] sm:$0xf]
      %v368 = vld [vmem:[%s1 + $0x134] sm:$0xf]
      %v369 = vld [vmem:[%s1 + $0x138] sm:$0xf]
      %v370 = vld [vmem:[%s1 + $0x13c] sm:$0xf]
      %v371 = vld [vmem:[%s1 + $0x140] sm:$0xf]
      %v372 = vld [vmem:[%s1 + $0x144] sm:$0xf]
      %v373 = vld [vmem:[%s1 + $0x148] sm:$0xf]
      %v374 = vld [vmem:[%s1 + $0x14c] sm:$0xf]
      %v375 = vld [vmem:[%s1 + $0x150] sm:$0xf]
      %v376 = vld [vmem:[%s1 + $0x154] sm:$0xf]
      %v377 = vld [vmem:[%s1 + $0x158] sm:$0xf]
      %v378 = vld [vmem:[%s1 + $0x15c] sm:$0xf]
      %v379 = vld [vmem:[%s1 + $0x160] sm:$0xf]
      %v380 = vld [vmem:[%s1 + $0x164] sm:$0xf]
      %v381 = vld [vmem:[%s1 + $0x168] sm:$0xf]
      %v382 = vld [vmem:[%s1 + $0x16c] sm:$0xf]
      %v383 = vld [vmem:[%s1 + $0x170] sm:$0xf]
      %v384 = vld [vmem:[%s1 + $0x174] sm:$0xf]
      %v385 = vld [vmem:[%s1 + $0x178] sm:$0xf]
      %v386 = vld [vmem:[%s1 + $0x17c] sm:$0xf]
      %v387 = vld [vmem:[%s1 + $0x180] sm:$0xf]
      %v388 = vld [vmem:[%s1 + $0x184] sm:$0xf]
      %v389 = vld [vmem:[%s1 + $0x188] sm:$0xf]
      %v390 = vld [vmem:[%s1 + $0x18c] sm:$0xf]
      %v391 = vld [vmem:[%s1 + $0x190] sm:$0xf]
      %v392 = vld [vmem:[%s1 + $0x194] sm:$0xf]
      %v393 = vld [vmem:[%s1 + $0x198] sm:$0xf]
      %v394 = vld [vmem:[%s1 + $0x19c] sm:$0xf]
      %v395 = vld [vmem:[%s1 + $0x1a0] sm:$0xf]
      %v396 = vld [vmem:[%s1 + $0x1a4] sm:$0xf]
      %v397 = vld [vmem:[%s1 + $0x1a8] sm:$0xf]
      %v398 = vld [vmem:[%s1 + $0x1ac] sm:$0xf]
      %v399 = vld [vmem:[%s1 + $0x1b0] sm:$0xf]
      %v400 = vld [vmem:[%s1 + $0x1b4] sm:$0xf]
      %v401 = vld [vmem:[%s1 + $0x1b8] sm:$0xf]
      %v402 = vld [vmem:[%s1 + $0x1bc] sm:$0xf]
      %v403 = vld [vmem:[%s1 + $0x1c0] sm:$0xf]
      %v404 = vld [vmem:[%s1 + $0x1c4] sm:$0xf]
      %v405 = vld [vmem:[%s1 + $0x1c8] sm:$0xf]
      %v406 = vld [vmem:[%s1 + $0x1cc] sm:$0xf]
      %v407 = vld [vmem:[%s1 + $0x1d0] sm:$0xf]
      %v408 = vld [vmem:[%s1 + $0x1d4] sm:$0xf]
      %v409 = vld [vmem:[%s1 + $0x1d8] sm:$0xf]
      %v410 = vld [vmem:[%s1 + $0x1dc] sm:$0xf]
      %v411 = vld [vmem:[%s1 + $0x1e0] sm:$0xf]
      %v412 = vld [vmem:[%s1 + $0x1e4] sm:$0xf]
      %v413 = vld [vmem:[%s1 + $0x1e8] sm:$0xf]
      %v414 = vld [vmem:[%s1 + $0x1ec] sm:$0xf]
      %v415 = vld [vmem:[%s1 + $0x1f0] sm:$0xf]
      %v416 = vld [vmem:[%s1 + $0x1f4] sm:$0xf]
      %v417 = vld [vmem:[%s1 + $0x1f8] sm:$0xf]
      %v418 = vld [vmem:[%s1 + $0x1fc] sm:$0xf]
      %v419 = vld [vmem:[%s1 + $0x200] sm:$0xf]
      %v420 = vld [vmem:[%s1 + $0x204] sm:$0xf]
      %v421 = vld [vmem:[%s1 + $0x208] sm:$0xf]
      %v422 = vld [vmem:[%s1 + $0x20c] sm:$0xf]
      %v423 = vld [vmem:[%s1 + $0x210] sm:$0xf]
      %v424 = vld [vmem:[%s1 + $0x214] sm:$0xf]
      %v425 = vld [vmem:[%s1 + $0x218] sm:$0xf]
      %v426 = vld [vmem:[%s1 + $0x21c] sm:$0xf]
      %v427 = vld [vmem:[%s1 + $0x220] sm:$0xf]
      %v428 = vld [vmem:[%s1 + $0x224] sm:$0xf]
      %v429 = vld [vmem:[%s1 + $0x228] sm:$0xf]
      %v430 = vld [vmem:[%s1 + $0x22c] sm:$0xf]
      %v431 = vld [vmem:[%s1 + $0x230] sm:$0xf]
      %v432 = vld [vmem:[%s1 + $0x234] sm:$0xf]
      %v433 = vld [vmem:[%s1 + $0x238] sm:$0xf]
      %v434 = vld [vmem:[%s1 + $0x23c] sm:$0xf]
      %v435 = vld [vmem:[%s2] sm:$0x1]
      %v437 = vlaneseq
      %v438 = vshrl.u32 %v437, 7
      %v439 = vsub.s32 0, %v438
      %v440 = vrot.slane %v435, %v439
      %v452 = vunpack.c.l.b16 %v281
      %v453 = vunpack.c.h.b16 %v281
      %v454 = vunpack.c.l.b16 %v282
      %v455 = vunpack.c.h.b16 %v282
      %v456 = vunpack.c.l.b16 %v283
      %v457 = vunpack.c.h.b16 %v283
      %v458 = vunpack.c.l.b16 %v284
      %v459 = vunpack.c.h.b16 %v284
      %v460 = vunpack.c.l.b16 %v285
      %v461 = vunpack.c.l.b16 %v286
      %v462 = vunpack.c.h.b16 %v286
      %v463 = vunpack.c.l.b16 %v287
      %v464 = vunpack.c.h.b16 %v287
      %v465 = vunpack.c.l.b16 %v288
      %v466 = vunpack.c.h.b16 %v288
      %v467 = vunpack.c.l.b16 %v289
      %v468 = vunpack.c.h.b16 %v289
      %v469 = vunpack.c.l.b16 %v290
      %v470 = vpack.c.b16 %v461, %v452
      %v471 = vpack.c.b16 %v462, %v453
      %v472 = vpack.c.b16 %v463, %v454
      %v473 = vpack.c.b16 %v464, %v455
      %v474 = vpack.c.b16 %v465, %v456
      %v475 = vpack.c.b16 %v466, %v457
      %v476 = vpack.c.b16 %v467, %v458
      %v477 = vpack.c.b16 %v468, %v459
      %v478 = vpack.c.b16 %v469, %v460
      %v632 = vunpack.c.l.b16 %v291
      %v633 = vunpack.c.l.b16 %v292
      %v634 = vunpack.c.l.b16 %v293
      %v635 = vunpack.c.l.b16 %v294
      %v636 = vunpack.c.l.b16 %v295
      %v637 = vunpack.c.l.b16 %v296
      %v638 = vunpack.c.l.b16 %v297
      %v639 = vunpack.c.l.b16 %v298
      %v640 = vunpack.c.l.b16 %v299
      %v641 = vunpack.c.l.b16 %v300
      %v642 = vunpack.c.l.b16 %v301
      %v643 = vunpack.c.l.b16 %v302
      %v644 = vunpack.c.l.b16 %v303
      %v645 = vunpack.c.l.b16 %v304
      %v646 = vunpack.c.l.b16 %v305
      %v647 = vunpack.c.l.b16 %v306
      %v648 = vunpack.c.l.b16 %v307
      %v649 = vunpack.c.l.b16 %v308
      %v650 = vunpack.c.l.b16 %v309
      %v651 = vunpack.c.l.b16 %v310
      %v652 = vunpack.c.l.b16 %v311
      %v653 = vunpack.c.l.b16 %v312
      %v654 = vunpack.c.l.b16 %v313
      %v655 = vunpack.c.l.b16 %v314
      %v656 = vunpack.c.l.b16 %v315
      %v657 = vunpack.c.l.b16 %v316
      %v658 = vunpack.c.l.b16 %v317
      %v659 = vunpack.c.l.b16 %v318
      %v660 = vunpack.c.l.b16 %v319
      %v661 = vunpack.c.l.b16 %v320
      %v662 = vunpack.c.l.b16 %v321
      %v663 = vunpack.c.l.b16 %v322
      %v664 = vunpack.c.l.b16 %v323
      %v665 = vunpack.c.l.b16 %v324
      %v666 = vunpack.c.l.b16 %v325
      %v667 = vunpack.c.l.b16 %v326
      %v668 = vunpack.c.l.b16 %v327
      %v669 = vunpack.c.l.b16 %v328
      %v670 = vunpack.c.l.b16 %v329
      %v671 = vunpack.c.l.b16 %v330
      %v672 = vunpack.c.l.b16 %v331
      %v673 = vunpack.c.l.b16 %v332
      %v674 = vunpack.c.l.b16 %v333
      %v675 = vunpack.c.l.b16 %v334
      %v676 = vunpack.c.l.b16 %v335
      %v677 = vunpack.c.l.b16 %v336
      %v678 = vunpack.c.l.b16 %v337
      %v679 = vunpack.c.l.b16 %v338
      %v680 = vunpack.c.l.b16 %v339
      %v681 = vunpack.c.l.b16 %v340
      %v682 = vunpack.c.l.b16 %v341
      %v683 = vunpack.c.l.b16 %v342
      %v684 = vunpack.c.l.b16 %v343
      %v685 = vunpack.c.l.b16 %v344
      %v686 = vunpack.c.l.b16 %v345
      %v687 = vunpack.c.l.b16 %v346
      %v688 = vunpack.c.l.b16 %v347
      %v689 = vunpack.c.l.b16 %v348
      %v690 = vunpack.c.l.b16 %v349
      %v691 = vunpack.c.l.b16 %v350
      %v692 = vunpack.c.l.b16 %v351
      %v693 = vunpack.c.l.b16 %v352
      %v694 = vunpack.c.l.b16 %v353
      %v695 = vunpack.c.l.b16 %v354
      %v696 = vunpack.c.l.b16 %v355
      %v697 = vunpack.c.l.b16 %v356
      %v698 = vunpack.c.l.b16 %v357
      %v699 = vunpack.c.l.b16 %v358
      %v700 = vunpack.c.l.b16 %v359
      %v701 = vunpack.c.l.b16 %v360
      %v702 = vunpack.c.l.b16 %v361
      %v703 = vunpack.c.l.b16 %v362
      %v704 = vunpack.c.l.b16 %v363
      %v705 = vunpack.c.l.b16 %v364
      %v706 = vunpack.c.l.b16 %v365
      %v707 = vunpack.c.l.b16 %v366
      %v708 = vunpack.c.l.b16 %v367
      %v709 = vunpack.c.l.b16 %v368
      %v710 = vunpack.c.l.b16 %v369
      %v711 = vunpack.c.l.b16 %v370
      %v712 = vunpack.c.l.b16 %v371
      %v713 = vunpack.c.l.b16 %v372
      %v714 = vunpack.c.l.b16 %v373
      %v715 = vunpack.c.l.b16 %v374
      %v716 = vunpack.c.l.b16 %v375
      %v717 = vunpack.c.l.b16 %v376
      %v718 = vunpack.c.l.b16 %v377
      %v719 = vunpack.c.l.b16 %v378
      %v720 = vunpack.c.l.b16 %v379
      %v721 = vunpack.c.l.b16 %v380
      %v722 = vunpack.c.l.b16 %v381
      %v723 = vunpack.c.l.b16 %v382
      %v724 = vunpack.c.l.b16 %v383
      %v725 = vunpack.c.l.b16 %v384
      %v726 = vunpack.c.l.b16 %v385
      %v727 = vunpack.c.l.b16 %v386
      %v728 = vunpack.c.l.b16 %v387
      %v729 = vunpack.c.l.b16 %v388
      %v730 = vunpack.c.l.b16 %v389
      %v731 = vunpack.c.l.b16 %v390
      %v732 = vunpack.c.l.b16 %v391
      %v733 = vunpack.c.l.b16 %v392
      %v734 = vunpack.c.l.b16 %v393
      %v735 = vunpack.c.l.b16 %v394
      %v736 = vunpack.c.l.b16 %v395
      %v737 = vunpack.c.l.b16 %v396
      %v738 = vunpack.c.l.b16 %v397
      %v739 = vunpack.c.l.b16 %v398
      %v740 = vunpack.c.l.b16 %v399
      %v741 = vunpack.c.l.b16 %v400
      %v742 = vunpack.c.l.b16 %v401
      %v743 = vunpack.c.l.b16 %v402
      %v744 = vunpack.c.l.b16 %v403
      %v745 = vunpack.c.l.b16 %v404
      %v746 = vunpack.c.l.b16 %v405
      %v747 = vunpack.c.l.b16 %v406
      %v748 = vunpack.c.l.b16 %v407
      %v749 = vunpack.c.l.b16 %v408
      %v750 = vunpack.c.l.b16 %v409
      %v751 = vunpack.c.l.b16 %v410
      %v752 = vunpack.c.l.b16 %v411
      %v753 = vunpack.c.l.b16 %v412
      %v754 = vunpack.c.l.b16 %v413
      %v755 = vunpack.c.l.b16 %v414
      %v756 = vunpack.c.l.b16 %v415
      %v757 = vunpack.c.l.b16 %v416
      %v758 = vunpack.c.l.b16 %v417
      %v759 = vunpack.c.l.b16 %v418
      %v760 = vunpack.c.l.b16 %v419
      %v761 = vunpack.c.l.b16 %v420
      %v762 = vunpack.c.l.b16 %v421
      %v763 = vunpack.c.l.b16 %v422
      %v764 = vunpack.c.l.b16 %v423
      %v765 = vunpack.c.l.b16 %v424
      %v766 = vunpack.c.l.b16 %v425
      %v767 = vunpack.c.l.b16 %v426
      %v768 = vunpack.c.l.b16 %v427
      %v769 = vunpack.c.l.b16 %v428
      %v770 = vunpack.c.l.b16 %v429
      %v771 = vunpack.c.l.b16 %v430
      %v772 = vunpack.c.l.b16 %v431
      %v773 = vunpack.c.l.b16 %v432
      %v774 = vunpack.c.l.b16 %v433
      %v775 = vunpack.c.l.b16 %v434
      %v776 = vpack.c.b16 %v633, %v632
      %v777 = vpack.c.b16 %v635, %v634
      %v778 = vpack.c.b16 %v637, %v636
      %v779 = vpack.c.b16 %v639, %v638
      %v780 = vpack.c.b16 %v641, %v640
      %v781 = vpack.c.b16 %v643, %v642
      %v782 = vpack.c.b16 %v645, %v644
      %v783 = vpack.c.b16 %v647, %v646
      %v784 = vpack.c.b16 %v649, %v648
      %v785 = vpack.c.b16 %v651, %v650
      %v786 = vpack.c.b16 %v653, %v652
      %v787 = vpack.c.b16 %v655, %v654
      %v788 = vpack.c.b16 %v657, %v656
      %v789 = vpack.c.b16 %v659, %v658
      %v790 = vpack.c.b16 %v661, %v660
      %v791 = vpack.c.b16 %v663, %v662
      %v792 = vpack.c.b16 %v665, %v664
      %v793 = vpack.c.b16 %v667, %v666
      %v794 = vpack.c.b16 %v669, %v668
      %v795 = vpack.c.b16 %v671, %v670
      %v796 = vpack.c.b16 %v673, %v672
      %v797 = vpack.c.b16 %v675, %v674
      %v798 = vpack.c.b16 %v677, %v676
      %v799 = vpack.c.b16 %v679, %v678
      %v800 = vpack.c.b16 %v681, %v680
      %v801 = vpack.c.b16 %v683, %v682
      %v802 = vpack.c.b16 %v685, %v684
      %v803 = vpack.c.b16 %v687, %v686
      %v804 = vpack.c.b16 %v689, %v688
      %v805 = vpack.c.b16 %v691, %v690
      %v806 = vpack.c.b16 %v693, %v692
      %v807 = vpack.c.b16 %v695, %v694
      %v808 = vpack.c.b16 %v697, %v696
      %v809 = vpack.c.b16 %v699, %v698
      %v810 = vpack.c.b16 %v701, %v700
      %v811 = vpack.c.b16 %v703, %v702
      %v812 = vpack.c.b16 %v705, %v704
      %v813 = vpack.c.b16 %v707, %v706
      %v814 = vpack.c.b16 %v709, %v708
      %v815 = vpack.c.b16 %v711, %v710
      %v816 = vpack.c.b16 %v713, %v712
      %v817 = vpack.c.b16 %v715, %v714
      %v818 = vpack.c.b16 %v717, %v716
      %v819 = vpack.c.b16 %v719, %v718
      %v820 = vpack.c.b16 %v721, %v720
      %v821 = vpack.c.b16 %v723, %v722
      %v822 = vpack.c.b16 %v725, %v724
      %v823 = vpack.c.b16 %v727, %v726
      %v824 = vpack.c.b16 %v729, %v728
      %v825 = vpack.c.b16 %v731, %v730
      %v826 = vpack.c.b16 %v733, %v732
      %v827 = vpack.c.b16 %v735, %v734
      %v828 = vpack.c.b16 %v737, %v736
      %v829 = vpack.c.b16 %v739, %v738
      %v830 = vpack.c.b16 %v741, %v740
      %v831 = vpack.c.b16 %v743, %v742
      %v832 = vpack.c.b16 %v745, %v744
      %v833 = vpack.c.b16 %v747, %v746
      %v834 = vpack.c.b16 %v749, %v748
      %v835 = vpack.c.b16 %v751, %v750
      %v836 = vpack.c.b16 %v753, %v752
      %v837 = vpack.c.b16 %v755, %v754
      %v838 = vpack.c.b16 %v757, %v756
      %v839 = vpack.c.b16 %v759, %v758
      %v840 = vpack.c.b16 %v761, %v760
      %v841 = vpack.c.b16 %v763, %v762
      %v842 = vpack.c.b16 %v765, %v764
      %v843 = vpack.c.b16 %v767, %v766
      %v844 = vpack.c.b16 %v769, %v768
      %v845 = vpack.c.b16 %v771, %v770
      %v846 = vpack.c.b16 %v773, %v772
      %v847 = vpack.c.b16 %v775, %v774
      %920 = vmatprep.subr.bf16.mxu0 0
      %921 = vmatpush1.bf16.msra.mxu0 %v776
      %922 = vmatprep.subr.bf16.mxu0 0
      %923 = vmatpush1.bf16.msra.mxu0 %v777
      %924 = vmatprep.subr.bf16.mxu0 0
      %925 = vmatpush1.bf16.msra.mxu0 %v778
      %926 = vmatprep.subr.bf16.mxu0 0
      %927 = vmatpush1.bf16.msra.mxu0 %v779
      %928 = vmatprep.subr.bf16.mxu0 0
      %929 = vmatpush1.bf16.msra.mxu0 %v780
      %930 = vmatprep.subr.bf16.mxu0 0
      %931 = vmatpush1.bf16.msra.mxu0 %v781
      %932 = vmatprep.subr.bf16.mxu0 0
      %933 = vmatpush1.bf16.msra.mxu0 %v782
      %934 = vmatprep.subr.bf16.mxu0 0
      %935 = vmatpush1.bf16.msra.mxu0 %v783
      %936 = vmatprep.subr.bf16.mxu0 0
      %937 = vmatpush1.bf16.msra.mxu0 %v784
      %938 = vmatprep.subr.bf16.mxu0 0
      %939 = vmatpush1.bf16.msra.mxu0 %v785
      %940 = vmatprep.subr.bf16.mxu0 0
      %941 = vmatpush1.bf16.msra.mxu0 %v786
      %942 = vmatprep.subr.bf16.mxu0 0
      %943 = vmatpush1.bf16.msra.mxu0 %v787
      %944 = vmatprep.subr.bf16.mxu0 0
      %945 = vmatpush1.bf16.msra.mxu0 %v788
      %946 = vmatprep.subr.bf16.mxu0 0
      %947 = vmatpush1.bf16.msra.mxu0 %v789
      %948 = vmatprep.subr.bf16.mxu0 0
      %949 = vmatpush1.bf16.msra.mxu0 %v790
      %950 = vmatprep.subr.bf16.mxu0 0
      %951 = vmatpush1.bf16.msra.mxu0 %v791
      %952 = vmatprep.mubr.bf16.mxu0 %v471
      %953 = vmatmul.mubr.bf16.gmra.mrb[0].mxu0 %v470
      %v954 = vpop.f32.mrb[0].mxu0
      %v955 = vadd.f32 %v440, %v954
      %v956 = vpop.f32.mrb[0].mxu0
      %v957 = vpop.f32.mrb[0].mxu0
      %v958 = vadd.f32 %v440, %v957
      %v959 = vpop.f32.mrb[0].mxu0
      %960 = vdwg.mxu0
      %961 = vmatprep.subr.bf16.mxu0 0
      %962 = vmatpush1.bf16.msra.mxu0 %v792
      %963 = vmatprep.subr.bf16.mxu0 0
      %964 = vmatpush1.bf16.msra.mxu0 %v793
      %965 = vmatprep.subr.bf16.mxu0 0
      %966 = vmatpush1.bf16.msra.mxu0 %v794
      %967 = vmatprep.subr.bf16.mxu0 0
      %968 = vmatpush1.bf16.msra.mxu0 %v795
      %969 = vmatprep.subr.bf16.mxu0 0
      %970 = vmatpush1.bf16.msra.mxu0 %v796
      %971 = vmatprep.subr.bf16.mxu0 0
      %972 = vmatpush1.bf16.msra.mxu0 %v797
      %973 = vmatprep.subr.bf16.mxu0 0
      %974 = vmatpush1.bf16.msra.mxu0 %v798
      %975 = vmatprep.subr.bf16.mxu0 0
      %976 = vmatpush1.bf16.msra.mxu0 %v799
      %977 = vmatprep.subr.bf16.mxu0 0
      %978 = vmatpush1.bf16.msra.mxu0 %v800
      %979 = vmatprep.subr.bf16.mxu0 0
      %980 = vmatpush1.bf16.msra.mxu0 %v801
      %981 = vmatprep.subr.bf16.mxu0 0
      %982 = vmatpush1.bf16.msra.mxu0 %v802
      %983 = vmatprep.subr.bf16.mxu0 0
      %984 = vmatpush1.bf16.msra.mxu0 %v803
      %985 = vmatprep.subr.bf16.mxu0 0
      %986 = vmatpush1.bf16.msra.mxu0 %v804
      %987 = vmatprep.subr.bf16.mxu0 0
      %988 = vmatpush1.bf16.msra.mxu0 %v805
      %989 = vmatprep.subr.bf16.mxu0 0
      %990 = vmatpush1.bf16.msra.mxu0 %v806
      %991 = vmatprep.subr.bf16.mxu0 0
      %992 = vmatpush1.bf16.msra.mxu0 %v807
      %993 = vmatprep.mubr.bf16.mxu0 %v473
      %994 = vmatmul.mubr.bf16.gmra.mrb[0].mxu0 %v472
      %v995 = vpop.f32.mrb[0].mxu0
      %v996 = vadd.f32 %v955, %v995
      %v997 = vpop.f32.mrb[0].mxu0
      %v998 = vpop.f32.mrb[0].mxu0
      %v999 = vadd.f32 %v958, %v998
      %v1000 = vpop.f32.mrb[0].mxu0
      %1001 = vdwg.mxu0
      %1002 = vmatprep.subr.bf16.mxu0 0
      %1003 = vmatpush1.bf16.msra.mxu0 %v808
      %1004 = vmatprep.subr.bf16.mxu0 0
      %1005 = vmatpush1.bf16.msra.mxu0 %v809
      %1006 = vmatprep.subr.bf16.mxu0 0
      %1007 = vmatpush1.bf16.msra.mxu0 %v810
      %1008 = vmatprep.subr.bf16.mxu0 0
      %1009 = vmatpush1.bf16.msra.mxu0 %v811
      %1010 = vmatprep.subr.bf16.mxu0 0
      %1011 = vmatpush1.bf16.msra.mxu0 %v812
      %1012 = vmatprep.subr.bf16.mxu0 0
      %1013 = vmatpush1.bf16.msra.mxu0 %v813
      %1014 = vmatprep.subr.bf16.mxu0 0
      %1015 = vmatpush1.bf16.msra.mxu0 %v814
      %1016 = vmatprep.subr.bf16.mxu0 0
      %1017 = vmatpush1.bf16.msra.mxu0 %v815
      %1018 = vmatprep.subr.bf16.mxu0 0
      %1019 = vmatpush1.bf16.msra.mxu0 %v816
      %1020 = vmatprep.subr.bf16.mxu0 0
      %1021 = vmatpush1.bf16.msra.mxu0 %v817
      %1022 = vmatprep.subr.bf16.mxu0 0
      %1023 = vmatpush1.bf16.msra.mxu0 %v818
      %1024 = vmatprep.subr.bf16.mxu0 0
      %1025 = vmatpush1.bf16.msra.mxu0 %v819
      %1026 = vmatprep.subr.bf16.mxu0 0
      %1027 = vmatpush1.bf16.msra.mxu0 %v820
      %1028 = vmatprep.subr.bf16.mxu0 0
      %1029 = vmatpush1.bf16.msra.mxu0 %v821
      %1030 = vmatprep.subr.bf16.mxu0 0
      %1031 = vmatpush1.bf16.msra.mxu0 %v822
      %1032 = vmatprep.subr.bf16.mxu0 0
      %1033 = vmatpush1.bf16.msra.mxu0 %v823
      %1034 = vmatprep.mubr.bf16.mxu0 %v475
      %1035 = vmatmul.mubr.bf16.gmra.mrb[0].mxu0 %v474
      %v1036 = vpop.f32.mrb[0].mxu0
      %v1037 = vadd.f32 %v996, %v1036
      %v1038 = vpop.f32.mrb[0].mxu0
      %v1039 = vpop.f32.mrb[0].mxu0
      %v1040 = vadd.f32 %v999, %v1039
      %v1041 = vpop.f32.mrb[0].mxu0
      %1042 = vdwg.mxu0
      %1043 = vmatprep.subr.bf16.mxu0 0
      %1044 = vmatpush1.bf16.msra.mxu0 %v824
      %1045 = vmatprep.subr.bf16.mxu0 0
      %1046 = vmatpush1.bf16.msra.mxu0 %v825
      %1047 = vmatprep.subr.bf16.mxu0 0
      %1048 = vmatpush1.bf16.msra.mxu0 %v826
      %1049 = vmatprep.subr.bf16.mxu0 0
      %1050 = vmatpush1.bf16.msra.mxu0 %v827
      %1051 = vmatprep.subr.bf16.mxu0 0
      %1052 = vmatpush1.bf16.msra.mxu0 %v828
      %1053 = vmatprep.subr.bf16.mxu0 0
      %1054 = vmatpush1.bf16.msra.mxu0 %v829
      %1055 = vmatprep.subr.bf16.mxu0 0
      %1056 = vmatpush1.bf16.msra.mxu0 %v830
      %1057 = vmatprep.subr.bf16.mxu0 0
      %1058 = vmatpush1.bf16.msra.mxu0 %v831
      %1059 = vmatprep.subr.bf16.mxu0 0
      %1060 = vmatpush1.bf16.msra.mxu0 %v832
      %1061 = vmatprep.subr.bf16.mxu0 0
      %1062 = vmatpush1.bf16.msra.mxu0 %v833
      %1063 = vmatprep.subr.bf16.mxu0 0
      %1064 = vmatpush1.bf16.msra.mxu0 %v834
      %1065 = vmatprep.subr.bf16.mxu0 0
      %1066 = vmatpush1.bf16.msra.mxu0 %v835
      %1067 = vmatprep.subr.bf16.mxu0 0
      %1068 = vmatpush1.bf16.msra.mxu0 %v836
      %1069 = vmatprep.subr.bf16.mxu0 0
      %1070 = vmatpush1.bf16.msra.mxu0 %v837
      %1071 = vmatprep.subr.bf16.mxu0 0
      %1072 = vmatpush1.bf16.msra.mxu0 %v838
      %1073 = vmatprep.subr.bf16.mxu0 0
      %1074 = vmatpush1.bf16.msra.mxu0 %v839
      %1075 = vmatprep.mubr.bf16.mxu0 %v477
      %1076 = vmatmul.mubr.bf16.gmra.mrb[0].mxu0 %v476
      %v1077 = vpop.f32.mrb[0].mxu0
      %v1078 = vadd.f32 %v1037, %v1077
      %v1079 = vpop.f32.mrb[0].mxu0
      %v1080 = vpop.f32.mrb[0].mxu0
      %v1081 = vadd.f32 %v1040, %v1080
      %v1082 = vpop.f32.mrb[0].mxu0
      %1083 = vdwg.mxu0
      %1084 = vmatprep.subr.bf16.mxu0 0
      %1085 = vmatpush1.bf16.msra.mxu0 %v840
      %1086 = vmatprep.subr.bf16.mxu0 0
      %1087 = vmatpush1.bf16.msra.mxu0 %v841
      %1088 = vmatprep.subr.bf16.mxu0 0
      %1089 = vmatpush1.bf16.msra.mxu0 %v842
      %1090 = vmatprep.subr.bf16.mxu0 0
      %1091 = vmatpush1.bf16.msra.mxu0 %v843
      %1092 = vmatprep.subr.bf16.mxu0 0
      %1093 = vmatpush1.bf16.msra.mxu0 %v844
      %1094 = vmatprep.subr.bf16.mxu0 0
      %1095 = vmatpush1.bf16.msra.mxu0 %v845
      %1096 = vmatprep.subr.bf16.mxu0 0
      %1097 = vmatpush1.bf16.msra.mxu0 %v846
      %1098 = vmatprep.subr.bf16.mxu0 0
      %1099 = vmatpush1.bf16.msra.mxu0 %v847
      %1100 = vmatprep.subr.bf16.mxu0 0
      %1101 = vmatpush1.bf16.msra.mxu0 0
      %1102 = vmatprep.subr.bf16.mxu0 0
      %1103 = vmatpush1.bf16.msra.mxu0 0
      %1104 = vmatprep.subr.bf16.mxu0 0
      %1105 = vmatpush1.bf16.msra.mxu0 0
      %1106 = vmatprep.subr.bf16.mxu0 0
      %1107 = vmatpush1.bf16.msra.mxu0 0
      %1108 = vmatprep.subr.bf16.mxu0 0
      %1109 = vmatpush1.bf16.msra.mxu0 0
      %1110 = vmatprep.subr.bf16.mxu0 0
      %1111 = vmatpush1.bf16.msra.mxu0 0
      %1112 = vmatprep.subr.bf16.mxu0 0
      %1113 = vmatpush1.bf16.msra.mxu0 0
      %1114 = vmatprep.subr.bf16.mxu0 0
      %1115 = vmatpush1.bf16.msra.mxu0 0
      %1116 = vmatprep.mubr.bf16.mxu0 0
      %1117 = vmatmul.mubr.bf16.gmra.mrb[0].mxu0 %v478
      %v1118 = vpop.f32.mrb[0].mxu0
      %v1119 = vadd.f32 %v1078, %v1118
      %v1120 = vpop.f32.mrb[0].mxu0
      %v1121 = vpop.f32.mrb[0].mxu0
      %v1122 = vadd.f32 %v1081, %v1121
      %v1123 = vpop.f32.mrb[0].mxu0
      %1124 = vdwg.mxu0
      %v1125 = vmax.f32 %v1119, 0.0
      %v1126 = vmax.f32 %v1122, 0.0
      %v1127 = vpack.c.bf16 %v1126, %v1125
      %v1128 = vld [vmem:[%s3] sm:$0xf]
      %v1129 = vld [vmem:[%s3 + $0x4] sm:$0xf]
      %v1130 = vld [vmem:[%s3 + $0x8] sm:$0xf]
      %v1131 = vld [vmem:[%s3 + $0xc] sm:$0xf]
      %v1132 = vld [vmem:[%s3 + $0x10] sm:$0xf]
      %v1133 = vld [vmem:[%s3 + $0x14] sm:$0xf]
      %v1134 = vld [vmem:[%s3 + $0x18] sm:$0xf]
      %v1135 = vld [vmem:[%s3 + $0x1c] sm:$0xf]
      %v1136 = vld [vmem:[%s3 + $0x20] sm:$0xf]
      %v1137 = vld [vmem:[%s3 + $0x24] sm:$0xf]
      %v1138 = vld [vmem:[%s3 + $0x28] sm:$0xf]
      %v1139 = vld [vmem:[%s3 + $0x2c] sm:$0xf]
      %v1140 = vld [vmem:[%s3 + $0x30] sm:$0xf]
      %v1141 = vld [vmem:[%s3 + $0x34] sm:$0xf]
      %v1142 = vld [vmem:[%s3 + $0x38] sm:$0xf]
      %v1143 = vld [vmem:[%s3 + $0x3c] sm:$0xf]
      %v1144 = vld [vmem:[%s4] sm:$0x1]
      %v1146 = vlaneseq
      %v1147 = vshrl.u32 %v1146, 7
      %v1148 = vsub.s32 0, %v1147
      %v1149 = vrot.slane %v1144, %v1148
      %v1167 = vunpack.c.l.b16 %v1128
      %v1168 = vunpack.c.l.b16 %v1129
      %v1169 = vunpack.c.l.b16 %v1130
      %v1170 = vunpack.c.l.b16 %v1131
      %v1171 = vunpack.c.l.b16 %v1132
      %v1172 = vunpack.c.l.b16 %v1133
      %v1173 = vunpack.c.l.b16 %v1134
      %v1174 = vunpack.c.l.b16 %v1135
      %v1175 = vunpack.c.l.b16 %v1136
      %v1176 = vunpack.c.l.b16 %v1137
      %v1177 = vunpack.c.l.b16 %v1138
      %v1178 = vunpack.c.l.b16 %v1139
      %v1179 = vunpack.c.l.b16 %v1140
      %v1180 = vunpack.c.l.b16 %v1141
      %v1181 = vunpack.c.l.b16 %v1142
      %v1182 = vunpack.c.l.b16 %v1143
      %v1183 = vpack.c.b16 %v1168, %v1167
      %v1184 = vpack.c.b16 %v1170, %v1169
      %v1185 = vpack.c.b16 %v1172, %v1171
      %v1186 = vpack.c.b16 %v1174, %v1173
      %v1187 = vpack.c.b16 %v1176, %v1175
      %v1188 = vpack.c.b16 %v1178, %v1177
      %v1189 = vpack.c.b16 %v1180, %v1179
      %v1190 = vpack.c.b16 %v1182, %v1181
      %1199 = vmatprep.subr.bf16.mxu0 0
      %1200 = vmatpush1.bf16.msra.mxu0 %v1183
      %1201 = vmatprep.subr.bf16.mxu0 0
      %1202 = vmatpush1.bf16.msra.mxu0 %v1184
      %1203 = vmatprep.subr.bf16.mxu0 0
      %1204 = vmatpush1.bf16.msra.mxu0 %v1185
      %1205 = vmatprep.subr.bf16.mxu0 0
      %1206 = vmatpush1.bf16.msra.mxu0 %v1186
      %1207 = vmatprep.subr.bf16.mxu0 0
      %1208 = vmatpush1.bf16.msra.mxu0 %v1187
      %1209 = vmatprep.subr.bf16.mxu0 0
      %1210 = vmatpush1.bf16.msra.mxu0 %v1188
      %1211 = vmatprep.subr.bf16.mxu0 0
      %1212 = vmatpush1.bf16.msra.mxu0 %v1189
      %1213 = vmatprep.subr.bf16.mxu0 0
      %1214 = vmatpush1.bf16.msra.mxu0 %v1190
      %1215 = vmatprep.subr.bf16.mxu0 0
      %1216 = vmatpush1.bf16.msra.mxu0 0
      %1217 = vmatprep.subr.bf16.mxu0 0
      %1218 = vmatpush1.bf16.msra.mxu0 0
      %1219 = vmatprep.subr.bf16.mxu0 0
      %1220 = vmatpush1.bf16.msra.mxu0 0
      %1221 = vmatprep.subr.bf16.mxu0 0
      %1222 = vmatpush1.bf16.msra.mxu0 0
      %1223 = vmatprep.subr.bf16.mxu0 0
      %1224 = vmatpush1.bf16.msra.mxu0 0
      %1225 = vmatprep.subr.bf16.mxu0 0
      %1226 = vmatpush1.bf16.msra.mxu0 0
      %1227 = vmatprep.subr.bf16.mxu0 0
      %1228 = vmatpush1.bf16.msra.mxu0 0
      %1229 = vmatprep.subr.bf16.mxu0 0
      %1230 = vmatpush1.bf16.msra.mxu0 0
      %1231 = vmatprep.mubr.bf16.mxu0 0
      %1232 = vmatmul.mubr.bf16.gmra.mrb[0].mxu0 %v1127
      %v1233 = vpop.f32.mrb[0].mxu0
      %v1234 = vadd.f32 %v1149, %v1233
      %v1235 = vpop.f32.mrb[0].mxu0
      %v1236 = vpop.f32.mrb[0].mxu0
      %v1237 = vadd.f32 %v1149, %v1236
      %v1238 = vpop.f32.mrb[0].mxu0
      %1239 = vdwg.mxu0
      %v1240 = vld [vmem:[%s272] sm:$0xff]
      %v1241 = vld [vmem:[%s272 + $0x8] sm:$0xff]
      %v1242 = vadd.f32 %v1234, %v1240
      %v1243 = vadd.f32 %v1237, %v1241
      %1244 = vst [vmem:[%s278] sm:$0xff] %v1242
      %1245 = vst [vmem:[%s278 + $0x8] sm:$0xff] %v1243
      %s1246 = smul.u32 2, %s17
      %p1247 = scmp.lt.s32.totalorder %s1246, 3
      %s1248 = scalar_select %p1247, %s1246, 3
      %s1249 = smul.addr %s1248, 8
      %s1250 = scalar_lea.vmem %s6, %s1249
      // Predicated region
      $region45: #{_lambda_.8} parent=43 // pred_check
        %p1251 = pneg %p171
      $region46: #{_lambda_.8} parent=43 // pred_check_branch
        %1253 = sbr.rel (%p1251) target = $region48
      $region47: #{_lambda_.8} parent=43 // pred_region
        %s1254 = smul.u32 2, %s17
      $region48: #{_lambda_.8} parent=43 // pred_fallthru
        _
    $region44: #{_lambda_.8} parent=5 // pred_fallthru
      _
    %p1255 = scmp.le.s32.totalorder 2, %s12
    // Predicated region
    $region49: #{_lambda_.8} parent=5 // pred_check
      %p1256 = pneg %p1255
    $region50: #{_lambda_.8} parent=5 // pred_check_branch
      %1258 = sbr.rel (%p1256) target = $region52
    $region51: #{_lambda_.8} parent=5 // pred_region
      %s1259 = ssub.s32 %s12, 2
      // Predicated region
      $region53: #{_lambda_.8} parent=51 // pred_check
        %p1260 = pneg %p177
      $region54: #{_lambda_.8} parent=51 // pred_check_branch
        %1262 = sbr.rel (%p1260) target = $region56
      $region55: #{_lambda_.8} parent=51 // pred_region
        %s1263 = smul.u32 2, %s18
        %p1264 = scmp.lt.s32.totalorder %s1263, 3
        %s1265 = scalar_select %p1264, %s1263, 3
        %s1266 = smul.addr %s1265, 8
        %s1267 = scalar_lea.vmem %s6, %s1266
      $region56: #{_lambda_.8} parent=51 // pred_fallthru
        _
    $region52: #{_lambda_.8} parent=5 // pred_fallthru
      _
  $region6: #{_lambda_.8} parent=0 // loop_footer
    %s16 = sadd.s32 1, %s12
  $region7: #{_lambda_.8} parent=0 // loop_footer_branch
    %11 = sbr.rel target = $region3
  $region8: #{_lambda_.8} parent=0 // loop_exit
    _

// kernel: _lambda_.9
$region0: #{_lambda_.9}
  #allocation0 [shape = 'u32[]', space=smem, size = 0x4, offset = 0x4, fixed_abs, tag = 'smem constant byte address 0x4 - core index']
  #allocation1 [shape = 'u32[144,128]{1,0:T(1,128)}', space=vmem, size = 0x12000, scoped, tag = 'internal scratch']
  %s0 = inlined_call_operand.vmem [shape: bf16[32,1152], index: 0, kind: input, shape index: {}]
  %s1 = inlined_call_operand.vmem [shape: bf16[1152,128], index: 1, kind: input, shape index: {}]
  %s2 = inlined_call_operand.vmem [shape: f32[1,128], index: 2, kind: input, shape index: {}]
  %s3 = inlined_call_operand.vmem [shape: bf16[128,128], index: 3, kind: input, shape index: {}]
  %s4 = inlined_call_operand.vmem [shape: f32[1,128], index: 4, kind: input, shape index: {}]
  %s5 = inlined_call_operand.vmem [shape: f32[32,128], index: 5, kind: input, shape index: {}, may-alias: {5,6}]
  %s6 = inlined_call_operand.vmem [shape: f32[32,128], index: 6, kind: output, shape index: {}, may-alias: {5,6}]
  %s7 = sld [smem:[#allocation0]]
  $region57: #{_lambda_.9} parent=0
    _
  %s9 = ssub.s32 1, %s7
  %s10 = scalar_select 0, %s9, %s7
  loop: start=0, step=1, limit=4
  $region2: #{_lambda_.9} parent=0 // loop_pre_header
    _
  $region3: #{_lambda_.9} parent=0 // loop_header
    %s12 = sphi 0, %s16
    %p13 = scmp.ge.s32.totalorder %s12, 4
    %s22 = sphi 0, %s24
    %s25 = sphi 0, %s22
    %s26 = sphi 0, %s25
    %s42 = sphi 0, %s26
    %s46 = sphi 0, %s46
    %s48 = sphi 0, %s46
    %s49 = sphi 0, %s48
    %s63 = sphi 0, %s49
    %s67 = sphi 0, %s67
    %s69 = sphi 0, %s67
    %s70 = sphi 0, %s69
    %s84 = sphi 0, %s70
    %s88 = sphi 0, %s88
    %s90 = sphi 0, %s88
    %s91 = sphi 0, %s90
    %s105 = sphi 0, %s91
    %s109 = sphi 0, %s109
    %s111 = sphi 0, %s109
    %s112 = sphi 0, %s111
    %s126 = sphi 0, %s112
    %s132 = sphi 0, %s134
    %s135 = sphi 0, %s132
    %s136 = sphi 0, %s135
    %s152 = sphi 0, %s136
    %s158 = sphi 0, %s160
    %s161 = sphi 0, %s158
    %s162 = sphi 0, %s161
    %s178 = sphi 0, %s162
  $region4: #{_lambda_.9} parent=0 // loop_header_branch
    %15 = sbr.rel (%p13) target = $region8
  $region5: #{_lambda_.9} parent=0 // loop_body
    %s17 = ssub.s32 %s12, 1
    %s18 = ssub.s32 %s12, 2
    %s19 = sadd.s32 %s12, 1
    %s20 = ssub.s32 %s12, %s19
    %p21 = scmp.eq.s32.totalorder %s20, 0
    %s23 = sadd.s32 %s22, 1
    %s24 = scalar_select %p21, %s22, %s23
    %p27 = pneg %p21
    %p28 = scmp.eq.s32.totalorder %s12, 1
    %p29 = por %p27, %p28
    %p30 = scmp.ne.s32.totalorder %s22, %s25
    %p31 = scmp.eq.s32.totalorder %s12, 0
    %p32 = por %p30, %p31
    %p33 = scmp.ne.s32.totalorder %s22, %s25
    %p34 = scmp.eq.s32.totalorder %s17, 1
    %p35 = por %p33, %p34
    %p36 = scmp.ne.s32.totalorder %s25, %s26
    %p37 = scmp.eq.s32.totalorder %s17, 0
    %p38 = por %p36, %p37
    %p39 = scmp.ne.s32.totalorder %s25, %s26
    %p40 = scmp.eq.s32.totalorder %s18, 1
    %p41 = por %p39, %p40
    %p43 = scmp.ne.s32.totalorder %s26, %s42
    %p44 = scmp.eq.s32.totalorder %s18, 0
    %p45 = por %p43, %p44
    %s47 = sadd.s32 %s46, 1
    %p50 = scmp.eq.s32.totalorder %s12, 1
    %p51 = scmp.ne.s32.totalorder %s46, %s48
    %p52 = scmp.eq.s32.totalorder %s12, 0
    %p53 = por %p51, %p52
    %p54 = scmp.ne.s32.totalorder %s46, %s48
    %p55 = scmp.eq.s32.totalorder %s17, 1
    %p56 = por %p54, %p55
    %p57 = scmp.ne.s32.totalorder %s48, %s49
    %p58 = scmp.eq.s32.totalorder %s17, 0
    %p59 = por %p57, %p58
    %p60 = scmp.ne.s32.totalorder %s48, %s49
    %p61 = scmp.eq.s32.totalorder %s18, 1
    %p62 = por %p60, %p61
    %p64 = scmp.ne.s32.totalorder %s49, %s63
    %p65 = scmp.eq.s32.totalorder %s18, 0
    %p66 = por %p64, %p65
    %s68 = sadd.s32 %s67, 1
    %p71 = scmp.eq.s32.totalorder %s12, 1
    %p72 = scmp.ne.s32.totalorder %s67, %s69
    %p73 = scmp.eq.s32.totalorder %s12, 0
    %p74 = por %p72, %p73
    %p75 = scmp.ne.s32.totalorder %s67, %s69
    %p76 = scmp.eq.s32.totalorder %s17, 1
    %p77 = por %p75, %p76
    %p78 = scmp.ne.s32.totalorder %s69, %s70
    %p79 = scmp.eq.s32.totalorder %s17, 0
    %p80 = por %p78, %p79
    %p81 = scmp.ne.s32.totalorder %s69, %s70
    %p82 = scmp.eq.s32.totalorder %s18, 1
    %p83 = por %p81, %p82
    %p85 = scmp.ne.s32.totalorder %s70, %s84
    %p86 = scmp.eq.s32.totalorder %s18, 0
    %p87 = por %p85, %p86
    %s89 = sadd.s32 %s88, 1
    %p92 = scmp.eq.s32.totalorder %s12, 1
    %p93 = scmp.ne.s32.totalorder %s88, %s90
    %p94 = scmp.eq.s32.totalorder %s12, 0
    %p95 = por %p93, %p94
    %p96 = scmp.ne.s32.totalorder %s88, %s90
    %p97 = scmp.eq.s32.totalorder %s17, 1
    %p98 = por %p96, %p97
    %p99 = scmp.ne.s32.totalorder %s90, %s91
    %p100 = scmp.eq.s32.totalorder %s17, 0
    %p101 = por %p99, %p100
    %p102 = scmp.ne.s32.totalorder %s90, %s91
    %p103 = scmp.eq.s32.totalorder %s18, 1
    %p104 = por %p102, %p103
    %p106 = scmp.ne.s32.totalorder %s91, %s105
    %p107 = scmp.eq.s32.totalorder %s18, 0
    %p108 = por %p106, %p107
    %s110 = sadd.s32 %s109, 1
    %p113 = scmp.eq.s32.totalorder %s12, 1
    %p114 = scmp.ne.s32.totalorder %s109, %s111
    %p115 = scmp.eq.s32.totalorder %s12, 0
    %p116 = por %p114, %p115
    %p117 = scmp.ne.s32.totalorder %s109, %s111
    %p118 = scmp.eq.s32.totalorder %s17, 1
    %p119 = por %p117, %p118
    %p120 = scmp.ne.s32.totalorder %s111, %s112
    %p121 = scmp.eq.s32.totalorder %s17, 0
    %p122 = por %p120, %p121
    %p123 = scmp.ne.s32.totalorder %s111, %s112
    %p124 = scmp.eq.s32.totalorder %s18, 1
    %p125 = por %p123, %p124
    %p127 = scmp.ne.s32.totalorder %s112, %s126
    %p128 = scmp.eq.s32.totalorder %s18, 0
    %p129 = por %p127, %p128
    %s130 = ssub.s32 %s12, %s19
    %p131 = scmp.eq.s32.totalorder %s130, 0
    %s133 = sadd.s32 %s132, 1
    %s134 = scalar_select %p131, %s132, %s133
    %p137 = pneg %p131
    %p138 = scmp.eq.s32.totalorder %s12, 1
    %p139 = por %p137, %p138
    %p140 = scmp.ne.s32.totalorder %s132, %s135
    %p141 = scmp.eq.s32.totalorder %s12, 0
    %p142 = por %p140, %p141
    %p143 = scmp.ne.s32.totalorder %s132, %s135
    %p144 = scmp.eq.s32.totalorder %s17, 1
    %p145 = por %p143, %p144
    %p146 = scmp.ne.s32.totalorder %s135, %s136
    %p147 = scmp.eq.s32.totalorder %s17, 0
    %p148 = por %p146, %p147
    %p149 = scmp.ne.s32.totalorder %s135, %s136
    %p150 = scmp.eq.s32.totalorder %s18, 1
    %p151 = por %p149, %p150
    %p153 = scmp.ne.s32.totalorder %s136, %s152
    %p154 = scmp.eq.s32.totalorder %s18, 0
    %p155 = por %p153, %p154
    %s156 = ssub.s32 %s12, %s19
    %p157 = scmp.eq.s32.totalorder %s156, 0
    %s159 = sadd.s32 %s158, 1
    %s160 = scalar_select %p157, %s158, %s159
    %p163 = pneg %p157
    %p164 = scmp.eq.s32.totalorder %s12, 1
    %p165 = por %p163, %p164
    %p166 = scmp.ne.s32.totalorder %s158, %s161
    %p167 = scmp.eq.s32.totalorder %s12, 0
    %p168 = por %p166, %p167
    %p169 = scmp.ne.s32.totalorder %s158, %s161
    %p170 = scmp.eq.s32.totalorder %s17, 1
    %p171 = por %p169, %p170
    %p172 = scmp.ne.s32.totalorder %s161, %s162
    %p173 = scmp.eq.s32.totalorder %s17, 0
    %p174 = por %p172, %p173
    %p175 = scmp.ne.s32.totalorder %s161, %s162
    %p176 = scmp.eq.s32.totalorder %s18, 1
    %p177 = por %p175, %p176
    %p179 = scmp.ne.s32.totalorder %s162, %s178
    %p180 = scmp.eq.s32.totalorder %s18, 0
    %p181 = por %p179, %p180
    %p182 = scmp.le.s32.totalorder 1, %s12
    %p183 = scmp.lt.s32.totalorder %s12, 3
    %p184 = pnand %p182, %p183
    %p185 = pneg %p184
    // Predicated region
    $region9: #{_lambda_.9} parent=5 // pred_check
      _
    $region10: #{_lambda_.9} parent=5 // pred_check_branch
      %187 = sbr.rel (%p184) target = $region12
    $region11: #{_lambda_.9} parent=5 // pred_region
      %s188 = ssub.s32 %s12, 1
      // Predicated region
      $region13: #{_lambda_.9} parent=11 // pred_check
        %p189 = pneg %p59
      $region14: #{_lambda_.9} parent=11 // pred_check_branch
        %191 = sbr.rel (%p189) target = $region16
      $region15: #{_lambda_.9} parent=11 // pred_region
        _
      $region16: #{_lambda_.9} parent=11 // pred_fallthru
        _
      // Predicated region
      $region17: #{_lambda_.9} parent=11 // pred_check
        %p192 = pneg %p80
      $region18: #{_lambda_.9} parent=11 // pred_check_branch
        %194 = sbr.rel (%p192) target = $region20
      $region19: #{_lambda_.9} parent=11 // pred_region
        _
      $region20: #{_lambda_.9} parent=11 // pred_fallthru
        _
      // Predicated region
      $region21: #{_lambda_.9} parent=11 // pred_check
        %p195 = pneg %p101
      $region22: #{_lambda_.9} parent=11 // pred_check_branch
        %197 = sbr.rel (%p195) target = $region24
      $region23: #{_lambda_.9} parent=11 // pred_region
        _
      $region24: #{_lambda_.9} parent=11 // pred_fallthru
        _
      // Predicated region
      $region25: #{_lambda_.9} parent=11 // pred_check
        %p198 = pneg %p122
      $region26: #{_lambda_.9} parent=11 // pred_check_branch
        %200 = sbr.rel (%p198) target = $region28
      $region27: #{_lambda_.9} parent=11 // pred_region
        _
      $region28: #{_lambda_.9} parent=11 // pred_fallthru
        _
    $region12: #{_lambda_.9} parent=5 // pred_fallthru
      _
    %p201 = scmp.lt.s32.totalorder %s12, 2
    // Predicated region
    $region29: #{_lambda_.9} parent=5 // pred_check
      %p202 = pneg %p201
    $region30: #{_lambda_.9} parent=5 // pred_check_branch
      %204 = sbr.rel (%p202) target = $region32
    $region31: #{_lambda_.9} parent=5 // pred_region
      // Predicated region
      $region33: #{_lambda_.9} parent=31 // pred_check
        %p205 = pneg %p32
      $region34: #{_lambda_.9} parent=31 // pred_check_branch
        %207 = sbr.rel (%p205) target = $region36
      $region35: #{_lambda_.9} parent=31 // pred_region
        %s208 = smul.u32 2, %s12
        %p209 = scmp.lt.s32.totalorder %s208, 3
        %s210 = scalar_select %p209, %s208, 3
        %s211 = smul.addr %s210, 9
        %s212 = smul.addr %s211, 4
        %s213 = scalar_lea.vmem %s0, %s212
        %s214 = smul.u32 2, %s12
      $region36: #{_lambda_.9} parent=31 // pred_fallthru
        _
      // Predicated region
      $region37: #{_lambda_.9} parent=31 // pred_check
        %p215 = pneg %p142
      $region38: #{_lambda_.9} parent=31 // pred_check_branch
        %217 = sbr.rel (%p215) target = $region40
      $region39: #{_lambda_.9} parent=31 // pred_region
        %s218 = smul.u32 2, %s12
        %p219 = scmp.lt.s32.totalorder %s218, 3
        %s220 = scalar_select %p219, %s218, 3
        %s221 = smul.addr %s220, 8
        %s222 = scalar_lea.vmem %s5, %s221
        %s223 = smul.u32 2, %s12
      $region40: #{_lambda_.9} parent=31 // pred_fallthru
        _
    $region32: #{_lambda_.9} parent=5 // pred_fallthru
      _
    %p224 = scmp.le.s32.totalorder 1, %s12
    %p225 = scmp.lt.s32.totalorder %s12, 3
    %p226 = pnand %p224, %p225
    %p227 = pneg %p226
    // Predicated region
    $region41: #{_lambda_.9} parent=5 // pred_check
      _
    $region42: #{_lambda_.9} parent=5 // pred_check_branch
      %229 = sbr.rel (%p226) target = $region44
    $region43: #{_lambda_.9} parent=5 // pred_region
      %s230 = ssub.s32 %s12, 1
      %s231 = smul.u32 2, %s17
      %p232 = scmp.lt.s32.totalorder %s231, 3
      %s233 = scalar_select %p232, %s231, 3
      %s234 = smul.addr %s233, 9
      %s235 = smul.addr %s234, 4
      %s236 = scalar_lea.vmem %s0, %s235
      %p237 = pneg %p38
      %p238 = pneg %p35
      %p239 = pneg %p59
      %p240 = pneg %p56
      %p241 = pneg %p80
      %p242 = pneg %p77
      %p243 = pneg %p101
      %p244 = pneg %p98
      %p245 = pneg %p122
      %p246 = pneg %p119
      %s247 = smul.u32 2, %s17
      %p248 = scmp.lt.s32.totalorder %s247, 3
      %s249 = scalar_select %p248, %s247, 3
      %s250 = smul.addr %s249, 8
      %s251 = scalar_lea.vmem %s5, %s250
      %p252 = pneg %p148
      %p253 = pneg %p145
      %p254 = pneg %p174
      %p255 = pneg %p171
      %s256 = smul.u32 2, %s17
      %p257 = scmp.lt.s32.totalorder %s256, 3
      %s258 = scalar_select %p257, %s256, 3
      %s259 = smul.addr %s258, 8
      %s260 = scalar_lea.vmem %s6, %s259
      %s261 = smul.u32 2, %s17
      %p262 = scmp.lt.s32.totalorder %s261, 3
      %s263 = scalar_select %p262, %s261, 3
      %s264 = smul.addr %s263, 9
      %s265 = smul.addr %s264, 4
      %s266 = scalar_lea.vmem %s0, %s265
      %s267 = smul.u32 2, %s17
      %s268 = smul.u32 2, %s17
      %p269 = scmp.lt.s32.totalorder %s268, 3
      %s270 = scalar_select %p269, %s268, 3
      %s271 = smul.addr %s270, 8
      %s272 = scalar_lea.vmem %s5, %s271
      %s273 = smul.u32 2, %s17
      %s274 = smul.u32 2, %s17
      %p275 = scmp.lt.s32.totalorder %s274, 3
      %s276 = scalar_select %p275, %s274, 3
      %s277 = smul.addr %s276, 8
      %s278 = scalar_lea.vmem %s6, %s277
      %s279 = smul.u32 2, %s17
      %v281 = vld [vmem:[%s266] sm:$0xff]
      %v282 = vld [vmem:[%s266 + $0x8] sm:$0xff]
      %v283 = vld [vmem:[%s266 + $0x10] sm:$0xff]
      %v284 = vld [vmem:[%s266 + $0x18] sm:$0xff]
      %v285 = vld [vmem:[%s266 + $0x20] sm:$0xf]
      %v286 = vld [vmem:[%s266 + $0x24] sm:$0xff]
      %v287 = vld [vmem:[%s266 + $0x2c] sm:$0xff]
      %v288 = vld [vmem:[%s266 + $0x34] sm:$0xff]
      %v289 = vld [vmem:[%s266 + $0x3c] sm:$0xff]
      %v290 = vld [vmem:[%s266 + $0x44] sm:$0xf]
      %v291 = vld [vmem:[%s1] sm:$0xf]
      %v292 = vld [vmem:[%s1 + $0x4] sm:$0xf]
      %v293 = vld [vmem:[%s1 + $0x8] sm:$0xf]
      %v294 = vld [vmem:[%s1 + $0xc] sm:$0xf]
      %v295 = vld [vmem:[%s1 + $0x10] sm:$0xf]
      %v296 = vld [vmem:[%s1 + $0x14] sm:$0xf]
      %v297 = vld [vmem:[%s1 + $0x18] sm:$0xf]
      %v298 = vld [vmem:[%s1 + $0x1c] sm:$0xf]
      %v299 = vld [vmem:[%s1 + $0x20] sm:$0xf]
      %v300 = vld [vmem:[%s1 + $0x24] sm:$0xf]
      %v301 = vld [vmem:[%s1 + $0x28] sm:$0xf]
      %v302 = vld [vmem:[%s1 + $0x2c] sm:$0xf]
      %v303 = vld [vmem:[%s1 + $0x30] sm:$0xf]
      %v304 = vld [vmem:[%s1 + $0x34] sm:$0xf]
      %v305 = vld [vmem:[%s1 + $0x38] sm:$0xf]
      %v306 = vld [vmem:[%s1 + $0x3c] sm:$0xf]
      %v307 = vld [vmem:[%s1 + $0x40] sm:$0xf]
      %v308 = vld [vmem:[%s1 + $0x44] sm:$0xf]
      %v309 = vld [vmem:[%s1 + $0x48] sm:$0xf]
      %v310 = vld [vmem:[%s1 + $0x4c] sm:$0xf]
      %v311 = vld [vmem:[%s1 + $0x50] sm:$0xf]
      %v312 = vld [vmem:[%s1 + $0x54] sm:$0xf]
      %v313 = vld [vmem:[%s1 + $0x58] sm:$0xf]
      %v314 = vld [vmem:[%s1 + $0x5c] sm:$0xf]
      %v315 = vld [vmem:[%s1 + $0x60] sm:$0xf]
      %v316 = vld [vmem:[%s1 + $0x64] sm:$0xf]
      %v317 = vld [vmem:[%s1 + $0x68] sm:$0xf]
      %v318 = vld [vmem:[%s1 + $0x6c] sm:$0xf]
      %v319 = vld [vmem:[%s1 + $0x70] sm:$0xf]
      %v320 = vld [vmem:[%s1 + $0x74] sm:$0xf]
      %v321 = vld [vmem:[%s1 + $0x78] sm:$0xf]
      %v322 = vld [vmem:[%s1 + $0x7c] sm:$0xf]
      %v323 = vld [vmem:[%s1 + $0x80] sm:$0xf]
      %v324 = vld [vmem:[%s1 + $0x84] sm:$0xf]
      %v325 = vld [vmem:[%s1 + $0x88] sm:$0xf]
      %v326 = vld [vmem:[%s1 + $0x8c] sm:$0xf]
      %v327 = vld [vmem:[%s1 + $0x90] sm:$0xf]
      %v328 = vld [vmem:[%s1 + $0x94] sm:$0xf]
      %v329 = vld [vmem:[%s1 + $0x98] sm:$0xf]
      %v330 = vld [vmem:[%s1 + $0x9c] sm:$0xf]
      %v331 = vld [vmem:[%s1 + $0xa0] sm:$0xf]
      %v332 = vld [vmem:[%s1 + $0xa4] sm:$0xf]
      %v333 = vld [vmem:[%s1 + $0xa8] sm:$0xf]
      %v334 = vld [vmem:[%s1 + $0xac] sm:$0xf]
      %v335 = vld [vmem:[%s1 + $0xb0] sm:$0xf]
      %v336 = vld [vmem:[%s1 + $0xb4] sm:$0xf]
      %v337 = vld [vmem:[%s1 + $0xb8] sm:$0xf]
      %v338 = vld [vmem:[%s1 + $0xbc] sm:$0xf]
      %v339 = vld [vmem:[%s1 + $0xc0] sm:$0xf]
      %v340 = vld [vmem:[%s1 + $0xc4] sm:$0xf]
      %v341 = vld [vmem:[%s1 + $0xc8] sm:$0xf]
      %v342 = vld [vmem:[%s1 + $0xcc] sm:$0xf]
      %v343 = vld [vmem:[%s1 + $0xd0] sm:$0xf]
      %v344 = vld [vmem:[%s1 + $0xd4] sm:$0xf]
      %v345 = vld [vmem:[%s1 + $0xd8] sm:$0xf]
      %v346 = vld [vmem:[%s1 + $0xdc] sm:$0xf]
      %v347 = vld [vmem:[%s1 + $0xe0] sm:$0xf]
      %v348 = vld [vmem:[%s1 + $0xe4] sm:$0xf]
      %v349 = vld [vmem:[%s1 + $0xe8] sm:$0xf]
      %v350 = vld [vmem:[%s1 + $0xec] sm:$0xf]
      %v351 = vld [vmem:[%s1 + $0xf0] sm:$0xf]
      %v352 = vld [vmem:[%s1 + $0xf4] sm:$0xf]
      %v353 = vld [vmem:[%s1 + $0xf8] sm:$0xf]
      %v354 = vld [vmem:[%s1 + $0xfc] sm:$0xf]
      %v355 = vld [vmem:[%s1 + $0x100] sm:$0xf]
      %v356 = vld [vmem:[%s1 + $0x104] sm:$0xf]
      %v357 = vld [vmem:[%s1 + $0x108] sm:$0xf]
      %v358 = vld [vmem:[%s1 + $0x10c] sm:$0xf]
      %v359 = vld [vmem:[%s1 + $0x110] sm:$0xf]
      %v360 = vld [vmem:[%s1 + $0x114] sm:$0xf]
      %v361 = vld [vmem:[%s1 + $0x118] sm:$0xf]
      %v362 = vld [vmem:[%s1 + $0x11c] sm:$0xf]
      %v363 = vld [vmem:[%s1 + $0x120] sm:$0xf]
      %v364 = vld [vmem:[%s1 + $0x124] sm:$0xf]
      %v365 = vld [vmem:[%s1 + $0x128] sm:$0xf]
      %v366 = vld [vmem:[%s1 + $0x12c] sm:$0xf]
      %v367 = vld [vmem:[%s1 + $0x130] sm:$0xf]
      %v368 = vld [vmem:[%s1 + $0x134] sm:$0xf]
      %v369 = vld [vmem:[%s1 + $0x138] sm:$0xf]
      %v370 = vld [vmem:[%s1 + $0x13c] sm:$0xf]
      %v371 = vld [vmem:[%s1 + $0x140] sm:$0xf]
      %v372 = vld [vmem:[%s1 + $0x144] sm:$0xf]
      %v373 = vld [vmem:[%s1 + $0x148] sm:$0xf]
      %v374 = vld [vmem:[%s1 + $0x14c] sm:$0xf]
      %v375 = vld [vmem:[%s1 + $0x150] sm:$0xf]
      %v376 = vld [vmem:[%s1 + $0x154] sm:$0xf]
      %v377 = vld [vmem:[%s1 + $0x158] sm:$0xf]
      %v378 = vld [vmem:[%s1 + $0x15c] sm:$0xf]
      %v379 = vld [vmem:[%s1 + $0x160] sm:$0xf]
      %v380 = vld [vmem:[%s1 + $0x164] sm:$0xf]
      %v381 = vld [vmem:[%s1 + $0x168] sm:$0xf]
      %v382 = vld [vmem:[%s1 + $0x16c] sm:$0xf]
      %v383 = vld [vmem:[%s1 + $0x170] sm:$0xf]
      %v384 = vld [vmem:[%s1 + $0x174] sm:$0xf]
      %v385 = vld [vmem:[%s1 + $0x178] sm:$0xf]
      %v386 = vld [vmem:[%s1 + $0x17c] sm:$0xf]
      %v387 = vld [vmem:[%s1 + $0x180] sm:$0xf]
      %v388 = vld [vmem:[%s1 + $0x184] sm:$0xf]
      %v389 = vld [vmem:[%s1 + $0x188] sm:$0xf]
      %v390 = vld [vmem:[%s1 + $0x18c] sm:$0xf]
      %v391 = vld [vmem:[%s1 + $0x190] sm:$0xf]
      %v392 = vld [vmem:[%s1 + $0x194] sm:$0xf]
      %v393 = vld [vmem:[%s1 + $0x198] sm:$0xf]
      %v394 = vld [vmem:[%s1 + $0x19c] sm:$0xf]
      %v395 = vld [vmem:[%s1 + $0x1a0] sm:$0xf]
      %v396 = vld [vmem:[%s1 + $0x1a4] sm:$0xf]
      %v397 = vld [vmem:[%s1 + $0x1a8] sm:$0xf]
      %v398 = vld [vmem:[%s1 + $0x1ac] sm:$0xf]
      %v399 = vld [vmem:[%s1 + $0x1b0] sm:$0xf]
      %v400 = vld [vmem:[%s1 + $0x1b4] sm:$0xf]
      %v401 = vld [vmem:[%s1 + $0x1b8] sm:$0xf]
      %v402 = vld [vmem:[%s1 + $0x1bc] sm:$0xf]
      %v403 = vld [vmem:[%s1 + $0x1c0] sm:$0xf]
      %v404 = vld [vmem:[%s1 + $0x1c4] sm:$0xf]
      %v405 = vld [vmem:[%s1 + $0x1c8] sm:$0xf]
      %v406 = vld [vmem:[%s1 + $0x1cc] sm:$0xf]
      %v407 = vld [vmem:[%s1 + $0x1d0] sm:$0xf]
      %v408 = vld [vmem:[%s1 + $0x1d4] sm:$0xf]
      %v409 = vld [vmem:[%s1 + $0x1d8] sm:$0xf]
      %v410 = vld [vmem:[%s1 + $0x1dc] sm:$0xf]
      %v411 = vld [vmem:[%s1 + $0x1e0] sm:$0xf]
      %v412 = vld [vmem:[%s1 + $0x1e4] sm:$0xf]
      %v413 = vld [vmem:[%s1 + $0x1e8] sm:$0xf]
      %v414 = vld [vmem:[%s1 + $0x1ec] sm:$0xf]
      %v415 = vld [vmem:[%s1 + $0x1f0] sm:$0xf]
      %v416 = vld [vmem:[%s1 + $0x1f4] sm:$0xf]
      %v417 = vld [vmem:[%s1 + $0x1f8] sm:$0xf]
      %v418 = vld [vmem:[%s1 + $0x1fc] sm:$0xf]
      %v419 = vld [vmem:[%s1 + $0x200] sm:$0xf]
      %v420 = vld [vmem:[%s1 + $0x204] sm:$0xf]
      %v421 = vld [vmem:[%s1 + $0x208] sm:$0xf]
      %v422 = vld [vmem:[%s1 + $0x20c] sm:$0xf]
      %v423 = vld [vmem:[%s1 + $0x210] sm:$0xf]
      %v424 = vld [vmem:[%s1 + $0x214] sm:$0xf]
      %v425 = vld [vmem:[%s1 + $0x218] sm:$0xf]
      %v426 = vld [vmem:[%s1 + $0x21c] sm:$0xf]
      %v427 = vld [vmem:[%s1 + $0x220] sm:$0xf]
      %v428 = vld [vmem:[%s1 + $0x224] sm:$0xf]
      %v429 = vld [vmem:[%s1 + $0x228] sm:$0xf]
      %v430 = vld [vmem:[%s1 + $0x22c] sm:$0xf]
      %v431 = vld [vmem:[%s1 + $0x230] sm:$0xf]
      %v432 = vld [vmem:[%s1 + $0x234] sm:$0xf]
      %v433 = vld [vmem:[%s1 + $0x238] sm:$0xf]
      %v434 = vld [vmem:[%s1 + $0x23c] sm:$0xf]
      %v435 = vld [vmem:[%s2] sm:$0x1]
      %v437 = vlaneseq
      %v438 = vshrl.u32 %v437, 7
      %v439 = vsub.s32 0, %v438
      %v440 = vrot.slane %v435, %v439
      %v452 = vunpack.c.l.b16 %v281
      %v453 = vunpack.c.h.b16 %v281
      %v454 = vunpack.c.l.b16 %v282
      %v455 = vunpack.c.h.b16 %v282
      %v456 = vunpack.c.l.b16 %v283
      %v457 = vunpack.c.h.b16 %v283
      %v458 = vunpack.c.l.b16 %v284
      %v459 = vunpack.c.h.b16 %v284
      %v460 = vunpack.c.l.b16 %v285
      %v461 = vunpack.c.l.b16 %v286
      %v462 = vunpack.c.h.b16 %v286
      %v463 = vunpack.c.l.b16 %v287
      %v464 = vunpack.c.h.b16 %v287
      %v465 = vunpack.c.l.b16 %v288
      %v466 = vunpack.c.h.b16 %v288
      %v467 = vunpack.c.l.b16 %v289
      %v468 = vunpack.c.h.b16 %v289
      %v469 = vunpack.c.l.b16 %v290
      %v470 = vpack.c.b16 %v461, %v452
      %v471 = vpack.c.b16 %v462, %v453
      %v472 = vpack.c.b16 %v463, %v454
      %v473 = vpack.c.b16 %v464, %v455
      %v474 = vpack.c.b16 %v465, %v456
      %v475 = vpack.c.b16 %v466, %v457
      %v476 = vpack.c.b16 %v467, %v458
      %v477 = vpack.c.b16 %v468, %v459
      %v478 = vpack.c.b16 %v469, %v460
      %v632 = vunpack.c.l.b16 %v291
      %v633 = vunpack.c.l.b16 %v292
      %v634 = vunpack.c.l.b16 %v293
      %v635 = vunpack.c.l.b16 %v294
      %v636 = vunpack.c.l.b16 %v295
      %v637 = vunpack.c.l.b16 %v296
      %v638 = vunpack.c.l.b16 %v297
      %v639 = vunpack.c.l.b16 %v298
      %v640 = vunpack.c.l.b16 %v299
      %v641 = vunpack.c.l.b16 %v300
      %v642 = vunpack.c.l.b16 %v301
      %v643 = vunpack.c.l.b16 %v302
      %v644 = vunpack.c.l.b16 %v303
      %v645 = vunpack.c.l.b16 %v304
      %v646 = vunpack.c.l.b16 %v305
      %v647 = vunpack.c.l.b16 %v306
      %v648 = vunpack.c.l.b16 %v307
      %v649 = vunpack.c.l.b16 %v308
      %v650 = vunpack.c.l.b16 %v309
      %v651 = vunpack.c.l.b16 %v310
      %v652 = vunpack.c.l.b16 %v311
      %v653 = vunpack.c.l.b16 %v312
      %v654 = vunpack.c.l.b16 %v313
      %v655 = vunpack.c.l.b16 %v314
      %v656 = vunpack.c.l.b16 %v315
      %v657 = vunpack.c.l.b16 %v316
      %v658 = vunpack.c.l.b16 %v317
      %v659 = vunpack.c.l.b16 %v318
      %v660 = vunpack.c.l.b16 %v319
      %v661 = vunpack.c.l.b16 %v320
      %v662 = vunpack.c.l.b16 %v321
      %v663 = vunpack.c.l.b16 %v322
      %v664 = vunpack.c.l.b16 %v323
      %v665 = vunpack.c.l.b16 %v324
      %v666 = vunpack.c.l.b16 %v325
      %v667 = vunpack.c.l.b16 %v326
      %v668 = vunpack.c.l.b16 %v327
      %v669 = vunpack.c.l.b16 %v328
      %v670 = vunpack.c.l.b16 %v329
      %v671 = vunpack.c.l.b16 %v330
      %v672 = vunpack.c.l.b16 %v331
      %v673 = vunpack.c.l.b16 %v332
      %v674 = vunpack.c.l.b16 %v333
      %v675 = vunpack.c.l.b16 %v334
      %v676 = vunpack.c.l.b16 %v335
      %v677 = vunpack.c.l.b16 %v336
      %v678 = vunpack.c.l.b16 %v337
      %v679 = vunpack.c.l.b16 %v338
      %v680 = vunpack.c.l.b16 %v339
      %v681 = vunpack.c.l.b16 %v340
      %v682 = vunpack.c.l.b16 %v341
      %v683 = vunpack.c.l.b16 %v342
      %v684 = vunpack.c.l.b16 %v343
      %v685 = vunpack.c.l.b16 %v344
      %v686 = vunpack.c.l.b16 %v345
      %v687 = vunpack.c.l.b16 %v346
      %v688 = vunpack.c.l.b16 %v347
      %v689 = vunpack.c.l.b16 %v348
      %v690 = vunpack.c.l.b16 %v349
      %v691 = vunpack.c.l.b16 %v350
      %v692 = vunpack.c.l.b16 %v351
      %v693 = vunpack.c.l.b16 %v352
      %v694 = vunpack.c.l.b16 %v353
      %v695 = vunpack.c.l.b16 %v354
      %v696 = vunpack.c.l.b16 %v355
      %v697 = vunpack.c.l.b16 %v356
      %v698 = vunpack.c.l.b16 %v357
      %v699 = vunpack.c.l.b16 %v358
      %v700 = vunpack.c.l.b16 %v359
      %v701 = vunpack.c.l.b16 %v360
      %v702 = vunpack.c.l.b16 %v361
      %v703 = vunpack.c.l.b16 %v362
      %v704 = vunpack.c.l.b16 %v363
      %v705 = vunpack.c.l.b16 %v364
      %v706 = vunpack.c.l.b16 %v365
      %v707 = vunpack.c.l.b16 %v366
      %v708 = vunpack.c.l.b16 %v367
      %v709 = vunpack.c.l.b16 %v368
      %v710 = vunpack.c.l.b16 %v369
      %v711 = vunpack.c.l.b16 %v370
      %v712 = vunpack.c.l.b16 %v371
      %v713 = vunpack.c.l.b16 %v372
      %v714 = vunpack.c.l.b16 %v373
      %v715 = vunpack.c.l.b16 %v374
      %v716 = vunpack.c.l.b16 %v375
      %v717 = vunpack.c.l.b16 %v376
      %v718 = vunpack.c.l.b16 %v377
      %v719 = vunpack.c.l.b16 %v378
      %v720 = vunpack.c.l.b16 %v379
      %v721 = vunpack.c.l.b16 %v380
      %v722 = vunpack.c.l.b16 %v381
      %v723 = vunpack.c.l.b16 %v382
      %v724 = vunpack.c.l.b16 %v383
      %v725 = vunpack.c.l.b16 %v384
      %v726 = vunpack.c.l.b16 %v385
      %v727 = vunpack.c.l.b16 %v386
      %v728 = vunpack.c.l.b16 %v387
      %v729 = vunpack.c.l.b16 %v388
      %v730 = vunpack.c.l.b16 %v389
      %v731 = vunpack.c.l.b16 %v390
      %v732 = vunpack.c.l.b16 %v391
      %v733 = vunpack.c.l.b16 %v392
      %v734 = vunpack.c.l.b16 %v393
      %v735 = vunpack.c.l.b16 %v394
      %v736 = vunpack.c.l.b16 %v395
      %v737 = vunpack.c.l.b16 %v396
      %v738 = vunpack.c.l.b16 %v397
      %v739 = vunpack.c.l.b16 %v398
      %v740 = vunpack.c.l.b16 %v399
      %v741 = vunpack.c.l.b16 %v400
      %v742 = vunpack.c.l.b16 %v401
      %v743 = vunpack.c.l.b16 %v402
      %v744 = vunpack.c.l.b16 %v403
      %v745 = vunpack.c.l.b16 %v404
      %v746 = vunpack.c.l.b16 %v405
      %v747 = vunpack.c.l.b16 %v406
      %v748 = vunpack.c.l.b16 %v407
      %v749 = vunpack.c.l.b16 %v408
      %v750 = vunpack.c.l.b16 %v409
      %v751 = vunpack.c.l.b16 %v410
      %v752 = vunpack.c.l.b16 %v411
      %v753 = vunpack.c.l.b16 %v412
      %v754 = vunpack.c.l.b16 %v413
      %v755 = vunpack.c.l.b16 %v414
      %v756 = vunpack.c.l.b16 %v415
      %v757 = vunpack.c.l.b16 %v416
      %v758 = vunpack.c.l.b16 %v417
      %v759 = vunpack.c.l.b16 %v418
      %v760 = vunpack.c.l.b16 %v419
      %v761 = vunpack.c.l.b16 %v420
      %v762 = vunpack.c.l.b16 %v421
      %v763 = vunpack.c.l.b16 %v422
      %v764 = vunpack.c.l.b16 %v423
      %v765 = vunpack.c.l.b16 %v424
      %v766 = vunpack.c.l.b16 %v425
      %v767 = vunpack.c.l.b16 %v426
      %v768 = vunpack.c.l.b16 %v427
      %v769 = vunpack.c.l.b16 %v428
      %v770 = vunpack.c.l.b16 %v429
      %v771 = vunpack.c.l.b16 %v430
      %v772 = vunpack.c.l.b16 %v431
      %v773 = vunpack.c.l.b16 %v432
      %v774 = vunpack.c.l.b16 %v433
      %v775 = vunpack.c.l.b16 %v434
      %v776 = vpack.c.b16 %v633, %v632
      %v777 = vpack.c.b16 %v635, %v634
      %v778 = vpack.c.b16 %v637, %v636
      %v779 = vpack.c.b16 %v639, %v638
      %v780 = vpack.c.b16 %v641, %v640
      %v781 = vpack.c.b16 %v643, %v642
      %v782 = vpack.c.b16 %v645, %v644
      %v783 = vpack.c.b16 %v647, %v646
      %v784 = vpack.c.b16 %v649, %v648
      %v785 = vpack.c.b16 %v651, %v650
      %v786 = vpack.c.b16 %v653, %v652
      %v787 = vpack.c.b16 %v655, %v654
      %v788 = vpack.c.b16 %v657, %v656
      %v789 = vpack.c.b16 %v659, %v658
      %v790 = vpack.c.b16 %v661, %v660
      %v791 = vpack.c.b16 %v663, %v662
      %v792 = vpack.c.b16 %v665, %v664
      %v793 = vpack.c.b16 %v667, %v666
      %v794 = vpack.c.b16 %v669, %v668
      %v795 = vpack.c.b16 %v671, %v670
      %v796 = vpack.c.b16 %v673, %v672
      %v797 = vpack.c.b16 %v675, %v674
      %v798 = vpack.c.b16 %v677, %v676
      %v799 = vpack.c.b16 %v679, %v678
      %v800 = vpack.c.b16 %v681, %v680
      %v801 = vpack.c.b16 %v683, %v682
      %v802 = vpack.c.b16 %v685, %v684
      %v803 = vpack.c.b16 %v687, %v686
      %v804 = vpack.c.b16 %v689, %v688
      %v805 = vpack.c.b16 %v691, %v690
      %v806 = vpack.c.b16 %v693, %v692
      %v807 = vpack.c.b16 %v695, %v694
      %v808 = vpack.c.b16 %v697, %v696
      %v809 = vpack.c.b16 %v699, %v698
      %v810 = vpack.c.b16 %v701, %v700
      %v811 = vpack.c.b16 %v703, %v702
      %v812 = vpack.c.b16 %v705, %v704
      %v813 = vpack.c.b16 %v707, %v706
      %v814 = vpack.c.b16 %v709, %v708
      %v815 = vpack.c.b16 %v711, %v710
      %v816 = vpack.c.b16 %v713, %v712
      %v817 = vpack.c.b16 %v715, %v714
      %v818 = vpack.c.b16 %v717, %v716
      %v819 = vpack.c.b16 %v719, %v718
      %v820 = vpack.c.b16 %v721, %v720
      %v821 = vpack.c.b16 %v723, %v722
      %v822 = vpack.c.b16 %v725, %v724
      %v823 = vpack.c.b16 %v727, %v726
      %v824 = vpack.c.b16 %v729, %v728
      %v825 = vpack.c.b16 %v731, %v730
      %v826 = vpack.c.b16 %v733, %v732
      %v827 = vpack.c.b16 %v735, %v734
      %v828 = vpack.c.b16 %v737, %v736
      %v829 = vpack.c.b16 %v739, %v738
      %v830 = vpack.c.b16 %v741, %v740
      %v831 = vpack.c.b16 %v743, %v742
      %v832 = vpack.c.b16 %v745, %v744
      %v833 = vpack.c.b16 %v747, %v746
      %v834 = vpack.c.b16 %v749, %v748
      %v835 = vpack.c.b16 %v751, %v750
      %v836 = vpack.c.b16 %v753, %v752
      %v837 = vpack.c.b16 %v755, %v754
      %v838 = vpack.c.b16 %v757, %v756
      %v839 = vpack.c.b16 %v759, %v758
      %v840 = vpack.c.b16 %v761, %v760
      %v841 = vpack.c.b16 %v763, %v762
      %v842 = vpack.c.b16 %v765, %v764
      %v843 = vpack.c.b16 %v767, %v766
      %v844 = vpack.c.b16 %v769, %v768
      %v845 = vpack.c.b16 %v771, %v770
      %v846 = vpack.c.b16 %v773, %v772
      %v847 = vpack.c.b16 %v775, %v774
      %920 = vmatprep.subr.bf16.mxu0 0
      %921 = vmatpush1.bf16.msra.mxu0 %v776
      %922 = vmatprep.subr.bf16.mxu0 0
      %923 = vmatpush1.bf16.msra.mxu0 %v777
      %924 = vmatprep.subr.bf16.mxu0 0
      %925 = vmatpush1.bf16.msra.mxu0 %v778
      %926 = vmatprep.subr.bf16.mxu0 0
      %927 = vmatpush1.bf16.msra.mxu0 %v779
      %928 = vmatprep.subr.bf16.mxu0 0
      %929 = vmatpush1.bf16.msra.mxu0 %v780
      %930 = vmatprep.subr.bf16.mxu0 0
      %931 = vmatpush1.bf16.msra.mxu0 %v781
      %932 = vmatprep.subr.bf16.mxu0 0
      %933 = vmatpush1.bf16.msra.mxu0 %v782
      %934 = vmatprep.subr.bf16.mxu0 0
      %935 = vmatpush1.bf16.msra.mxu0 %v783
      %936 = vmatprep.subr.bf16.mxu0 0
      %937 = vmatpush1.bf16.msra.mxu0 %v784
      %938 = vmatprep.subr.bf16.mxu0 0
      %939 = vmatpush1.bf16.msra.mxu0 %v785
      %940 = vmatprep.subr.bf16.mxu0 0
      %941 = vmatpush1.bf16.msra.mxu0 %v786
      %942 = vmatprep.subr.bf16.mxu0 0
      %943 = vmatpush1.bf16.msra.mxu0 %v787
      %944 = vmatprep.subr.bf16.mxu0 0
      %945 = vmatpush1.bf16.msra.mxu0 %v788
      %946 = vmatprep.subr.bf16.mxu0 0
      %947 = vmatpush1.bf16.msra.mxu0 %v789
      %948 = vmatprep.subr.bf16.mxu0 0
      %949 = vmatpush1.bf16.msra.mxu0 %v790
      %950 = vmatprep.subr.bf16.mxu0 0
      %951 = vmatpush1.bf16.msra.mxu0 %v791
      %952 = vmatprep.mubr.bf16.mxu0 %v471
      %953 = vmatmul.mubr.bf16.gmra.mrb[0].mxu0 %v470
      %v954 = vpop.f32.mrb[0].mxu0
      %v955 = vadd.f32 %v440, %v954
      %v956 = vpop.f32.mrb[0].mxu0
      %v957 = vpop.f32.mrb[0].mxu0
      %v958 = vadd.f32 %v440, %v957
      %v959 = vpop.f32.mrb[0].mxu0
      %960 = vdwg.mxu0
      %961 = vmatprep.subr.bf16.mxu0 0
      %962 = vmatpush1.bf16.msra.mxu0 %v792
      %963 = vmatprep.subr.bf16.mxu0 0
      %964 = vmatpush1.bf16.msra.mxu0 %v793
      %965 = vmatprep.subr.bf16.mxu0 0
      %966 = vmatpush1.bf16.msra.mxu0 %v794
      %967 = vmatprep.subr.bf16.mxu0 0
      %968 = vmatpush1.bf16.msra.mxu0 %v795
      %969 = vmatprep.subr.bf16.mxu0 0
      %970 = vmatpush1.bf16.msra.mxu0 %v796
      %971 = vmatprep.subr.bf16.mxu0 0
      %972 = vmatpush1.bf16.msra.mxu0 %v797
      %973 = vmatprep.subr.bf16.mxu0 0
      %974 = vmatpush1.bf16.msra.mxu0 %v798
      %975 = vmatprep.subr.bf16.mxu0 0
      %976 = vmatpush1.bf16.msra.mxu0 %v799
      %977 = vmatprep.subr.bf16.mxu0 0
      %978 = vmatpush1.bf16.msra.mxu0 %v800
      %979 = vmatprep.subr.bf16.mxu0 0
      %980 = vmatpush1.bf16.msra.mxu0 %v801
      %981 = vmatprep.subr.bf16.mxu0 0
      %982 = vmatpush1.bf16.msra.mxu0 %v802
      %983 = vmatprep.subr.bf16.mxu0 0
      %984 = vmatpush1.bf16.msra.mxu0 %v803
      %985 = vmatprep.subr.bf16.mxu0 0
      %986 = vmatpush1.bf16.msra.mxu0 %v804
      %987 = vmatprep.subr.bf16.mxu0 0
      %988 = vmatpush1.bf16.msra.mxu0 %v805
      %989 = vmatprep.subr.bf16.mxu0 0
      %990 = vmatpush1.bf16.msra.mxu0 %v806
      %991 = vmatprep.subr.bf16.mxu0 0
      %992 = vmatpush1.bf16.msra.mxu0 %v807
      %993 = vmatprep.mubr.bf16.mxu0 %v473
      %994 = vmatmul.mubr.bf16.gmra.mrb[0].mxu0 %v472
      %v995 = vpop.f32.mrb[0].mxu0
      %v996 = vadd.f32 %v955, %v995
      %v997 = vpop.f32.mrb[0].mxu0
      %v998 = vpop.f32.mrb[0].mxu0
      %v999 = vadd.f32 %v958, %v998
      %v1000 = vpop.f32.mrb[0].mxu0
      %1001 = vdwg.mxu0
      %1002 = vmatprep.subr.bf16.mxu0 0
      %1003 = vmatpush1.bf16.msra.mxu0 %v808
      %1004 = vmatprep.subr.bf16.mxu0 0
      %1005 = vmatpush1.bf16.msra.mxu0 %v809
      %1006 = vmatprep.subr.bf16.mxu0 0
      %1007 = vmatpush1.bf16.msra.mxu0 %v810
      %1008 = vmatprep.subr.bf16.mxu0 0
      %1009 = vmatpush1.bf16.msra.mxu0 %v811
      %1010 = vmatprep.subr.bf16.mxu0 0
      %1011 = vmatpush1.bf16.msra.mxu0 %v812
      %1012 = vmatprep.subr.bf16.mxu0 0
      %1013 = vmatpush1.bf16.msra.mxu0 %v813
      %1014 = vmatprep.subr.bf16.mxu0 0
      %1015 = vmatpush1.bf16.msra.mxu0 %v814
      %1016 = vmatprep.subr.bf16.mxu0 0
      %1017 = vmatpush1.bf16.msra.mxu0 %v815
      %1018 = vmatprep.subr.bf16.mxu0 0
      %1019 = vmatpush1.bf16.msra.mxu0 %v816
      %1020 = vmatprep.subr.bf16.mxu0 0
      %1021 = vmatpush1.bf16.msra.mxu0 %v817
      %1022 = vmatprep.subr.bf16.mxu0 0
      %1023 = vmatpush1.bf16.msra.mxu0 %v818
      %1024 = vmatprep.subr.bf16.mxu0 0
      %1025 = vmatpush1.bf16.msra.mxu0 %v819
      %1026 = vmatprep.subr.bf16.mxu0 0
      %1027 = vmatpush1.bf16.msra.mxu0 %v820
      %1028 = vmatprep.subr.bf16.mxu0 0
      %1029 = vmatpush1.bf16.msra.mxu0 %v821
      %1030 = vmatprep.subr.bf16.mxu0 0
      %1031 = vmatpush1.bf16.msra.mxu0 %v822
      %1032 = vmatprep.subr.bf16.mxu0 0
      %1033 = vmatpush1.bf16.msra.mxu0 %v823
      %1034 = vmatprep.mubr.bf16.mxu0 %v475
      %1035 = vmatmul.mubr.bf16.gmra.mrb[0].mxu0 %v474
      %v1036 = vpop.f32.mrb[0].mxu0
      %v1037 = vadd.f32 %v996, %v1036
      %v1038 = vpop.f32.mrb[0].mxu0
      %v1039 = vpop.f32.mrb[0].mxu0
      %v1040 = vadd.f32 %v999, %v1039
      %v1041 = vpop.f32.mrb[0].mxu0
      %1042 = vdwg.mxu0
      %1043 = vmatprep.subr.bf16.mxu0 0
      %1044 = vmatpush1.bf16.msra.mxu0 %v824
      %1045 = vmatprep.subr.bf16.mxu0 0
      %1046 = vmatpush1.bf16.msra.mxu0 %v825
      %1047 = vmatprep.subr.bf16.mxu0 0
      %1048 = vmatpush1.bf16.msra.mxu0 %v826
      %1049 = vmatprep.subr.bf16.mxu0 0
      %1050 = vmatpush1.bf16.msra.mxu0 %v827
      %1051 = vmatprep.subr.bf16.mxu0 0
      %1052 = vmatpush1.bf16.msra.mxu0 %v828
      %1053 = vmatprep.subr.bf16.mxu0 0
      %1054 = vmatpush1.bf16.msra.mxu0 %v829
      %1055 = vmatprep.subr.bf16.mxu0 0
      %1056 = vmatpush1.bf16.msra.mxu0 %v830
      %1057 = vmatprep.subr.bf16.mxu0 0
      %1058 = vmatpush1.bf16.msra.mxu0 %v831
      %1059 = vmatprep.subr.bf16.mxu0 0
      %1060 = vmatpush1.bf16.msra.mxu0 %v832
      %1061 = vmatprep.subr.bf16.mxu0 0
      %1062 = vmatpush1.bf16.msra.mxu0 %v833
      %1063 = vmatprep.subr.bf16.mxu0 0
      %1064 = vmatpush1.bf16.msra.mxu0 %v834
      %1065 = vmatprep.subr.bf16.mxu0 0
      %1066 = vmatpush1.bf16.msra.mxu0 %v835
      %1067 = vmatprep.subr.bf16.mxu0 0
      %1068 = vmatpush1.bf16.msra.mxu0 %v836
      %1069 = vmatprep.subr.bf16.mxu0 0
      %1070 = vmatpush1.bf16.msra.mxu0 %v837
      %1071 = vmatprep.subr.bf16.mxu0 0
      %1072 = vmatpush1.bf16.msra.mxu0 %v838
      %1073 = vmatprep.subr.bf16.mxu0 0
      %1074 = vmatpush1.bf16.msra.mxu0 %v839
      %1075 = vmatprep.mubr.bf16.mxu0 %v477
      %1076 = vmatmul.mubr.bf16.gmra.mrb[0].mxu0 %v476
      %v1077 = vpop.f32.mrb[0].mxu0
      %v1078 = vadd.f32 %v1037, %v1077
      %v1079 = vpop.f32.mrb[0].mxu0
      %v1080 = vpop.f32.mrb[0].mxu0
      %v1081 = vadd.f32 %v1040, %v1080
      %v1082 = vpop.f32.mrb[0].mxu0
      %1083 = vdwg.mxu0
      %1084 = vmatprep.subr.bf16.mxu0 0
      %1085 = vmatpush1.bf16.msra.mxu0 %v840
      %1086 = vmatprep.subr.bf16.mxu0 0
      %1087 = vmatpush1.bf16.msra.mxu0 %v841
      %1088 = vmatprep.subr.bf16.mxu0 0
      %1089 = vmatpush1.bf16.msra.mxu0 %v842
      %1090 = vmatprep.subr.bf16.mxu0 0
      %1091 = vmatpush1.bf16.msra.mxu0 %v843
      %1092 = vmatprep.subr.bf16.mxu0 0
      %1093 = vmatpush1.bf16.msra.mxu0 %v844
      %1094 = vmatprep.subr.bf16.mxu0 0
      %1095 = vmatpush1.bf16.msra.mxu0 %v845
      %1096 = vmatprep.subr.bf16.mxu0 0
      %1097 = vmatpush1.bf16.msra.mxu0 %v846
      %1098 = vmatprep.subr.bf16.mxu0 0
      %1099 = vmatpush1.bf16.msra.mxu0 %v847
      %1100 = vmatprep.subr.bf16.mxu0 0
      %1101 = vmatpush1.bf16.msra.mxu0 0
      %1102 = vmatprep.subr.bf16.mxu0 0
      %1103 = vmatpush1.bf16.msra.mxu0 0
      %1104 = vmatprep.subr.bf16.mxu0 0
      %1105 = vmatpush1.bf16.msra.mxu0 0
      %1106 = vmatprep.subr.bf16.mxu0 0
      %1107 = vmatpush1.bf16.msra.mxu0 0
      %1108 = vmatprep.subr.bf16.mxu0 0
      %1109 = vmatpush1.bf16.msra.mxu0 0
      %1110 = vmatprep.subr.bf16.mxu0 0
      %1111 = vmatpush1.bf16.msra.mxu0 0
      %1112 = vmatprep.subr.bf16.mxu0 0
      %1113 = vmatpush1.bf16.msra.mxu0 0
      %1114 = vmatprep.subr.bf16.mxu0 0
      %1115 = vmatpush1.bf16.msra.mxu0 0
      %1116 = vmatprep.mubr.bf16.mxu0 0
      %1117 = vmatmul.mubr.bf16.gmra.mrb[0].mxu0 %v478
      %v1118 = vpop.f32.mrb[0].mxu0
      %v1119 = vadd.f32 %v1078, %v1118
      %v1120 = vpop.f32.mrb[0].mxu0
      %v1121 = vpop.f32.mrb[0].mxu0
      %v1122 = vadd.f32 %v1081, %v1121
      %v1123 = vpop.f32.mrb[0].mxu0
      %1124 = vdwg.mxu0
      %v1125 = vmax.f32 %v1119, 0.0
      %v1126 = vmax.f32 %v1122, 0.0
      %v1127 = vpack.c.bf16 %v1126, %v1125
      %v1128 = vld [vmem:[%s3] sm:$0xf]
      %v1129 = vld [vmem:[%s3 + $0x4] sm:$0xf]
      %v1130 = vld [vmem:[%s3 + $0x8] sm:$0xf]
      %v1131 = vld [vmem:[%s3 + $0xc] sm:$0xf]
      %v1132 = vld [vmem:[%s3 + $0x10] sm:$0xf]
      %v1133 = vld [vmem:[%s3 + $0x14] sm:$0xf]
      %v1134 = vld [vmem:[%s3 + $0x18] sm:$0xf]
      %v1135 = vld [vmem:[%s3 + $0x1c] sm:$0xf]
      %v1136 = vld [vmem:[%s3 + $0x20] sm:$0xf]
      %v1137 = vld [vmem:[%s3 + $0x24] sm:$0xf]
      %v1138 = vld [vmem:[%s3 + $0x28] sm:$0xf]
      %v1139 = vld [vmem:[%s3 + $0x2c] sm:$0xf]
      %v1140 = vld [vmem:[%s3 + $0x30] sm:$0xf]
      %v1141 = vld [vmem:[%s3 + $0x34] sm:$0xf]
      %v1142 = vld [vmem:[%s3 + $0x38] sm:$0xf]
      %v1143 = vld [vmem:[%s3 + $0x3c] sm:$0xf]
      %v1144 = vld [vmem:[%s4] sm:$0x1]
      %v1146 = vlaneseq
      %v1147 = vshrl.u32 %v1146, 7
      %v1148 = vsub.s32 0, %v1147
      %v1149 = vrot.slane %v1144, %v1148
      %v1167 = vunpack.c.l.b16 %v1128
      %v1168 = vunpack.c.l.b16 %v1129
      %v1169 = vunpack.c.l.b16 %v1130
      %v1170 = vunpack.c.l.b16 %v1131
      %v1171 = vunpack.c.l.b16 %v1132
      %v1172 = vunpack.c.l.b16 %v1133
      %v1173 = vunpack.c.l.b16 %v1134
      %v1174 = vunpack.c.l.b16 %v1135
      %v1175 = vunpack.c.l.b16 %v1136
      %v1176 = vunpack.c.l.b16 %v1137
      %v1177 = vunpack.c.l.b16 %v1138
      %v1178 = vunpack.c.l.b16 %v1139
      %v1179 = vunpack.c.l.b16 %v1140
      %v1180 = vunpack.c.l.b16 %v1141
      %v1181 = vunpack.c.l.b16 %v1142
      %v1182 = vunpack.c.l.b16 %v1143
      %v1183 = vpack.c.b16 %v1168, %v1167
      %v1184 = vpack.c.b16 %v1170, %v1169
      %v1185 = vpack.c.b16 %v1172, %v1171
      %v1186 = vpack.c.b16 %v1174, %v1173
      %v1187 = vpack.c.b16 %v1176, %v1175
      %v1188 = vpack.c.b16 %v1178, %v1177
      %v1189 = vpack.c.b16 %v1180, %v1179
      %v1190 = vpack.c.b16 %v1182, %v1181
      %1199 = vmatprep.subr.bf16.mxu0 0
      %1200 = vmatpush1.bf16.msra.mxu0 %v1183
      %1201 = vmatprep.subr.bf16.mxu0 0
      %1202 = vmatpush1.bf16.msra.mxu0 %v1184
      %1203 = vmatprep.subr.bf16.mxu0 0
      %1204 = vmatpush1.bf16.msra.mxu0 %v1185
      %1205 = vmatprep.subr.bf16.mxu0 0
      %1206 = vmatpush1.bf16.msra.mxu0 %v1186
      %1207 = vmatprep.subr.bf16.mxu0 0
      %1208 = vmatpush1.bf16.msra.mxu0 %v1187
      %1209 = vmatprep.subr.bf16.mxu0 0
      %1210 = vmatpush1.bf16.msra.mxu0 %v1188
      %1211 = vmatprep.subr.bf16.mxu0 0
      %1212 = vmatpush1.bf16.msra.mxu0 %v1189
      %1213 = vmatprep.subr.bf16.mxu0 0
      %1214 = vmatpush1.bf16.msra.mxu0 %v1190
      %1215 = vmatprep.subr.bf16.mxu0 0
      %1216 = vmatpush1.bf16.msra.mxu0 0
      %1217 = vmatprep.subr.bf16.mxu0 0
      %1218 = vmatpush1.bf16.msra.mxu0 0
      %1219 = vmatprep.subr.bf16.mxu0 0
      %1220 = vmatpush1.bf16.msra.mxu0 0
      %1221 = vmatprep.subr.bf16.mxu0 0
      %1222 = vmatpush1.bf16.msra.mxu0 0
      %1223 = vmatprep.subr.bf16.mxu0 0
      %1224 = vmatpush1.bf16.msra.mxu0 0
      %1225 = vmatprep.subr.bf16.mxu0 0
      %1226 = vmatpush1.bf16.msra.mxu0 0
      %1227 = vmatprep.subr.bf16.mxu0 0
      %1228 = vmatpush1.bf16.msra.mxu0 0
      %1229 = vmatprep.subr.bf16.mxu0 0
      %1230 = vmatpush1.bf16.msra.mxu0 0
      %1231 = vmatprep.mubr.bf16.mxu0 0
      %1232 = vmatmul.mubr.bf16.gmra.mrb[0].mxu0 %v1127
      %v1233 = vpop.f32.mrb[0].mxu0
      %v1234 = vadd.f32 %v1149, %v1233
      %v1235 = vpop.f32.mrb[0].mxu0
      %v1236 = vpop.f32.mrb[0].mxu0
      %v1237 = vadd.f32 %v1149, %v1236
      %v1238 = vpop.f32.mrb[0].mxu0
      %1239 = vdwg.mxu0
      %v1240 = vld [vmem:[%s272] sm:$0xff]
      %v1241 = vld [vmem:[%s272 + $0x8] sm:$0xff]
      %v1242 = vadd.f32 %v1234, %v1240
      %v1243 = vadd.f32 %v1237, %v1241
      %v1244 = vmax.f32 %v1242, 0.0
      %v1245 = vmax.f32 %v1243, 0.0
      %1246 = vst [vmem:[%s278] sm:$0xff] %v1244
      %1247 = vst [vmem:[%s278 + $0x8] sm:$0xff] %v1245
      %s1248 = smul.u32 2, %s17
      %p1249 = scmp.lt.s32.totalorder %s1248, 3
      %s1250 = scalar_select %p1249, %s1248, 3
      %s1251 = smul.addr %s1250, 8
      %s1252 = scalar_lea.vmem %s6, %s1251
      // Predicated region
      $region45: #{_lambda_.9} parent=43 // pred_check
        %p1253 = pneg %p171
      $region46: #{_lambda_.9} parent=43 // pred_check_branch
        %1255 = sbr.rel (%p1253) target = $region48
      $region47: #{_lambda_.9} parent=43 // pred_region
        %s1256 = smul.u32 2, %s17
      $region48: #{_lambda_.9} parent=43 // pred_fallthru
        _
    $region44: #{_lambda_.9} parent=5 // pred_fallthru
      _
    %p1257 = scmp.le.s32.totalorder 2, %s12
    // Predicated region
    $region49: #{_lambda_.9} parent=5 // pred_check
      %p1258 = pneg %p1257
    $region50: #{_lambda_.9} parent=5 // pred_check_branch
      %1260 = sbr.rel (%p1258) target = $region52
    $region51: #{_lambda_.9} parent=5 // pred_region
      %s1261 = ssub.s32 %s12, 2
      // Predicated region
      $region53: #{_lambda_.9} parent=51 // pred_check
        %p1262 = pneg %p177
      $region54: #{_lambda_.9} parent=51 // pred_check_branch
        %1264 = sbr.rel (%p1262) target = $region56
      $region55: #{_lambda_.9} parent=51 // pred_region
        %s1265 = smul.u32 2, %s18
        %p1266 = scmp.lt.s32.totalorder %s1265, 3
        %s1267 = scalar_select %p1266, %s1265, 3
        %s1268 = smul.addr %s1267, 8
        %s1269 = scalar_lea.vmem %s6, %s1268
      $region56: #{_lambda_.9} parent=51 // pred_fallthru
        _
    $region52: #{_lambda_.9} parent=5 // pred_fallthru
      _
  $region6: #{_lambda_.9} parent=0 // loop_footer
    %s16 = sadd.s32 1, %s12
  $region7: #{_lambda_.9} parent=0 // loop_footer_branch
    %11 = sbr.rel target = $region3
  $region8: #{_lambda_.9} parent=0 // loop_exit
    _

</llo_original>
